<compile_context>
chip_gen: v6e
topology: v6e:2x2x1
jax: 0.10.0
libtpu: 0.0.40
codegen_flags: <defaults>
</compile_context>

<pallas_src>
import jax
import jax.numpy as jnp
from jax import lax
from jax.experimental import pallas as pl
from jax.experimental.pallas import tpu as pltpu

TYPE = "GRU"
DECODER_NUM_LAYERS = 1
HIDDEN_DIM = 32
EMBED_DIM = 32
OUTPUT_DIM = 32          # vocabulary size
MAX_LENGTH = 8
BIDIRECTIONAL = False
BATCH_FIRST = True
START_TOKEN = 0
GATE_PAD = 128           # each GRU gate gets its own 128-lane slab
VOCAB_PAD = 128          # logits / one-hot padded to a full 128-lane vreg
NEG_INF = -1e30


def decoder_kernel(start_onehot_ref, h0_ref, w_e_ref, w_fused_ref,
                   b_hn_ref, b_out_ref, logits_ref, h_final_ref):
    """MAX_LENGTH greedy GRU decode steps, fully unrolled, everything in VMEM."""
    B = start_onehot_ref.shape[0]
    G, Vp = GATE_PAD, VOCAB_PAD

    # Tiny per-step constants hoisted once (1 vreg each; JAX does not CSE them).
    b_hn = jnp.broadcast_to(b_hn_ref[...], (B, G))
    b_out = jnp.broadcast_to(b_out_ref[...], (B, Vp))
    lane_iota = lax.broadcasted_iota(jnp.int32, (B, Vp), 1)

    h = h0_ref[...]                    # (B, G), lanes >= HIDDEN_DIM stay zero
    onehot = start_onehot_ref[...]     # (B, Vp)

    # Prologue: gh_0 = h0 @ W_hh (drop the logits columns of the fused RHS).
    gh = jnp.dot(h, w_fused_ref[...],
                 preferred_element_type=jnp.float32)[:, Vp:]     # (B, 3G)

    for t in range(MAX_LENGTH):   # fixed trip count -> unrolled, static stores
        # Input gates: one-hot row-select of the precomputed, bias-folded table.
        # (Refs are re-read each iteration on purpose -- see header notes.)
        gi = jnp.dot(onehot, w_e_ref[...], preferred_element_type=jnp.float32)

        # torch.nn.GRU gate order (r, z, n); r|z share one sigmoid call and every
        # slice is a whole 128-lane slab (no XLU traffic on the critical path).
        rz = jax.nn.sigmoid(gi[:, :2 * G] + gh[:, :2 * G])
        r = rz[:, :G]
        z = rz[:, G:]
        n = jnp.tanh(gi[:, 2 * G:] + r * (gh[:, 2 * G:] + b_hn))
        h = (1.0 - z) * n + z * h

        # Fused output-projection + next-step hidden matmul (logits columns first).
        if t < MAX_LENGTH - 1:
            fused = jnp.dot(h, w_fused_ref[...],
                            preferred_element_type=jnp.float32)  # (B, Vp + 3G)
            logits = fused[:, :Vp] + b_out
            gh = fused[:, Vp:]
        else:
            logits = jnp.dot(h, w_fused_ref[:, :Vp],
                             preferred_element_type=jnp.float32) + b_out

        # Static, 128-aligned, full-vreg (unmasked) store.
        logits_ref[:, t * Vp:(t + 1) * Vp] = logits

        # Greedy feedback: topk(1) == first index attaining the max.
        # Pad lanes carry -1e30 so they can never win.
        maxv = jnp.max(logits, axis=1, keepdims=True)
        idx = jnp.min(jnp.where(logits == maxv, lane_iota, Vp),
                      axis=1, keepdims=True)
        onehot = (lane_iota == idx).astype(jnp.float32)

    h_final_ref[...] = h[:, :HIDDEN_DIM]


def prepare_decoder_params(params):
    """One-time weight prep: fused token table + fused [W_out | W_hh] RHS."""
    H, V, G, Vp = HIDDEN_DIM, OUTPUT_DIM, GATE_PAD, VOCAB_PAD
    w_ih, w_hh = params["w_ih"], params["w_hh"]      # (E,3H), (H,3H)
    b_ih, b_hh = params["b_ih"], params["b_hh"]      # (1,3H)

    # Fused token table: relu(emb) @ W_ih with b_ih (+ b_hh for r/z) folded in.
    tbl = jnp.dot(jax.nn.relu(params["emb"].astype(jnp.float32)),
                  w_ih.astype(jnp.float32))           # (V, 3H)
    w_e = jnp.zeros((Vp, 3 * G), jnp.float32)
    for g in range(3):
        blk = tbl[:, g * H:(g + 1) * H] + b_ih[:, g * H:(g + 1) * H]
        if g < 2:                                     # r, z: fold b_hh too
            blk = blk + b_hh[:, g * H:(g + 1) * H]
        w_e = w_e.at[:V, g * G:g * G + H].set(blk)

    # Fused per-step RHS: [ W_out (lane-padded, FIRST) | W_hh (gate-padded) ].
    w_fused = jnp.zeros((G, Vp + 3 * G), jnp.float32)
    w_fused = w_fused.at[:H, :V].set(params["w_out"])
    for g in range(3):
        w_fused = w_fused.at[:H, Vp + g * G:Vp + g * G + H].set(
            w_hh[:, g * H:(g + 1) * H])

    b_hn = jnp.zeros((1, G), jnp.float32).at[:, :H].set(b_hh[:, 2 * H:])
    b_out = jnp.full((1, Vp), NEG_INF, jnp.float32).at[:, :V].set(params["b_out"])

    return {"w_e": w_e, "w_fused": w_fused, "b_hn": b_hn, "b_out": b_out}


def decoder_forward(encoder_outputs, encoder_hidden, kparams):
    """Mirrors Decoder.forward(encoder_outputs, encoder_hidden, target_tensor=None)."""
    # TODO(synk): teacher forcing (target_tensor + host-side random.random()) not
    # implemented; greedy decode path only (target_tensor=None semantics).
    B = encoder_outputs.shape[0]
    V, H, G, Vp = OUTPUT_DIM, HIDDEN_DIM, GATE_PAD, VOCAB_PAD

    # Hidden-state adaptation from the PyTorch forward (no-op for 1-layer unidir).
    n_states = DECODER_NUM_LAYERS * (1 + int(BIDIRECTIONAL))
    if encoder_hidden.shape[0] != n_states:
        mean_h = jnp.mean(encoder_hidden, axis=0)
        encoder_hidden = jnp.stack([mean_h] * n_states, axis=0)
    h0 = encoder_hidden[0]                                       # (B, H)
    h0_p = jnp.zeros((B, G), jnp.float32).at[:, :H].set(h0)      # lane-padded hidden

    start_onehot = jax.nn.one_hot(
        jnp.full((B,), START_TOKEN, jnp.int32), Vp, dtype=jnp.float32)

    vmem = pl.BlockSpec(memory_space=pltpu.MemorySpace.VMEM)

    flops = 2 * B * (G * (Vp + 3 * G)                         # prologue gh_0
                     + MAX_LENGTH * Vp * 3 * G                # gi per step
                     + (MAX_LENGTH - 1) * G * (Vp + 3 * G)    # fused per step
                     + G * Vp)                                # last-step logits
    transcendentals = MAX_LENGTH * B * 3 * G
    bytes_accessed = 4 * (B * Vp + B * G + Vp * 3 * G + G * (Vp + 3 * G)
                          + G + Vp + B * MAX_LENGTH * Vp + B * H)

    logits_flat, h_final = pl.pallas_call(
        decoder_kernel,
        out_shape=(
            jax.ShapeDtypeStruct((B, MAX_LENGTH * Vp), jnp.float32),
            jax.ShapeDtypeStruct((B, H), jnp.float32),
        ),
        in_specs=[vmem] * 6,
        out_specs=(vmem, vmem),
        cost_estimate=pl.CostEstimate(flops=flops,
                                      transcendentals=transcendentals,
                                      bytes_accessed=bytes_accessed),
    )(start_onehot, h0_p, kparams["w_e"], kparams["w_fused"],
      kparams["b_hn"], kparams["b_out"])

    # Free reshape + tiny slice to drop the 128-lane padding.
    decoder_outputs = logits_flat.reshape(B, MAX_LENGTH, Vp)[:, :, :V]
    decoder_hidden = h_final[None]                    # (num_layers*dirs, B, H)
    return decoder_outputs, decoder_hidden


def decoder_reference(encoder_hidden, params, batch_size):
    """Pure-JAX reference reproducing the same greedy decode (for validation)."""
    H = HIDDEN_DIM
    h = encoder_hidden[0]
    token = jnp.full((batch_size,), START_TOKEN, jnp.int32)
    outs = []
    for _ in range(MAX_LENGTH):
        x = jax.nn.relu(params["emb"][token])
        gi = x @ params["w_ih"] + params["b_ih"]
        gh = h @ params["w_hh"] + params["b_hh"]
        r = jax.nn.sigmoid(gi[:, :H] + gh[:, :H])
        z = jax.nn.sigmoid(gi[:, H:2 * H] + gh[:, H:2 * H])
        n = jnp.tanh(gi[:, 2 * H:] + r * gh[:, 2 * H:])
        h = (1.0 - z) * n + z * h
        logits = h @ params["w_out"] + params["b_out"]
        outs.append(logits)
        token = jnp.argmax(logits, axis=1)
    return jnp.stack(outs, axis=1), h[None]


if __name__ == "__main__":
    key = jax.random.PRNGKey(0)
    keys = jax.random.split(key, 9)

    B, S_ENC = 8, 4
    k = 1.0 / jnp.sqrt(jnp.float32(HIDDEN_DIM))

    # Deterministic synthetic parameters (shapes follow torch's Embedding/GRU/Linear,
    # stored pre-transposed so the math is x @ W).
    params = {
        "emb":   jax.random.normal(keys[0], (OUTPUT_DIM, EMBED_DIM), jnp.float32),
        "w_ih":  jax.random.uniform(keys[1], (EMBED_DIM, 3 * HIDDEN_DIM), jnp.float32, -k, k),
        "w_hh":  jax.random.uniform(keys[2], (HIDDEN_DIM, 3 * HIDDEN_DIM), jnp.float32, -k, k),
        "b_ih":  jax.random.uniform(keys[3], (1, 3 * HIDDEN_DIM), jnp.float32, -k, k),
        "b_hh":  jax.random.uniform(keys[4], (1, 3 * HIDDEN_DIM), jnp.float32, -k, k),
        "w_out": jax.random.uniform(keys[5], (HIDDEN_DIM, OUTPUT_DIM), jnp.float32, -k, k),
        "b_out": jax.random.uniform(keys[6], (1, OUTPUT_DIM), jnp.float32, -k, k),
    }
    kparams = prepare_decoder_params(params)   # one-time fused / padded layout

    encoder_outputs = jax.random.normal(keys[7], (B, S_ENC, HIDDEN_DIM), jnp.float32)
    encoder_hidden = jax.random.normal(
        keys[8], (DECODER_NUM_LAYERS * (1 + int(BIDIRECTIONAL)), B, HIDDEN_DIM),
        jnp.float32)

    outs, hid = decoder_forward(encoder_outputs, encoder_hidden, kparams)
    jax.block_until_ready((outs, hid))

    ref_outs, ref_hid = decoder_reference(encoder_hidden, params, B)
    assert outs.shape == (B, MAX_LENGTH, OUTPUT_DIM)
    assert hid.shape == (DECODER_NUM_LAYERS, B, HIDDEN_DIM)
    assert jnp.allclose(outs, ref_outs, atol=1e-4), "logits mismatch vs reference"
    assert jnp.allclose(hid, ref_hid, atol=1e-4), "hidden mismatch vs reference"

    print("KERNEL_OK")
</pallas_src>

<mosaic_0001>
module attributes {stable_mosaic.version = 11 : i64} {
  func.func @decoder_kernel(%arg0: memref<8x128xf32, #tpu.memory_space<vmem>>, %arg1: memref<8x128xf32, #tpu.memory_space<vmem>>, %arg2: memref<128x384xf32, #tpu.memory_space<vmem>>, %arg3: memref<128x512xf32, #tpu.memory_space<vmem>>, %arg4: memref<1x128xf32, #tpu.memory_space<vmem>>, %arg5: memref<1x128xf32, #tpu.memory_space<vmem>>, %arg6: memref<8x1024xf32, #tpu.memory_space<vmem>>, %arg7: memref<8x32xf32, #tpu.memory_space<vmem>>) attributes {dimension_semantics = [], scalar_prefetch = 0 : i64, scratch_operands = 0 : i64, tpu.core_type = #tpu.core_type<tc>} {
    %c0 = arith.constant 0 : index
    %c0_0 = arith.constant 0 : index
    %0 = vector.load %arg4[%c0, %c0_0] : memref<1x128xf32, #tpu.memory_space<vmem>>, vector<1x128xf32>
    %1 = vector.shape_cast %0 : vector<1x128xf32> to vector<1x128xf32>
    %2 = vector.broadcast %1 : vector<1x128xf32> to vector<8x128xf32>
    %c0_1 = arith.constant 0 : index
    %c0_2 = arith.constant 0 : index
    %3 = vector.load %arg5[%c0_1, %c0_2] : memref<1x128xf32, #tpu.memory_space<vmem>>, vector<1x128xf32>
    %4 = vector.shape_cast %3 : vector<1x128xf32> to vector<1x128xf32>
    %5 = vector.broadcast %4 : vector<1x128xf32> to vector<8x128xf32>
    %6 = tpu.iota {dimensions = array<i32: 1>} : vector<8x128xi32>
    %c0_3 = arith.constant 0 : index
    %c0_4 = arith.constant 0 : index
    %7 = vector.load %arg1[%c0_3, %c0_4] : memref<8x128xf32, #tpu.memory_space<vmem>>, vector<8x128xf32>
    %c0_5 = arith.constant 0 : index
    %c0_6 = arith.constant 0 : index
    %8 = vector.load %arg0[%c0_5, %c0_6] : memref<8x128xf32, #tpu.memory_space<vmem>>, vector<8x128xf32>
    %c0_7 = arith.constant 0 : index
    %c0_8 = arith.constant 0 : index
    %9 = vector.load %arg3[%c0_7, %c0_8] : memref<128x512xf32, #tpu.memory_space<vmem>>, vector<128x512xf32>
    %cst = arith.constant dense<0.000000e+00> : vector<8x512xf32>
    %10 = tpu.matmul %7, %9, %cst {dimension_numbers = #tpu.dot_dimension_numbers<[1], [0], [0], [1], [0, 0, 1, 1], [], []>} : vector<8x128xf32>, vector<128x512xf32>, vector<8x512xf32> -> vector<8x512xf32>
    %11 = vector.extract_strided_slice %10 {offsets = [0, 128], sizes = [8, 384], strides = [1, 1]} : vector<8x512xf32> to vector<8x384xf32>
    %c0_9 = arith.constant 0 : index
    %c0_10 = arith.constant 0 : index
    %12 = vector.load %arg2[%c0_9, %c0_10] : memref<128x384xf32, #tpu.memory_space<vmem>>, vector<128x384xf32>
    %cst_11 = arith.constant dense<0.000000e+00> : vector<8x384xf32>
    %13 = tpu.matmul %8, %12, %cst_11 {dimension_numbers = #tpu.dot_dimension_numbers<[1], [0], [0], [1], [0, 0, 1, 1], [], []>} : vector<8x128xf32>, vector<128x384xf32>, vector<8x384xf32> -> vector<8x384xf32>
    %14 = vector.extract_strided_slice %13 {offsets = [0, 0], sizes = [8, 256], strides = [1, 1]} : vector<8x384xf32> to vector<8x256xf32>
    %15 = vector.extract_strided_slice %11 {offsets = [0, 0], sizes = [8, 256], strides = [1, 1]} : vector<8x384xf32> to vector<8x256xf32>
    %16 = arith.addf %14, %15 : vector<8x256xf32>
    %17 = arith.negf %16 : vector<8x256xf32>
    %18 = math.exp %17 : vector<8x256xf32>
    %cst_12 = arith.constant 1.000000e+00 : f32
    %19 = vector.broadcast %cst_12 : f32 to vector<8x256xf32>
    %20 = arith.addf %19, %18 : vector<8x256xf32>
    %21 = arith.divf %19, %20 : vector<8x256xf32>
    %22 = vector.extract_strided_slice %21 {offsets = [0, 0], sizes = [8, 128], strides = [1, 1]} : vector<8x256xf32> to vector<8x128xf32>
    %23 = vector.extract_strided_slice %21 {offsets = [0, 128], sizes = [8, 128], strides = [1, 1]} : vector<8x256xf32> to vector<8x128xf32>
    %24 = vector.extract_strided_slice %13 {offsets = [0, 256], sizes = [8, 128], strides = [1, 1]} : vector<8x384xf32> to vector<8x128xf32>
    %25 = vector.extract_strided_slice %11 {offsets = [0, 256], sizes = [8, 128], strides = [1, 1]} : vector<8x384xf32> to vector<8x128xf32>
    %26 = arith.addf %25, %2 : vector<8x128xf32>
    %27 = arith.mulf %22, %26 : vector<8x128xf32>
    %28 = arith.addf %24, %27 : vector<8x128xf32>
    %29 = math.tanh %28 : vector<8x128xf32>
    %cst_13 = arith.constant 1.000000e+00 : f32
    %30 = vector.broadcast %cst_13 : f32 to vector<8x128xf32>
    %31 = arith.subf %30, %23 : vector<8x128xf32>
    %32 = arith.mulf %31, %29 : vector<8x128xf32>
    %33 = arith.mulf %23, %7 : vector<8x128xf32>
    %34 = arith.addf %32, %33 : vector<8x128xf32>
    %c0_14 = arith.constant 0 : index
    %c0_15 = arith.constant 0 : index
    %35 = vector.load %arg3[%c0_14, %c0_15] : memref<128x512xf32, #tpu.memory_space<vmem>>, vector<128x512xf32>
    %cst_16 = arith.constant dense<0.000000e+00> : vector<8x512xf32>
    %36 = tpu.matmul %34, %35, %cst_16 {dimension_numbers = #tpu.dot_dimension_numbers<[1], [0], [0], [1], [0, 0, 1, 1], [], []>} : vector<8x128xf32>, vector<128x512xf32>, vector<8x512xf32> -> vector<8x512xf32>
    %37 = vector.extract_strided_slice %36 {offsets = [0, 0], sizes = [8, 128], strides = [1, 1]} : vector<8x512xf32> to vector<8x128xf32>
    %38 = arith.addf %37, %5 : vector<8x128xf32>
    %39 = vector.extract_strided_slice %36 {offsets = [0, 128], sizes = [8, 384], strides = [1, 1]} : vector<8x512xf32> to vector<8x384xf32>
    %c0_17 = arith.constant 0 : index
    %c0_18 = arith.constant 0 : index
    %40 = vector.load %arg6[%c0_17, %c0_18] : memref<8x1024xf32, #tpu.memory_space<vmem>>, vector<8x128xf32>
    tpu.vector_store %arg6[%c0_17, %c0_18], %38 {strides = array<i32>} : memref<8x1024xf32, #tpu.memory_space<vmem>>, vector<8x128xf32>,
    %cst_19 = arith.constant dense<0xFF800000> : vector<8xf32>
    %41 = vector.multi_reduction <maximumf>, %38, %cst_19 [1] : vector<8x128xf32> to vector<8xf32>
    %42 = vector.shape_cast %41 : vector<8xf32> to vector<8x1xf32>
    %43 = vector.broadcast %42 : vector<8x1xf32> to vector<8x128xf32>
    %44 = arith.cmpf oeq, %38, %43 : vector<8x128xf32>
    %c128_i32 = arith.constant 128 : i32
    %45 = vector.broadcast %c128_i32 : i32 to vector<8x128xi32>
    %46 = arith.select %44, %6, %45 : vector<8x128xi1>, vector<8x128xi32>
    %cst_20 = arith.constant dense<2147483647> : vector<8xi32>
    %47 = vector.multi_reduction <minsi>, %46, %cst_20 [1] : vector<8x128xi32> to vector<8xi32>
    %48 = vector.shape_cast %47 : vector<8xi32> to vector<8x1xi32>
    %49 = vector.broadcast %48 : vector<8x1xi32> to vector<8x128xi32>
    %50 = arith.cmpi eq, %6, %49 : vector<8x128xi32>
    %51 = arith.extui %50 : vector<8x128xi1> to vector<8x128xi32>
    %52 = arith.sitofp %51 : vector<8x128xi32> to vector<8x128xf32>
    %c0_21 = arith.constant 0 : index
    %c0_22 = arith.constant 0 : index
    %53 = vector.load %arg2[%c0_21, %c0_22] : memref<128x384xf32, #tpu.memory_space<vmem>>, vector<128x384xf32>
    %cst_23 = arith.constant dense<0.000000e+00> : vector<8x384xf32>
    %54 = tpu.matmul %52, %53, %cst_23 {dimension_numbers = #tpu.dot_dimension_numbers<[1], [0], [0], [1], [0, 0, 1, 1], [], []>} : vector<8x128xf32>, vector<128x384xf32>, vector<8x384xf32> -> vector<8x384xf32>
    %55 = vector.extract_strided_slice %54 {offsets = [0, 0], sizes = [8, 256], strides = [1, 1]} : vector<8x384xf32> to vector<8x256xf32>
    %56 = vector.extract_strided_slice %39 {offsets = [0, 0], sizes = [8, 256], strides = [1, 1]} : vector<8x384xf32> to vector<8x256xf32>
    %57 = arith.addf %55, %56 : vector<8x256xf32>
    %58 = arith.negf %57 : vector<8x256xf32>
    %59 = math.exp %58 : vector<8x256xf32>
    %cst_24 = arith.constant 1.000000e+00 : f32
    %60 = vector.broadcast %cst_24 : f32 to vector<8x256xf32>
    %61 = arith.addf %60, %59 : vector<8x256xf32>
    %62 = arith.divf %60, %61 : vector<8x256xf32>
    %63 = vector.extract_strided_slice %62 {offsets = [0, 0], sizes = [8, 128], strides = [1, 1]} : vector<8x256xf32> to vector<8x128xf32>
    %64 = vector.extract_strided_slice %62 {offsets = [0, 128], sizes = [8, 128], strides = [1, 1]} : vector<8x256xf32> to vector<8x128xf32>
    %65 = vector.extract_strided_slice %54 {offsets = [0, 256], sizes = [8, 128], strides = [1, 1]} : vector<8x384xf32> to vector<8x128xf32>
    %66 = vector.extract_strided_slice %39 {offsets = [0, 256], sizes = [8, 128], strides = [1, 1]} : vector<8x384xf32> to vector<8x128xf32>
    %67 = arith.addf %66, %2 : vector<8x128xf32>
    %68 = arith.mulf %63, %67 : vector<8x128xf32>
    %69 = arith.addf %65, %68 : vector<8x128xf32>
    %70 = math.tanh %69 : vector<8x128xf32>
    %cst_25 = arith.constant 1.000000e+00 : f32
    %71 = vector.broadcast %cst_25 : f32 to vector<8x128xf32>
    %72 = arith.subf %71, %64 : vector<8x128xf32>
    %73 = arith.mulf %72, %70 : vector<8x128xf32>
    %74 = arith.mulf %64, %34 : vector<8x128xf32>
    %75 = arith.addf %73, %74 : vector<8x128xf32>
    %c0_26 = arith.constant 0 : index
    %c0_27 = arith.constant 0 : index
    %76 = vector.load %arg3[%c0_26, %c0_27] : memref<128x512xf32, #tpu.memory_space<vmem>>, vector<128x512xf32>
    %cst_28 = arith.constant dense<0.000000e+00> : vector<8x512xf32>
    %77 = tpu.matmul %75, %76, %cst_28 {dimension_numbers = #tpu.dot_dimension_numbers<[1], [0], [0], [1], [0, 0, 1, 1], [], []>} : vector<8x128xf32>, vector<128x512xf32>, vector<8x512xf32> -> vector<8x512xf32>
    %78 = vector.extract_strided_slice %77 {offsets = [0, 0], sizes = [8, 128], strides = [1, 1]} : vector<8x512xf32> to vector<8x128xf32>
    %79 = arith.addf %78, %5 : vector<8x128xf32>
    %80 = vector.extract_strided_slice %77 {offsets = [0, 128], sizes = [8, 384], strides = [1, 1]} : vector<8x512xf32> to vector<8x384xf32>
    %c0_29 = arith.constant 0 : index
    %c128 = arith.constant 128 : index
    %81 = vector.load %arg6[%c0_29, %c128] : memref<8x1024xf32, #tpu.memory_space<vmem>>, vector<8x128xf32>
    tpu.vector_store %arg6[%c0_29, %c128], %79 {strides = array<i32>} : memref<8x1024xf32, #tpu.memory_space<vmem>>, vector<8x128xf32>,
    %cst_30 = arith.constant dense<0xFF800000> : vector<8xf32>
    %82 = vector.multi_reduction <maximumf>, %79, %cst_30 [1] : vector<8x128xf32> to vector<8xf32>
    %83 = vector.shape_cast %82 : vector<8xf32> to vector<8x1xf32>
    %84 = vector.broadcast %83 : vector<8x1xf32> to vector<8x128xf32>
    %85 = arith.cmpf oeq, %79, %84 : vector<8x128xf32>
    %c128_i32_31 = arith.constant 128 : i32
    %86 = vector.broadcast %c128_i32_31 : i32 to vector<8x128xi32>
    %87 = arith.select %85, %6, %86 : vector<8x128xi1>, vector<8x128xi32>
    %cst_32 = arith.constant dense<2147483647> : vector<8xi32>
    %88 = vector.multi_reduction <minsi>, %87, %cst_32 [1] : vector<8x128xi32> to vector<8xi32>
    %89 = vector.shape_cast %88 : vector<8xi32> to vector<8x1xi32>
    %90 = vector.broadcast %89 : vector<8x1xi32> to vector<8x128xi32>
    %91 = arith.cmpi eq, %6, %90 : vector<8x128xi32>
    %92 = arith.extui %91 : vector<8x128xi1> to vector<8x128xi32>
    %93 = arith.sitofp %92 : vector<8x128xi32> to vector<8x128xf32>
    %c0_33 = arith.constant 0 : index
    %c0_34 = arith.constant 0 : index
    %94 = vector.load %arg2[%c0_33, %c0_34] : memref<128x384xf32, #tpu.memory_space<vmem>>, vector<128x384xf32>
    %cst_35 = arith.constant dense<0.000000e+00> : vector<8x384xf32>
    %95 = tpu.matmul %93, %94, %cst_35 {dimension_numbers = #tpu.dot_dimension_numbers<[1], [0], [0], [1], [0, 0, 1, 1], [], []>} : vector<8x128xf32>, vector<128x384xf32>, vector<8x384xf32> -> vector<8x384xf32>
    %96 = vector.extract_strided_slice %95 {offsets = [0, 0], sizes = [8, 256], strides = [1, 1]} : vector<8x384xf32> to vector<8x256xf32>
    %97 = vector.extract_strided_slice %80 {offsets = [0, 0], sizes = [8, 256], strides = [1, 1]} : vector<8x384xf32> to vector<8x256xf32>
    %98 = arith.addf %96, %97 : vector<8x256xf32>
    %99 = arith.negf %98 : vector<8x256xf32>
    %100 = math.exp %99 : vector<8x256xf32>
    %cst_36 = arith.constant 1.000000e+00 : f32
    %101 = vector.broadcast %cst_36 : f32 to vector<8x256xf32>
    %102 = arith.addf %101, %100 : vector<8x256xf32>
    %103 = arith.divf %101, %102 : vector<8x256xf32>
    %104 = vector.extract_strided_slice %103 {offsets = [0, 0], sizes = [8, 128], strides = [1, 1]} : vector<8x256xf32> to vector<8x128xf32>
    %105 = vector.extract_strided_slice %103 {offsets = [0, 128], sizes = [8, 128], strides = [1, 1]} : vector<8x256xf32> to vector<8x128xf32>
    %106 = vector.extract_strided_slice %95 {offsets = [0, 256], sizes = [8, 128], strides = [1, 1]} : vector<8x384xf32> to vector<8x128xf32>
    %107 = vector.extract_strided_slice %80 {offsets = [0, 256], sizes = [8, 128], strides = [1, 1]} : vector<8x384xf32> to vector<8x128xf32>
    %108 = arith.addf %107, %2 : vector<8x128xf32>
    %109 = arith.mulf %104, %108 : vector<8x128xf32>
    %110 = arith.addf %106, %109 : vector<8x128xf32>
    %111 = math.tanh %110 : vector<8x128xf32>
    %cst_37 = arith.constant 1.000000e+00 : f32
    %112 = vector.broadcast %cst_37 : f32 to vector<8x128xf32>
    %113 = arith.subf %112, %105 : vector<8x128xf32>
    %114 = arith.mulf %113, %111 : vector<8x128xf32>
    %115 = arith.mulf %105, %75 : vector<8x128xf32>
    %116 = arith.addf %114, %115 : vector<8x128xf32>
    %c0_38 = arith.constant 0 : index
    %c0_39 = arith.constant 0 : index
    %117 = vector.load %arg3[%c0_38, %c0_39] : memref<128x512xf32, #tpu.memory_space<vmem>>, vector<128x512xf32>
    %cst_40 = arith.constant dense<0.000000e+00> : vector<8x512xf32>
    %118 = tpu.matmul %116, %117, %cst_40 {dimension_numbers = #tpu.dot_dimension_numbers<[1], [0], [0], [1], [0, 0, 1, 1], [], []>} : vector<8x128xf32>, vector<128x512xf32>, vector<8x512xf32> -> vector<8x512xf32>
    %119 = vector.extract_strided_slice %118 {offsets = [0, 0], sizes = [8, 128], strides = [1, 1]} : vector<8x512xf32> to vector<8x128xf32>
    %120 = arith.addf %119, %5 : vector<8x128xf32>
    %121 = vector.extract_strided_slice %118 {offsets = [0, 128], sizes = [8, 384], strides = [1, 1]} : vector<8x512xf32> to vector<8x384xf32>
    %c0_41 = arith.constant 0 : index
    %c256 = arith.constant 256 : index
    %122 = vector.load %arg6[%c0_41, %c256] : memref<8x1024xf32, #tpu.memory_space<vmem>>, vector<8x128xf32>
    tpu.vector_store %arg6[%c0_41, %c256], %120 {strides = array<i32>} : memref<8x1024xf32, #tpu.memory_space<vmem>>, vector<8x128xf32>,
    %cst_42 = arith.constant dense<0xFF800000> : vector<8xf32>
    %123 = vector.multi_reduction <maximumf>, %120, %cst_42 [1] : vector<8x128xf32> to vector<8xf32>
    %124 = vector.shape_cast %123 : vector<8xf32> to vector<8x1xf32>
    %125 = vector.broadcast %124 : vector<8x1xf32> to vector<8x128xf32>
    %126 = arith.cmpf oeq, %120, %125 : vector<8x128xf32>
    %c128_i32_43 = arith.constant 128 : i32
    %127 = vector.broadcast %c128_i32_43 : i32 to vector<8x128xi32>
    %128 = arith.select %126, %6, %127 : vector<8x128xi1>, vector<8x128xi32>
    %cst_44 = arith.constant dense<2147483647> : vector<8xi32>
    %129 = vector.multi_reduction <minsi>, %128, %cst_44 [1] : vector<8x128xi32> to vector<8xi32>
    %130 = vector.shape_cast %129 : vector<8xi32> to vector<8x1xi32>
    %131 = vector.broadcast %130 : vector<8x1xi32> to vector<8x128xi32>
    %132 = arith.cmpi eq, %6, %131 : vector<8x128xi32>
    %133 = arith.extui %132 : vector<8x128xi1> to vector<8x128xi32>
    %134 = arith.sitofp %133 : vector<8x128xi32> to vector<8x128xf32>
    %c0_45 = arith.constant 0 : index
    %c0_46 = arith.constant 0 : index
    %135 = vector.load %arg2[%c0_45, %c0_46] : memref<128x384xf32, #tpu.memory_space<vmem>>, vector<128x384xf32>
    %cst_47 = arith.constant dense<0.000000e+00> : vector<8x384xf32>
    %136 = tpu.matmul %134, %135, %cst_47 {dimension_numbers = #tpu.dot_dimension_numbers<[1], [0], [0], [1], [0, 0, 1, 1], [], []>} : vector<8x128xf32>, vector<128x384xf32>, vector<8x384xf32> -> vector<8x384xf32>
    %137 = vector.extract_strided_slice %136 {offsets = [0, 0], sizes = [8, 256], strides = [1, 1]} : vector<8x384xf32> to vector<8x256xf32>
    %138 = vector.extract_strided_slice %121 {offsets = [0, 0], sizes = [8, 256], strides = [1, 1]} : vector<8x384xf32> to vector<8x256xf32>
    %139 = arith.addf %137, %138 : vector<8x256xf32>
    %140 = arith.negf %139 : vector<8x256xf32>
    %141 = math.exp %140 : vector<8x256xf32>
    %cst_48 = arith.constant 1.000000e+00 : f32
    %142 = vector.broadcast %cst_48 : f32 to vector<8x256xf32>
    %143 = arith.addf %142, %141 : vector<8x256xf32>
    %144 = arith.divf %142, %143 : vector<8x256xf32>
    %145 = vector.extract_strided_slice %144 {offsets = [0, 0], sizes = [8, 128], strides = [1, 1]} : vector<8x256xf32> to vector<8x128xf32>
    %146 = vector.extract_strided_slice %144 {offsets = [0, 128], sizes = [8, 128], strides = [1, 1]} : vector<8x256xf32> to vector<8x128xf32>
    %147 = vector.extract_strided_slice %136 {offsets = [0, 256], sizes = [8, 128], strides = [1, 1]} : vector<8x384xf32> to vector<8x128xf32>
    %148 = vector.extract_strided_slice %121 {offsets = [0, 256], sizes = [8, 128], strides = [1, 1]} : vector<8x384xf32> to vector<8x128xf32>
    %149 = arith.addf %148, %2 : vector<8x128xf32>
    %150 = arith.mulf %145, %149 : vector<8x128xf32>
    %151 = arith.addf %147, %150 : vector<8x128xf32>
    %152 = math.tanh %151 : vector<8x128xf32>
    %cst_49 = arith.constant 1.000000e+00 : f32
    %153 = vector.broadcast %cst_49 : f32 to vector<8x128xf32>
    %154 = arith.subf %153, %146 : vector<8x128xf32>
    %155 = arith.mulf %154, %152 : vector<8x128xf32>
    %156 = arith.mulf %146, %116 : vector<8x128xf32>
    %157 = arith.addf %155, %156 : vector<8x128xf32>
    %c0_50 = arith.constant 0 : index
    %c0_51 = arith.constant 0 : index
    %158 = vector.load %arg3[%c0_50, %c0_51] : memref<128x512xf32, #tpu.memory_space<vmem>>, vector<128x512xf32>
    %cst_52 = arith.constant dense<0.000000e+00> : vector<8x512xf32>
    %159 = tpu.matmul %157, %158, %cst_52 {dimension_numbers = #tpu.dot_dimension_numbers<[1], [0], [0], [1], [0, 0, 1, 1], [], []>} : vector<8x128xf32>, vector<128x512xf32>, vector<8x512xf32> -> vector<8x512xf32>
    %160 = vector.extract_strided_slice %159 {offsets = [0, 0], sizes = [8, 128], strides = [1, 1]} : vector<8x512xf32> to vector<8x128xf32>
    %161 = arith.addf %160, %5 : vector<8x128xf32>
    %162 = vector.extract_strided_slice %159 {offsets = [0, 128], sizes = [8, 384], strides = [1, 1]} : vector<8x512xf32> to vector<8x384xf32>
    %c0_53 = arith.constant 0 : index
    %c384 = arith.constant 384 : index
    %163 = vector.load %arg6[%c0_53, %c384] : memref<8x1024xf32, #tpu.memory_space<vmem>>, vector<8x128xf32>
    tpu.vector_store %arg6[%c0_53, %c384], %161 {strides = array<i32>} : memref<8x1024xf32, #tpu.memory_space<vmem>>, vector<8x128xf32>,
    %cst_54 = arith.constant dense<0xFF800000> : vector<8xf32>
    %164 = vector.multi_reduction <maximumf>, %161, %cst_54 [1] : vector<8x128xf32> to vector<8xf32>
    %165 = vector.shape_cast %164 : vector<8xf32> to vector<8x1xf32>
    %166 = vector.broadcast %165 : vector<8x1xf32> to vector<8x128xf32>
    %167 = arith.cmpf oeq, %161, %166 : vector<8x128xf32>
    %c128_i32_55 = arith.constant 128 : i32
    %168 = vector.broadcast %c128_i32_55 : i32 to vector<8x128xi32>
    %169 = arith.select %167, %6, %168 : vector<8x128xi1>, vector<8x128xi32>
    %cst_56 = arith.constant dense<2147483647> : vector<8xi32>
    %170 = vector.multi_reduction <minsi>, %169, %cst_56 [1] : vector<8x128xi32> to vector<8xi32>
    %171 = vector.shape_cast %170 : vector<8xi32> to vector<8x1xi32>
    %172 = vector.broadcast %171 : vector<8x1xi32> to vector<8x128xi32>
    %173 = arith.cmpi eq, %6, %172 : vector<8x128xi32>
    %174 = arith.extui %173 : vector<8x128xi1> to vector<8x128xi32>
    %175 = arith.sitofp %174 : vector<8x128xi32> to vector<8x128xf32>
    %c0_57 = arith.constant 0 : index
    %c0_58 = arith.constant 0 : index
    %176 = vector.load %arg2[%c0_57, %c0_58] : memref<128x384xf32, #tpu.memory_space<vmem>>, vector<128x384xf32>
    %cst_59 = arith.constant dense<0.000000e+00> : vector<8x384xf32>
    %177 = tpu.matmul %175, %176, %cst_59 {dimension_numbers = #tpu.dot_dimension_numbers<[1], [0], [0], [1], [0, 0, 1, 1], [], []>} : vector<8x128xf32>, vector<128x384xf32>, vector<8x384xf32> -> vector<8x384xf32>
    %178 = vector.extract_strided_slice %177 {offsets = [0, 0], sizes = [8, 256], strides = [1, 1]} : vector<8x384xf32> to vector<8x256xf32>
    %179 = vector.extract_strided_slice %162 {offsets = [0, 0], sizes = [8, 256], strides = [1, 1]} : vector<8x384xf32> to vector<8x256xf32>
    %180 = arith.addf %178, %179 : vector<8x256xf32>
    %181 = arith.negf %180 : vector<8x256xf32>
    %182 = math.exp %181 : vector<8x256xf32>
    %cst_60 = arith.constant 1.000000e+00 : f32
    %183 = vector.broadcast %cst_60 : f32 to vector<8x256xf32>
    %184 = arith.addf %183, %182 : vector<8x256xf32>
    %185 = arith.divf %183, %184 : vector<8x256xf32>
    %186 = vector.extract_strided_slice %185 {offsets = [0, 0], sizes = [8, 128], strides = [1, 1]} : vector<8x256xf32> to vector<8x128xf32>
    %187 = vector.extract_strided_slice %185 {offsets = [0, 128], sizes = [8, 128], strides = [1, 1]} : vector<8x256xf32> to vector<8x128xf32>
    %188 = vector.extract_strided_slice %177 {offsets = [0, 256], sizes = [8, 128], strides = [1, 1]} : vector<8x384xf32> to vector<8x128xf32>
    %189 = vector.extract_strided_slice %162 {offsets = [0, 256], sizes = [8, 128], strides = [1, 1]} : vector<8x384xf32> to vector<8x128xf32>
    %190 = arith.addf %189, %2 : vector<8x128xf32>
    %191 = arith.mulf %186, %190 : vector<8x128xf32>
    %192 = arith.addf %188, %191 : vector<8x128xf32>
    %193 = math.tanh %192 : vector<8x128xf32>
    %cst_61 = arith.constant 1.000000e+00 : f32
    %194 = vector.broadcast %cst_61 : f32 to vector<8x128xf32>
    %195 = arith.subf %194, %187 : vector<8x128xf32>
    %196 = arith.mulf %195, %193 : vector<8x128xf32>
    %197 = arith.mulf %187, %157 : vector<8x128xf32>
    %198 = arith.addf %196, %197 : vector<8x128xf32>
    %c0_62 = arith.constant 0 : index
    %c0_63 = arith.constant 0 : index
    %199 = vector.load %arg3[%c0_62, %c0_63] : memref<128x512xf32, #tpu.memory_space<vmem>>, vector<128x512xf32>
    %cst_64 = arith.constant dense<0.000000e+00> : vector<8x512xf32>
    %200 = tpu.matmul %198, %199, %cst_64 {dimension_numbers = #tpu.dot_dimension_numbers<[1], [0], [0], [1], [0, 0, 1, 1], [], []>} : vector<8x128xf32>, vector<128x512xf32>, vector<8x512xf32> -> vector<8x512xf32>
    %201 = vector.extract_strided_slice %200 {offsets = [0, 0], sizes = [8, 128], strides = [1, 1]} : vector<8x512xf32> to vector<8x128xf32>
    %202 = arith.addf %201, %5 : vector<8x128xf32>
    %203 = vector.extract_strided_slice %200 {offsets = [0, 128], sizes = [8, 384], strides = [1, 1]} : vector<8x512xf32> to vector<8x384xf32>
    %c0_65 = arith.constant 0 : index
    %c512 = arith.constant 512 : index
    %204 = vector.load %arg6[%c0_65, %c512] : memref<8x1024xf32, #tpu.memory_space<vmem>>, vector<8x128xf32>
    tpu.vector_store %arg6[%c0_65, %c512], %202 {strides = array<i32>} : memref<8x1024xf32, #tpu.memory_space<vmem>>, vector<8x128xf32>,
    %cst_66 = arith.constant dense<0xFF800000> : vector<8xf32>
    %205 = vector.multi_reduction <maximumf>, %202, %cst_66 [1] : vector<8x128xf32> to vector<8xf32>
    %206 = vector.shape_cast %205 : vector<8xf32> to vector<8x1xf32>
    %207 = vector.broadcast %206 : vector<8x1xf32> to vector<8x128xf32>
    %208 = arith.cmpf oeq, %202, %207 : vector<8x128xf32>
    %c128_i32_67 = arith.constant 128 : i32
    %209 = vector.broadcast %c128_i32_67 : i32 to vector<8x128xi32>
    %210 = arith.select %208, %6, %209 : vector<8x128xi1>, vector<8x128xi32>
    %cst_68 = arith.constant dense<2147483647> : vector<8xi32>
    %211 = vector.multi_reduction <minsi>, %210, %cst_68 [1] : vector<8x128xi32> to vector<8xi32>
    %212 = vector.shape_cast %211 : vector<8xi32> to vector<8x1xi32>
    %213 = vector.broadcast %212 : vector<8x1xi32> to vector<8x128xi32>
    %214 = arith.cmpi eq, %6, %213 : vector<8x128xi32>
    %215 = arith.extui %214 : vector<8x128xi1> to vector<8x128xi32>
    %216 = arith.sitofp %215 : vector<8x128xi32> to vector<8x128xf32>
    %c0_69 = arith.constant 0 : index
    %c0_70 = arith.constant 0 : index
    %217 = vector.load %arg2[%c0_69, %c0_70] : memref<128x384xf32, #tpu.memory_space<vmem>>, vector<128x384xf32>
    %cst_71 = arith.constant dense<0.000000e+00> : vector<8x384xf32>
    %218 = tpu.matmul %216, %217, %cst_71 {dimension_numbers = #tpu.dot_dimension_numbers<[1], [0], [0], [1], [0, 0, 1, 1], [], []>} : vector<8x128xf32>, vector<128x384xf32>, vector<8x384xf32> -> vector<8x384xf32>
    %219 = vector.extract_strided_slice %218 {offsets = [0, 0], sizes = [8, 256], strides = [1, 1]} : vector<8x384xf32> to vector<8x256xf32>
    %220 = vector.extract_strided_slice %203 {offsets = [0, 0], sizes = [8, 256], strides = [1, 1]} : vector<8x384xf32> to vector<8x256xf32>
    %221 = arith.addf %219, %220 : vector<8x256xf32>
    %222 = arith.negf %221 : vector<8x256xf32>
    %223 = math.exp %222 : vector<8x256xf32>
    %cst_72 = arith.constant 1.000000e+00 : f32
    %224 = vector.broadcast %cst_72 : f32 to vector<8x256xf32>
    %225 = arith.addf %224, %223 : vector<8x256xf32>
    %226 = arith.divf %224, %225 : vector<8x256xf32>
    %227 = vector.extract_strided_slice %226 {offsets = [0, 0], sizes = [8, 128], strides = [1, 1]} : vector<8x256xf32> to vector<8x128xf32>
    %228 = vector.extract_strided_slice %226 {offsets = [0, 128], sizes = [8, 128], strides = [1, 1]} : vector<8x256xf32> to vector<8x128xf32>
    %229 = vector.extract_strided_slice %218 {offsets = [0, 256], sizes = [8, 128], strides = [1, 1]} : vector<8x384xf32> to vector<8x128xf32>
    %230 = vector.extract_strided_slice %203 {offsets = [0, 256], sizes = [8, 128], strides = [1, 1]} : vector<8x384xf32> to vector<8x128xf32>
    %231 = arith.addf %230, %2 : vector<8x128xf32>
    %232 = arith.mulf %227, %231 : vector<8x128xf32>
    %233 = arith.addf %229, %232 : vector<8x128xf32>
    %234 = math.tanh %233 : vector<8x128xf32>
    %cst_73 = arith.constant 1.000000e+00 : f32
    %235 = vector.broadcast %cst_73 : f32 to vector<8x128xf32>
    %236 = arith.subf %235, %228 : vector<8x128xf32>
    %237 = arith.mulf %236, %234 : vector<8x128xf32>
    %238 = arith.mulf %228, %198 : vector<8x128xf32>
    %239 = arith.addf %237, %238 : vector<8x128xf32>
    %c0_74 = arith.constant 0 : index
    %c0_75 = arith.constant 0 : index
    %240 = vector.load %arg3[%c0_74, %c0_75] : memref<128x512xf32, #tpu.memory_space<vmem>>, vector<128x512xf32>
    %cst_76 = arith.constant dense<0.000000e+00> : vector<8x512xf32>
    %241 = tpu.matmul %239, %240, %cst_76 {dimension_numbers = #tpu.dot_dimension_numbers<[1], [0], [0], [1], [0, 0, 1, 1], [], []>} : vector<8x128xf32>, vector<128x512xf32>, vector<8x512xf32> -> vector<8x512xf32>
    %242 = vector.extract_strided_slice %241 {offsets = [0, 0], sizes = [8, 128], strides = [1, 1]} : vector<8x512xf32> to vector<8x128xf32>
    %243 = arith.addf %242, %5 : vector<8x128xf32>
    %244 = vector.extract_strided_slice %241 {offsets = [0, 128], sizes = [8, 384], strides = [1, 1]} : vector<8x512xf32> to vector<8x384xf32>
    %c0_77 = arith.constant 0 : index
    %c640 = arith.constant 640 : index
    %245 = vector.load %arg6[%c0_77, %c640] : memref<8x1024xf32, #tpu.memory_space<vmem>>, vector<8x128xf32>
    tpu.vector_store %arg6[%c0_77, %c640], %243 {strides = array<i32>} : memref<8x1024xf32, #tpu.memory_space<vmem>>, vector<8x128xf32>,
    %cst_78 = arith.constant dense<0xFF800000> : vector<8xf32>
    %246 = vector.multi_reduction <maximumf>, %243, %cst_78 [1] : vector<8x128xf32> to vector<8xf32>
    %247 = vector.shape_cast %246 : vector<8xf32> to vector<8x1xf32>
    %248 = vector.broadcast %247 : vector<8x1xf32> to vector<8x128xf32>
    %249 = arith.cmpf oeq, %243, %248 : vector<8x128xf32>
    %c128_i32_79 = arith.constant 128 : i32
    %250 = vector.broadcast %c128_i32_79 : i32 to vector<8x128xi32>
    %251 = arith.select %249, %6, %250 : vector<8x128xi1>, vector<8x128xi32>
    %cst_80 = arith.constant dense<2147483647> : vector<8xi32>
    %252 = vector.multi_reduction <minsi>, %251, %cst_80 [1] : vector<8x128xi32> to vector<8xi32>
    %253 = vector.shape_cast %252 : vector<8xi32> to vector<8x1xi32>
    %254 = vector.broadcast %253 : vector<8x1xi32> to vector<8x128xi32>
    %255 = arith.cmpi eq, %6, %254 : vector<8x128xi32>
    %256 = arith.extui %255 : vector<8x128xi1> to vector<8x128xi32>
    %257 = arith.sitofp %256 : vector<8x128xi32> to vector<8x128xf32>
    %c0_81 = arith.constant 0 : index
    %c0_82 = arith.constant 0 : index
    %258 = vector.load %arg2[%c0_81, %c0_82] : memref<128x384xf32, #tpu.memory_space<vmem>>, vector<128x384xf32>
    %cst_83 = arith.constant dense<0.000000e+00> : vector<8x384xf32>
    %259 = tpu.matmul %257, %258, %cst_83 {dimension_numbers = #tpu.dot_dimension_numbers<[1], [0], [0], [1], [0, 0, 1, 1], [], []>} : vector<8x128xf32>, vector<128x384xf32>, vector<8x384xf32> -> vector<8x384xf32>
    %260 = vector.extract_strided_slice %259 {offsets = [0, 0], sizes = [8, 256], strides = [1, 1]} : vector<8x384xf32> to vector<8x256xf32>
    %261 = vector.extract_strided_slice %244 {offsets = [0, 0], sizes = [8, 256], strides = [1, 1]} : vector<8x384xf32> to vector<8x256xf32>
    %262 = arith.addf %260, %261 : vector<8x256xf32>
    %263 = arith.negf %262 : vector<8x256xf32>
    %264 = math.exp %263 : vector<8x256xf32>
    %cst_84 = arith.constant 1.000000e+00 : f32
    %265 = vector.broadcast %cst_84 : f32 to vector<8x256xf32>
    %266 = arith.addf %265, %264 : vector<8x256xf32>
    %267 = arith.divf %265, %266 : vector<8x256xf32>
    %268 = vector.extract_strided_slice %267 {offsets = [0, 0], sizes = [8, 128], strides = [1, 1]} : vector<8x256xf32> to vector<8x128xf32>
    %269 = vector.extract_strided_slice %267 {offsets = [0, 128], sizes = [8, 128], strides = [1, 1]} : vector<8x256xf32> to vector<8x128xf32>
    %270 = vector.extract_strided_slice %259 {offsets = [0, 256], sizes = [8, 128], strides = [1, 1]} : vector<8x384xf32> to vector<8x128xf32>
    %271 = vector.extract_strided_slice %244 {offsets = [0, 256], sizes = [8, 128], strides = [1, 1]} : vector<8x384xf32> to vector<8x128xf32>
    %272 = arith.addf %271, %2 : vector<8x128xf32>
    %273 = arith.mulf %268, %272 : vector<8x128xf32>
    %274 = arith.addf %270, %273 : vector<8x128xf32>
    %275 = math.tanh %274 : vector<8x128xf32>
    %cst_85 = arith.constant 1.000000e+00 : f32
    %276 = vector.broadcast %cst_85 : f32 to vector<8x128xf32>
    %277 = arith.subf %276, %269 : vector<8x128xf32>
    %278 = arith.mulf %277, %275 : vector<8x128xf32>
    %279 = arith.mulf %269, %239 : vector<8x128xf32>
    %280 = arith.addf %278, %279 : vector<8x128xf32>
    %c0_86 = arith.constant 0 : index
    %c0_87 = arith.constant 0 : index
    %281 = vector.load %arg3[%c0_86, %c0_87] : memref<128x512xf32, #tpu.memory_space<vmem>>, vector<128x512xf32>
    %cst_88 = arith.constant dense<0.000000e+00> : vector<8x512xf32>
    %282 = tpu.matmul %280, %281, %cst_88 {dimension_numbers = #tpu.dot_dimension_numbers<[1], [0], [0], [1], [0, 0, 1, 1], [], []>} : vector<8x128xf32>, vector<128x512xf32>, vector<8x512xf32> -> vector<8x512xf32>
    %283 = vector.extract_strided_slice %282 {offsets = [0, 0], sizes = [8, 128], strides = [1, 1]} : vector<8x512xf32> to vector<8x128xf32>
    %284 = arith.addf %283, %5 : vector<8x128xf32>
    %285 = vector.extract_strided_slice %282 {offsets = [0, 128], sizes = [8, 384], strides = [1, 1]} : vector<8x512xf32> to vector<8x384xf32>
    %c0_89 = arith.constant 0 : index
    %c768 = arith.constant 768 : index
    %286 = vector.load %arg6[%c0_89, %c768] : memref<8x1024xf32, #tpu.memory_space<vmem>>, vector<8x128xf32>
    tpu.vector_store %arg6[%c0_89, %c768], %284 {strides = array<i32>} : memref<8x1024xf32, #tpu.memory_space<vmem>>, vector<8x128xf32>,
    %cst_90 = arith.constant dense<0xFF800000> : vector<8xf32>
    %287 = vector.multi_reduction <maximumf>, %284, %cst_90 [1] : vector<8x128xf32> to vector<8xf32>
    %288 = vector.shape_cast %287 : vector<8xf32> to vector<8x1xf32>
    %289 = vector.broadcast %288 : vector<8x1xf32> to vector<8x128xf32>
    %290 = arith.cmpf oeq, %284, %289 : vector<8x128xf32>
    %c128_i32_91 = arith.constant 128 : i32
    %291 = vector.broadcast %c128_i32_91 : i32 to vector<8x128xi32>
    %292 = arith.select %290, %6, %291 : vector<8x128xi1>, vector<8x128xi32>
    %cst_92 = arith.constant dense<2147483647> : vector<8xi32>
    %293 = vector.multi_reduction <minsi>, %292, %cst_92 [1] : vector<8x128xi32> to vector<8xi32>
    %294 = vector.shape_cast %293 : vector<8xi32> to vector<8x1xi32>
    %295 = vector.broadcast %294 : vector<8x1xi32> to vector<8x128xi32>
    %296 = arith.cmpi eq, %6, %295 : vector<8x128xi32>
    %297 = arith.extui %296 : vector<8x128xi1> to vector<8x128xi32>
    %298 = arith.sitofp %297 : vector<8x128xi32> to vector<8x128xf32>
    %c0_93 = arith.constant 0 : index
    %c0_94 = arith.constant 0 : index
    %299 = vector.load %arg2[%c0_93, %c0_94] : memref<128x384xf32, #tpu.memory_space<vmem>>, vector<128x384xf32>
    %cst_95 = arith.constant dense<0.000000e+00> : vector<8x384xf32>
    %300 = tpu.matmul %298, %299, %cst_95 {dimension_numbers = #tpu.dot_dimension_numbers<[1], [0], [0], [1], [0, 0, 1, 1], [], []>} : vector<8x128xf32>, vector<128x384xf32>, vector<8x384xf32> -> vector<8x384xf32>
    %301 = vector.extract_strided_slice %300 {offsets = [0, 0], sizes = [8, 256], strides = [1, 1]} : vector<8x384xf32> to vector<8x256xf32>
    %302 = vector.extract_strided_slice %285 {offsets = [0, 0], sizes = [8, 256], strides = [1, 1]} : vector<8x384xf32> to vector<8x256xf32>
    %303 = arith.addf %301, %302 : vector<8x256xf32>
    %304 = arith.negf %303 : vector<8x256xf32>
    %305 = math.exp %304 : vector<8x256xf32>
    %cst_96 = arith.constant 1.000000e+00 : f32
    %306 = vector.broadcast %cst_96 : f32 to vector<8x256xf32>
    %307 = arith.addf %306, %305 : vector<8x256xf32>
    %308 = arith.divf %306, %307 : vector<8x256xf32>
    %309 = vector.extract_strided_slice %308 {offsets = [0, 0], sizes = [8, 128], strides = [1, 1]} : vector<8x256xf32> to vector<8x128xf32>
    %310 = vector.extract_strided_slice %308 {offsets = [0, 128], sizes = [8, 128], strides = [1, 1]} : vector<8x256xf32> to vector<8x128xf32>
    %311 = vector.extract_strided_slice %300 {offsets = [0, 256], sizes = [8, 128], strides = [1, 1]} : vector<8x384xf32> to vector<8x128xf32>
    %312 = vector.extract_strided_slice %285 {offsets = [0, 256], sizes = [8, 128], strides = [1, 1]} : vector<8x384xf32> to vector<8x128xf32>
    %313 = arith.addf %312, %2 : vector<8x128xf32>
    %314 = arith.mulf %309, %313 : vector<8x128xf32>
    %315 = arith.addf %311, %314 : vector<8x128xf32>
    %316 = math.tanh %315 : vector<8x128xf32>
    %cst_97 = arith.constant 1.000000e+00 : f32
    %317 = vector.broadcast %cst_97 : f32 to vector<8x128xf32>
    %318 = arith.subf %317, %310 : vector<8x128xf32>
    %319 = arith.mulf %318, %316 : vector<8x128xf32>
    %320 = arith.mulf %310, %280 : vector<8x128xf32>
    %321 = arith.addf %319, %320 : vector<8x128xf32>
    %c0_98 = arith.constant 0 : index
    %c0_99 = arith.constant 0 : index
    %322 = vector.load %arg3[%c0_98, %c0_99] : memref<128x512xf32, #tpu.memory_space<vmem>>, vector<128x128xf32>
    %cst_100 = arith.constant dense<0.000000e+00> : vector<8x128xf32>
    %323 = tpu.matmul %321, %322, %cst_100 {dimension_numbers = #tpu.dot_dimension_numbers<[1], [0], [0], [1], [0, 0, 1, 1], [], []>} : vector<8x128xf32>, vector<128x128xf32>, vector<8x128xf32> -> vector<8x128xf32>
    %324 = arith.addf %323, %5 : vector<8x128xf32>
    %c0_101 = arith.constant 0 : index
    %c896 = arith.constant 896 : index
    %325 = vector.load %arg6[%c0_101, %c896] : memref<8x1024xf32, #tpu.memory_space<vmem>>, vector<8x128xf32>
    tpu.vector_store %arg6[%c0_101, %c896], %324 {strides = array<i32>} : memref<8x1024xf32, #tpu.memory_space<vmem>>, vector<8x128xf32>,
    %326 = vector.extract_strided_slice %321 {offsets = [0, 0], sizes = [8, 32], strides = [1, 1]} : vector<8x128xf32> to vector<8x32xf32>
    %c0_102 = arith.constant 0 : index
    %c0_103 = arith.constant 0 : index
    %327 = vector.load %arg7[%c0_102, %c0_103] : memref<8x32xf32, #tpu.memory_space<vmem>>, vector<8x32xf32>
    tpu.vector_store %arg7[%c0_102, %c0_103], %326 {strides = array<i32>} : memref<8x32xf32, #tpu.memory_space<vmem>>, vector<8x32xf32>,
    return
  }
}

</mosaic_0001>

<llo_original>
// kernel: tpu_custom_call.1
$region0: #{tpu_custom_call.1}
  #allocation0 [shape = 'u32[]', space=smem, size = 0x4, offset = 0x4, fixed_abs, tag = 'smem constant byte address 0x4 - core index']
  #allocation1 [shape = 'u32[144,128]{1,0:T(1,128)}', space=vmem, size = 0x12000, scoped, tag = 'internal scratch']
  %s0 = inlined_call_operand.hbm [shape: f32[8,128], index: 0, kind: input, shape index: {}]
  %s1 = inlined_call_operand.hbm [shape: f32[8,128], index: 1, kind: input, shape index: {}]
  %s2 = inlined_call_operand.hbm [shape: f32[128,384], index: 2, kind: input, shape index: {}]
  %s3 = inlined_call_operand.hbm [shape: f32[128,512], index: 3, kind: input, shape index: {}]
  %s4 = inlined_call_operand.vmem [shape: f32[1,128], index: 4, kind: input, shape index: {}]
  %s5 = inlined_call_operand.vmem [shape: f32[1,128], index: 5, kind: input, shape index: {}]
  %s6 = inlined_call_operand.hbm [shape: f32[8,1024], index: 6, kind: output, shape index: {0}]
  %s7 = inlined_call_operand.hbm [shape: f32[8,32], index: 7, kind: output, shape index: {1}]
  %8 = xla_tuple %s6, %s7
  %s9 = sld [smem:[#allocation0]]
  $region58: #{tpu_custom_call.1} parent=0
    _
  %s11 = ssub.s32 1, %s9
  %s12 = scalar_select 0, %s11, %s9
  $region1: #{tpu_custom_call.1} parent=0
    #allocation2 [shape = 'u8[4096]{0}', space=vmem, size = 0x1000, scoped, tag = 'input window, operand 0, single buffered']
    #allocation3 [shape = 's32[1]{0}', space=sflag, size = 0x4, scoped, tag = 'scoped memory for tpu_custom_call.1']
    #allocation4 [shape = 's32[1]{0}', space=sflag, size = 0x4, scoped, tag = 'scoped memory for tpu_custom_call.1']
    #allocation5 [shape = 'u8[4096]{0}', space=vmem, size = 0x1000, scoped, tag = 'input window, operand 1, single buffered']
    #allocation6 [shape = 's32[1]{0}', space=sflag, size = 0x4, scoped, tag = 'scoped memory for tpu_custom_call.1']
    #allocation7 [shape = 'u8[196608]{0}', space=vmem, size = 0x30000, scoped, tag = 'input window, operand 2, single buffered']
    #allocation8 [shape = 'u8[262144]{0}', space=vmem, size = 0x40000, scoped, tag = 'input window, operand 3, single buffered']
    #allocation9 [shape = 's32[1]{0}', space=sflag, size = 0x4, scoped, tag = 'scoped memory for tpu_custom_call.1']
    #allocation10 [shape = 'u8[32768]{0}', space=vmem, size = 0x8000, scoped, tag = 'output window, operand 0, single buffered']
    #allocation11 [shape = 'u8[4096]{0}', space=vmem, size = 0x1000, scoped, tag = 'output window, operand 1, single buffered']
    #allocation12 [shape = 's32[1]{0}', space=sflag, size = 0x4, scoped, tag = 'scoped memory for tpu_custom_call.1']
    %13 = vsyncpa [#allocation3], 0
    %14 = vsyncpa [#allocation6], 0
    %15 = vsyncpa [#allocation9], 0
    %16 = vsyncpa [#allocation4], 0
    %17 = vsyncpa [#allocation12], 0
    // Predicated region
    $region2: #{tpu_custom_call.1} parent=1 // pred_check
      _
    $region3: #{tpu_custom_call.1} parent=1 // pred_check_branch
      %19 = sbr.rel (0) target = $region5
    $region4: #{tpu_custom_call.1} parent=1 // pred_region
      %s21 = ssub.s32 128, 128
      %22 = vsyncadd [#allocation3], %s21
      %s24 = sshll.u32 [#allocation2], 4
      %s25 = int_to_ptr.vmem [resolvable:$true] %s24
      %27 = dma.hbm_to_vmem [thread:$0]  %s0, 128, %s25, [#allocation3]
    $region5: #{tpu_custom_call.1} parent=1 // pred_fallthru
      _
    // Predicated region
    $region6: #{tpu_custom_call.1} parent=1 // pred_check
      _
    $region7: #{tpu_custom_call.1} parent=1 // pred_check_branch
      %29 = sbr.rel (0) target = $region9
    $region8: #{tpu_custom_call.1} parent=1 // pred_region
      %s31 = ssub.s32 128, 128
      %32 = vsyncadd [#allocation6], %s31
      %s34 = sshll.u32 [#allocation5], 4
      %s35 = int_to_ptr.vmem [resolvable:$true] %s34
      %37 = dma.hbm_to_vmem [thread:$0]  %s1, 128, %s35, [#allocation6]
    $region9: #{tpu_custom_call.1} parent=1 // pred_fallthru
      _
    // Predicated region
    $region10: #{tpu_custom_call.1} parent=1 // pred_check
      _
    $region11: #{tpu_custom_call.1} parent=1 // pred_check_branch
      %39 = sbr.rel (0) target = $region13
    $region12: #{tpu_custom_call.1} parent=1 // pred_region
      %s41 = ssub.s32 6144, 6144
      %42 = vsyncadd [#allocation6], %s41
      %s43 = sshll.u32 [#allocation7], 4
      %s44 = int_to_ptr.vmem [resolvable:$true] %s43
      %49 = dma.hbm_to_vmem [thread:$0]  %s2, 6144, %s44, [#allocation6], 384, 384, 24
    $region13: #{tpu_custom_call.1} parent=1 // pred_fallthru
      _
    // Predicated region
    $region14: #{tpu_custom_call.1} parent=1 // pred_check
      _
    $region15: #{tpu_custom_call.1} parent=1 // pred_check_branch
      %51 = sbr.rel (0) target = $region17
    $region16: #{tpu_custom_call.1} parent=1 // pred_region
      %s53 = ssub.s32 8192, 8192
      %54 = vsyncadd [#allocation9], %s53
      %s55 = sshll.u32 [#allocation8], 4
      %s56 = int_to_ptr.vmem [resolvable:$true] %s55
      %61 = dma.hbm_to_vmem [thread:$0]  %s3, 8192, %s56, [#allocation9], 512, 512, 32
    $region17: #{tpu_custom_call.1} parent=1 // pred_fallthru
      _
    // Predicated region
    $region18: #{tpu_custom_call.1} parent=1 // pred_check
      _
    $region19: #{tpu_custom_call.1} parent=1 // pred_check_branch
      %63 = sbr.rel (0) target = $region21
    $region20: #{tpu_custom_call.1} parent=1 // pred_region
      _
    $region21: #{tpu_custom_call.1} parent=1 // pred_fallthru
      _
    // Predicated region
    $region22: #{tpu_custom_call.1} parent=1 // pred_check
      _
    $region23: #{tpu_custom_call.1} parent=1 // pred_check_branch
      %65 = sbr.rel (0) target = $region25
    $region24: #{tpu_custom_call.1} parent=1 // pred_region
      _
    $region25: #{tpu_custom_call.1} parent=1 // pred_fallthru
      _
    // Predicated region
    $region26: #{tpu_custom_call.1} parent=1 // pred_check
      _
    $region27: #{tpu_custom_call.1} parent=1 // pred_check_branch
      %67 = sbr.rel (0) target = $region29
    $region28: #{tpu_custom_call.1} parent=1 // pred_region
      %68 = dma.done [#allocation3], 128
    $region29: #{tpu_custom_call.1} parent=1 // pred_fallthru
      _
    // Predicated region
    $region30: #{tpu_custom_call.1} parent=1 // pred_check
      _
    $region31: #{tpu_custom_call.1} parent=1 // pred_check_branch
      %70 = sbr.rel (0) target = $region33
    $region32: #{tpu_custom_call.1} parent=1 // pred_region
      %71 = dma.done [#allocation6], 128
    $region33: #{tpu_custom_call.1} parent=1 // pred_fallthru
      _
    // Predicated region
    $region34: #{tpu_custom_call.1} parent=1 // pred_check
      _
    $region35: #{tpu_custom_call.1} parent=1 // pred_check_branch
      %73 = sbr.rel (0) target = $region37
    $region36: #{tpu_custom_call.1} parent=1 // pred_region
      %74 = dma.done [#allocation6], 6144
    $region37: #{tpu_custom_call.1} parent=1 // pred_fallthru
      _
    // Predicated region
    $region38: #{tpu_custom_call.1} parent=1 // pred_check
      _
    $region39: #{tpu_custom_call.1} parent=1 // pred_check_branch
      %76 = sbr.rel (0) target = $region41
    $region40: #{tpu_custom_call.1} parent=1 // pred_region
      %77 = dma.done [#allocation9], 8192
    $region41: #{tpu_custom_call.1} parent=1 // pred_fallthru
      _
    %v78 = vld [vmem:[%s4] sm:$0x1]
    %v80 = vlaneseq
    %v81 = vshrl.u32 %v80, 7
    %v82 = vsub.s32 0, %v81
    %v83 = vrot.slane %v78, %v82
    %v85 = vld [vmem:[%s5] sm:$0x1]
    %v87 = vlaneseq
    %v88 = vshrl.u32 %v87, 7
    %v89 = vsub.s32 0, %v88
    %v90 = vrot.slane %v85, %v89
    %v92 = vlaneseq
    %v93 = vand.u32 %v92, 127
    %v94 = vld [vmem:[#allocation5] sm:$0xff]
    %v95 = vld [vmem:[#allocation2] sm:$0xff]
    %v96 = vld [vmem:[#allocation8] sm:$0xff]
    %v97 = vld [vmem:[#allocation8 + $0x8] sm:$0xff]
    %v98 = vld [vmem:[#allocation8 + $0x10] sm:$0xff]
    %v99 = vld [vmem:[#allocation8 + $0x18] sm:$0xff]
    %v100 = vld [vmem:[#allocation8 + $0x20] sm:$0xff]
    %v101 = vld [vmem:[#allocation8 + $0x28] sm:$0xff]
    %v102 = vld [vmem:[#allocation8 + $0x30] sm:$0xff]
    %v103 = vld [vmem:[#allocation8 + $0x38] sm:$0xff]
    %v104 = vld [vmem:[#allocation8 + $0x40] sm:$0xff]
    %v105 = vld [vmem:[#allocation8 + $0x48] sm:$0xff]
    %v106 = vld [vmem:[#allocation8 + $0x50] sm:$0xff]
    %v107 = vld [vmem:[#allocation8 + $0x58] sm:$0xff]
    %v108 = vld [vmem:[#allocation8 + $0x60] sm:$0xff]
    %v109 = vld [vmem:[#allocation8 + $0x68] sm:$0xff]
    %v110 = vld [vmem:[#allocation8 + $0x70] sm:$0xff]
    %v111 = vld [vmem:[#allocation8 + $0x78] sm:$0xff]
    %v112 = vld [vmem:[#allocation8 + $0x80] sm:$0xff]
    %v113 = vld [vmem:[#allocation8 + $0x88] sm:$0xff]
    %v114 = vld [vmem:[#allocation8 + $0x90] sm:$0xff]
    %v115 = vld [vmem:[#allocation8 + $0x98] sm:$0xff]
    %v116 = vld [vmem:[#allocation8 + $0xa0] sm:$0xff]
    %v117 = vld [vmem:[#allocation8 + $0xa8] sm:$0xff]
    %v118 = vld [vmem:[#allocation8 + $0xb0] sm:$0xff]
    %v119 = vld [vmem:[#allocation8 + $0xb8] sm:$0xff]
    %v120 = vld [vmem:[#allocation8 + $0xc0] sm:$0xff]
    %v121 = vld [vmem:[#allocation8 + $0xc8] sm:$0xff]
    %v122 = vld [vmem:[#allocation8 + $0xd0] sm:$0xff]
    %v123 = vld [vmem:[#allocation8 + $0xd8] sm:$0xff]
    %v124 = vld [vmem:[#allocation8 + $0xe0] sm:$0xff]
    %v125 = vld [vmem:[#allocation8 + $0xe8] sm:$0xff]
    %v126 = vld [vmem:[#allocation8 + $0xf0] sm:$0xff]
    %v127 = vld [vmem:[#allocation8 + $0xf8] sm:$0xff]
    %v128 = vld [vmem:[#allocation8 + $0x100] sm:$0xff]
    %v129 = vld [vmem:[#allocation8 + $0x108] sm:$0xff]
    %v130 = vld [vmem:[#allocation8 + $0x110] sm:$0xff]
    %v131 = vld [vmem:[#allocation8 + $0x118] sm:$0xff]
    %v132 = vld [vmem:[#allocation8 + $0x120] sm:$0xff]
    %v133 = vld [vmem:[#allocation8 + $0x128] sm:$0xff]
    %v134 = vld [vmem:[#allocation8 + $0x130] sm:$0xff]
    %v135 = vld [vmem:[#allocation8 + $0x138] sm:$0xff]
    %v136 = vld [vmem:[#allocation8 + $0x140] sm:$0xff]
    %v137 = vld [vmem:[#allocation8 + $0x148] sm:$0xff]
    %v138 = vld [vmem:[#allocation8 + $0x150] sm:$0xff]
    %v139 = vld [vmem:[#allocation8 + $0x158] sm:$0xff]
    %v140 = vld [vmem:[#allocation8 + $0x160] sm:$0xff]
    %v141 = vld [vmem:[#allocation8 + $0x168] sm:$0xff]
    %v142 = vld [vmem:[#allocation8 + $0x170] sm:$0xff]
    %v143 = vld [vmem:[#allocation8 + $0x178] sm:$0xff]
    %v144 = vld [vmem:[#allocation8 + $0x180] sm:$0xff]
    %v145 = vld [vmem:[#allocation8 + $0x188] sm:$0xff]
    %v146 = vld [vmem:[#allocation8 + $0x190] sm:$0xff]
    %v147 = vld [vmem:[#allocation8 + $0x198] sm:$0xff]
    %v148 = vld [vmem:[#allocation8 + $0x1a0] sm:$0xff]
    %v149 = vld [vmem:[#allocation8 + $0x1a8] sm:$0xff]
    %v150 = vld [vmem:[#allocation8 + $0x1b0] sm:$0xff]
    %v151 = vld [vmem:[#allocation8 + $0x1b8] sm:$0xff]
    %v152 = vld [vmem:[#allocation8 + $0x1c0] sm:$0xff]
    %v153 = vld [vmem:[#allocation8 + $0x1c8] sm:$0xff]
    %v154 = vld [vmem:[#allocation8 + $0x1d0] sm:$0xff]
    %v155 = vld [vmem:[#allocation8 + $0x1d8] sm:$0xff]
    %v156 = vld [vmem:[#allocation8 + $0x1e0] sm:$0xff]
    %v157 = vld [vmem:[#allocation8 + $0x1e8] sm:$0xff]
    %v158 = vld [vmem:[#allocation8 + $0x1f0] sm:$0xff]
    %v159 = vld [vmem:[#allocation8 + $0x1f8] sm:$0xff]
    %160 = vmatprep.subr.mxu0 %v157
    %161 = vmatpush1.msra.mxu0 %v156
    %162 = vmatprep.subr.mxu0 %v153
    %163 = vmatpush1.msra.mxu0 %v152
    %164 = vmatprep.subr.mxu0 %v149
    %165 = vmatpush1.msra.mxu0 %v148
    %166 = vmatprep.subr.mxu0 %v145
    %167 = vmatpush1.msra.mxu0 %v144
    %168 = vmatprep.subr.mxu0 %v141
    %169 = vmatpush1.msra.mxu0 %v140
    %170 = vmatprep.subr.mxu0 %v137
    %171 = vmatpush1.msra.mxu0 %v136
    %172 = vmatprep.subr.mxu0 %v133
    %173 = vmatpush1.msra.mxu0 %v132
    %174 = vmatprep.subr.mxu0 %v129
    %175 = vmatpush1.msra.mxu0 %v128
    %176 = vmatprep.subr.mxu0 %v125
    %177 = vmatpush1.msra.mxu0 %v124
    %178 = vmatprep.subr.mxu0 %v121
    %179 = vmatpush1.msra.mxu0 %v120
    %180 = vmatprep.subr.mxu0 %v117
    %181 = vmatpush1.msra.mxu0 %v116
    %182 = vmatprep.subr.mxu0 %v113
    %183 = vmatpush1.msra.mxu0 %v112
    %184 = vmatprep.subr.mxu0 %v109
    %185 = vmatpush1.msra.mxu0 %v108
    %186 = vmatprep.subr.mxu0 %v105
    %187 = vmatpush1.msra.mxu0 %v104
    %188 = vmatprep.subr.mxu0 %v101
    %189 = vmatpush1.msra.mxu0 %v100
    %190 = vmatprep.subr.mxu0 %v97
    %191 = vmatpush1.msra.mxu0 %v96
    %192 = vmatprep.subr.mxu0 0.0
    %193 = vmatpush2.msra.mxu0 0.0
    %194 = vmatprep.subr.mxu0 0.0
    %195 = vmatpush2.msra.mxu0 0.0
    %196 = vmatprep.subr.mxu0 0.0
    %197 = vmatpush2.msra.mxu0 0.0
    %198 = vmatprep.subr.mxu0 0.0
    %199 = vmatpush2.msra.mxu0 0.0
    %200 = vmatprep.subr.mxu0 0.0
    %201 = vmatpush2.msra.mxu0 0.0
    %202 = vmatprep.subr.mxu0 0.0
    %203 = vmatpush2.msra.mxu0 0.0
    %204 = vmatprep.subr.mxu0 0.0
    %205 = vmatpush2.msra.mxu0 0.0
    %206 = vmatprep.subr.mxu0 0.0
    %207 = vmatpush2.msra.mxu0 0.0
    %208 = vmatprep.subr.mxu0 0.0
    %209 = vmatpush2.msra.mxu0 0.0
    %210 = vmatprep.subr.mxu0 0.0
    %211 = vmatpush2.msra.mxu0 0.0
    %212 = vmatprep.subr.mxu0 0.0
    %213 = vmatpush2.msra.mxu0 0.0
    %214 = vmatprep.subr.mxu0 0.0
    %215 = vmatpush2.msra.mxu0 0.0
    %216 = vmatprep.subr.mxu0 0.0
    %217 = vmatpush2.msra.mxu0 0.0
    %218 = vmatprep.subr.mxu0 0.0
    %219 = vmatpush2.msra.mxu0 0.0
    %220 = vmatprep.subr.mxu0 0.0
    %221 = vmatpush2.msra.mxu0 0.0
    %222 = vmatprep.subr.mxu0 0.0
    %223 = vmatpush2.msra.mxu0 0.0
    %224 = vmatprep.mubr.f32.mxu0 0.0
    %225 = vmatmul.mubr.f32.gmra.mxu0 %v94
    %v226 = vpop.f32.mrf.mxu0
    %v227 = vpop.f32.mrf.mxu0
    %v228 = vadd.f32 0.0, %v227
    %229 = vdwg.mxu0
    %230 = vmatprep.subr.mxu0 %v159
    %231 = vmatpush1.msra.mxu0 %v158
    %232 = vmatprep.subr.mxu0 %v155
    %233 = vmatpush1.msra.mxu0 %v154
    %234 = vmatprep.subr.mxu0 %v151
    %235 = vmatpush1.msra.mxu0 %v150
    %236 = vmatprep.subr.mxu0 %v147
    %237 = vmatpush1.msra.mxu0 %v146
    %238 = vmatprep.subr.mxu0 %v143
    %239 = vmatpush1.msra.mxu0 %v142
    %240 = vmatprep.subr.mxu0 %v139
    %241 = vmatpush1.msra.mxu0 %v138
    %242 = vmatprep.subr.mxu0 %v135
    %243 = vmatpush1.msra.mxu0 %v134
    %244 = vmatprep.subr.mxu0 %v131
    %245 = vmatpush1.msra.mxu0 %v130
    %246 = vmatprep.subr.mxu0 %v127
    %247 = vmatpush1.msra.mxu0 %v126
    %248 = vmatprep.subr.mxu0 %v123
    %249 = vmatpush1.msra.mxu0 %v122
    %250 = vmatprep.subr.mxu0 %v119
    %251 = vmatpush1.msra.mxu0 %v118
    %252 = vmatprep.subr.mxu0 %v115
    %253 = vmatpush1.msra.mxu0 %v114
    %254 = vmatprep.subr.mxu0 %v111
    %255 = vmatpush1.msra.mxu0 %v110
    %256 = vmatprep.subr.mxu0 %v107
    %257 = vmatpush1.msra.mxu0 %v106
    %258 = vmatprep.subr.mxu0 %v103
    %259 = vmatpush1.msra.mxu0 %v102
    %260 = vmatprep.subr.mxu0 %v99
    %261 = vmatpush1.msra.mxu0 %v98
    %262 = vmatprep.subr.mxu0 0.0
    %263 = vmatpush2.msra.mxu0 0.0
    %264 = vmatprep.subr.mxu0 0.0
    %265 = vmatpush2.msra.mxu0 0.0
    %266 = vmatprep.subr.mxu0 0.0
    %267 = vmatpush2.msra.mxu0 0.0
    %268 = vmatprep.subr.mxu0 0.0
    %269 = vmatpush2.msra.mxu0 0.0
    %270 = vmatprep.subr.mxu0 0.0
    %271 = vmatpush2.msra.mxu0 0.0
    %272 = vmatprep.subr.mxu0 0.0
    %273 = vmatpush2.msra.mxu0 0.0
    %274 = vmatprep.subr.mxu0 0.0
    %275 = vmatpush2.msra.mxu0 0.0
    %276 = vmatprep.subr.mxu0 0.0
    %277 = vmatpush2.msra.mxu0 0.0
    %278 = vmatprep.subr.mxu0 0.0
    %279 = vmatpush2.msra.mxu0 0.0
    %280 = vmatprep.subr.mxu0 0.0
    %281 = vmatpush2.msra.mxu0 0.0
    %282 = vmatprep.subr.mxu0 0.0
    %283 = vmatpush2.msra.mxu0 0.0
    %284 = vmatprep.subr.mxu0 0.0
    %285 = vmatpush2.msra.mxu0 0.0
    %286 = vmatprep.subr.mxu0 0.0
    %287 = vmatpush2.msra.mxu0 0.0
    %288 = vmatprep.subr.mxu0 0.0
    %289 = vmatpush2.msra.mxu0 0.0
    %290 = vmatprep.subr.mxu0 0.0
    %291 = vmatpush2.msra.mxu0 0.0
    %292 = vmatprep.subr.mxu0 0.0
    %293 = vmatpush2.msra.mxu0 0.0
    %294 = vmatprep.mubr.f32.mxu0 0.0
    %295 = vmatmul.mubr.f32.gmra.mxu0 %v94
    %v296 = vpop.f32.mrf.mxu0
    %v297 = vadd.f32 0.0, %v296
    %v298 = vpop.f32.mrf.mxu0
    %v299 = vadd.f32 0.0, %v298
    %300 = vdwg.mxu0
    %v301 = vld [vmem:[#allocation7] sm:$0xff]
    %v302 = vld [vmem:[#allocation7 + $0x8] sm:$0xff]
    %v303 = vld [vmem:[#allocation7 + $0x10] sm:$0xff]
    %v304 = vld [vmem:[#allocation7 + $0x18] sm:$0xff]
    %v305 = vld [vmem:[#allocation7 + $0x20] sm:$0xff]
    %v306 = vld [vmem:[#allocation7 + $0x28] sm:$0xff]
    %v307 = vld [vmem:[#allocation7 + $0x30] sm:$0xff]
    %v308 = vld [vmem:[#allocation7 + $0x38] sm:$0xff]
    %v309 = vld [vmem:[#allocation7 + $0x40] sm:$0xff]
    %v310 = vld [vmem:[#allocation7 + $0x48] sm:$0xff]
    %v311 = vld [vmem:[#allocation7 + $0x50] sm:$0xff]
    %v312 = vld [vmem:[#allocation7 + $0x58] sm:$0xff]
    %v313 = vld [vmem:[#allocation7 + $0x60] sm:$0xff]
    %v314 = vld [vmem:[#allocation7 + $0x68] sm:$0xff]
    %v315 = vld [vmem:[#allocation7 + $0x70] sm:$0xff]
    %v316 = vld [vmem:[#allocation7 + $0x78] sm:$0xff]
    %v317 = vld [vmem:[#allocation7 + $0x80] sm:$0xff]
    %v318 = vld [vmem:[#allocation7 + $0x88] sm:$0xff]
    %v319 = vld [vmem:[#allocation7 + $0x90] sm:$0xff]
    %v320 = vld [vmem:[#allocation7 + $0x98] sm:$0xff]
    %v321 = vld [vmem:[#allocation7 + $0xa0] sm:$0xff]
    %v322 = vld [vmem:[#allocation7 + $0xa8] sm:$0xff]
    %v323 = vld [vmem:[#allocation7 + $0xb0] sm:$0xff]
    %v324 = vld [vmem:[#allocation7 + $0xb8] sm:$0xff]
    %v325 = vld [vmem:[#allocation7 + $0xc0] sm:$0xff]
    %v326 = vld [vmem:[#allocation7 + $0xc8] sm:$0xff]
    %v327 = vld [vmem:[#allocation7 + $0xd0] sm:$0xff]
    %v328 = vld [vmem:[#allocation7 + $0xd8] sm:$0xff]
    %v329 = vld [vmem:[#allocation7 + $0xe0] sm:$0xff]
    %v330 = vld [vmem:[#allocation7 + $0xe8] sm:$0xff]
    %v331 = vld [vmem:[#allocation7 + $0xf0] sm:$0xff]
    %v332 = vld [vmem:[#allocation7 + $0xf8] sm:$0xff]
    %v333 = vld [vmem:[#allocation7 + $0x100] sm:$0xff]
    %v334 = vld [vmem:[#allocation7 + $0x108] sm:$0xff]
    %v335 = vld [vmem:[#allocation7 + $0x110] sm:$0xff]
    %v336 = vld [vmem:[#allocation7 + $0x118] sm:$0xff]
    %v337 = vld [vmem:[#allocation7 + $0x120] sm:$0xff]
    %v338 = vld [vmem:[#allocation7 + $0x128] sm:$0xff]
    %v339 = vld [vmem:[#allocation7 + $0x130] sm:$0xff]
    %v340 = vld [vmem:[#allocation7 + $0x138] sm:$0xff]
    %v341 = vld [vmem:[#allocation7 + $0x140] sm:$0xff]
    %v342 = vld [vmem:[#allocation7 + $0x148] sm:$0xff]
    %v343 = vld [vmem:[#allocation7 + $0x150] sm:$0xff]
    %v344 = vld [vmem:[#allocation7 + $0x158] sm:$0xff]
    %v345 = vld [vmem:[#allocation7 + $0x160] sm:$0xff]
    %v346 = vld [vmem:[#allocation7 + $0x168] sm:$0xff]
    %v347 = vld [vmem:[#allocation7 + $0x170] sm:$0xff]
    %v348 = vld [vmem:[#allocation7 + $0x178] sm:$0xff]
    %349 = vmatprep.subr.mxu0 %v347
    %350 = vmatpush1.msra.mxu0 %v346
    %351 = vmatprep.subr.mxu0 %v344
    %352 = vmatpush1.msra.mxu0 %v343
    %353 = vmatprep.subr.mxu0 %v341
    %354 = vmatpush1.msra.mxu0 %v340
    %355 = vmatprep.subr.mxu0 %v338
    %356 = vmatpush1.msra.mxu0 %v337
    %357 = vmatprep.subr.mxu0 %v335
    %358 = vmatpush1.msra.mxu0 %v334
    %359 = vmatprep.subr.mxu0 %v332
    %360 = vmatpush1.msra.mxu0 %v331
    %361 = vmatprep.subr.mxu0 %v329
    %362 = vmatpush1.msra.mxu0 %v328
    %363 = vmatprep.subr.mxu0 %v326
    %364 = vmatpush1.msra.mxu0 %v325
    %365 = vmatprep.subr.mxu0 %v323
    %366 = vmatpush1.msra.mxu0 %v322
    %367 = vmatprep.subr.mxu0 %v320
    %368 = vmatpush1.msra.mxu0 %v319
    %369 = vmatprep.subr.mxu0 %v317
    %370 = vmatpush1.msra.mxu0 %v316
    %371 = vmatprep.subr.mxu0 %v314
    %372 = vmatpush1.msra.mxu0 %v313
    %373 = vmatprep.subr.mxu0 %v311
    %374 = vmatpush1.msra.mxu0 %v310
    %375 = vmatprep.subr.mxu0 %v308
    %376 = vmatpush1.msra.mxu0 %v307
    %377 = vmatprep.subr.mxu0 %v305
    %378 = vmatpush1.msra.mxu0 %v304
    %379 = vmatprep.subr.mxu0 %v302
    %380 = vmatpush1.msra.mxu0 %v301
    %381 = vmatprep.subr.mxu0 0.0
    %382 = vmatpush2.msra.mxu0 0.0
    %383 = vmatprep.subr.mxu0 0.0
    %384 = vmatpush2.msra.mxu0 0.0
    %385 = vmatprep.subr.mxu0 0.0
    %386 = vmatpush2.msra.mxu0 0.0
    %387 = vmatprep.subr.mxu0 0.0
    %388 = vmatpush2.msra.mxu0 0.0
    %389 = vmatprep.subr.mxu0 0.0
    %390 = vmatpush2.msra.mxu0 0.0
    %391 = vmatprep.subr.mxu0 0.0
    %392 = vmatpush2.msra.mxu0 0.0
    %393 = vmatprep.subr.mxu0 0.0
    %394 = vmatpush2.msra.mxu0 0.0
    %395 = vmatprep.subr.mxu0 0.0
    %396 = vmatpush2.msra.mxu0 0.0
    %397 = vmatprep.subr.mxu0 0.0
    %398 = vmatpush2.msra.mxu0 0.0
    %399 = vmatprep.subr.mxu0 0.0
    %400 = vmatpush2.msra.mxu0 0.0
    %401 = vmatprep.subr.mxu0 0.0
    %402 = vmatpush2.msra.mxu0 0.0
    %403 = vmatprep.subr.mxu0 0.0
    %404 = vmatpush2.msra.mxu0 0.0
    %405 = vmatprep.subr.mxu0 0.0
    %406 = vmatpush2.msra.mxu0 0.0
    %407 = vmatprep.subr.mxu0 0.0
    %408 = vmatpush2.msra.mxu0 0.0
    %409 = vmatprep.subr.mxu0 0.0
    %410 = vmatpush2.msra.mxu0 0.0
    %411 = vmatprep.subr.mxu0 0.0
    %412 = vmatpush2.msra.mxu0 0.0
    %413 = vmatprep.mubr.f32.mxu0 0.0
    %414 = vmatmul.mubr.f32.gmra.mxu0 %v95
    %v415 = vpop.f32.mrf.mxu0
    %v416 = vadd.f32 0.0, %v415
    %v417 = vpop.f32.mrf.mxu0
    %v418 = vadd.f32 0.0, %v417
    %419 = vdwg.mxu0
    %420 = vmatprep.subr.mxu0 0.0
    %421 = vmatpush1.msra.mxu0 %v348
    %422 = vmatprep.subr.mxu0 0.0
    %423 = vmatpush1.msra.mxu0 %v345
    %424 = vmatprep.subr.mxu0 0.0
    %425 = vmatpush1.msra.mxu0 %v342
    %426 = vmatprep.subr.mxu0 0.0
    %427 = vmatpush1.msra.mxu0 %v339
    %428 = vmatprep.subr.mxu0 0.0
    %429 = vmatpush1.msra.mxu0 %v336
    %430 = vmatprep.subr.mxu0 0.0
    %431 = vmatpush1.msra.mxu0 %v333
    %432 = vmatprep.subr.mxu0 0.0
    %433 = vmatpush1.msra.mxu0 %v330
    %434 = vmatprep.subr.mxu0 0.0
    %435 = vmatpush1.msra.mxu0 %v327
    %436 = vmatprep.subr.mxu0 0.0
    %437 = vmatpush1.msra.mxu0 %v324
    %438 = vmatprep.subr.mxu0 0.0
    %439 = vmatpush1.msra.mxu0 %v321
    %440 = vmatprep.subr.mxu0 0.0
    %441 = vmatpush1.msra.mxu0 %v318
    %442 = vmatprep.subr.mxu0 0.0
    %443 = vmatpush1.msra.mxu0 %v315
    %444 = vmatprep.subr.mxu0 0.0
    %445 = vmatpush1.msra.mxu0 %v312
    %446 = vmatprep.subr.mxu0 0.0
    %447 = vmatpush1.msra.mxu0 %v309
    %448 = vmatprep.subr.mxu0 0.0
    %449 = vmatpush1.msra.mxu0 %v306
    %450 = vmatprep.subr.mxu0 0.0
    %451 = vmatpush1.msra.mxu0 %v303
    %452 = vmatprep.subr.mxu0 0.0
    %453 = vmatpush2.msra.mxu0 0.0
    %454 = vmatprep.subr.mxu0 0.0
    %455 = vmatpush2.msra.mxu0 0.0
    %456 = vmatprep.subr.mxu0 0.0
    %457 = vmatpush2.msra.mxu0 0.0
    %458 = vmatprep.subr.mxu0 0.0
    %459 = vmatpush2.msra.mxu0 0.0
    %460 = vmatprep.subr.mxu0 0.0
    %461 = vmatpush2.msra.mxu0 0.0
    %462 = vmatprep.subr.mxu0 0.0
    %463 = vmatpush2.msra.mxu0 0.0
    %464 = vmatprep.subr.mxu0 0.0
    %465 = vmatpush2.msra.mxu0 0.0
    %466 = vmatprep.subr.mxu0 0.0
    %467 = vmatpush2.msra.mxu0 0.0
    %468 = vmatprep.subr.mxu0 0.0
    %469 = vmatpush2.msra.mxu0 0.0
    %470 = vmatprep.subr.mxu0 0.0
    %471 = vmatpush2.msra.mxu0 0.0
    %472 = vmatprep.subr.mxu0 0.0
    %473 = vmatpush2.msra.mxu0 0.0
    %474 = vmatprep.subr.mxu0 0.0
    %475 = vmatpush2.msra.mxu0 0.0
    %476 = vmatprep.subr.mxu0 0.0
    %477 = vmatpush2.msra.mxu0 0.0
    %478 = vmatprep.subr.mxu0 0.0
    %479 = vmatpush2.msra.mxu0 0.0
    %480 = vmatprep.subr.mxu0 0.0
    %481 = vmatpush2.msra.mxu0 0.0
    %482 = vmatprep.subr.mxu0 0.0
    %483 = vmatpush2.msra.mxu0 0.0
    %484 = vmatprep.mubr.f32.mxu0 0.0
    %485 = vmatmul.mubr.f32.gmra.mxu0 %v95
    %v486 = vpop.f32.mrf.mxu0
    %v487 = vadd.f32 0.0, %v486
    %v488 = vpop.f32.mrf.mxu0
    %489 = vdwg.mxu0
    %v490 = vadd.f32 %v416, %v228
    %v491 = vadd.f32 %v418, %v297
    %v492 = vxor.u32 %v490, 2147483648
    %v493 = vxor.u32 %v491, 2147483648
    %v494 = vmul.f32 %v492, 1.442695
    %v495 = vpow.pop %v494
    %v496 = vmul.f32 %v493, 1.442695
    %v497 = vpow.pop %v496
    %v498 = vadd.f32 %v495, 1.0
    %v499 = vadd.f32 %v497, 1.0
    %v500 = vrcp.pop %v498
    %v501 = vmul.f32 1.0, %v500
    %v502 = vrcp.pop %v499
    %v503 = vmul.f32 1.0, %v502
    %v504 = vadd.f32 %v299, %v83
    %v505 = vmul.f32 %v501, %v504
    %v506 = vadd.f32 %v487, %v505
    %v507 = vtanh.pop %v506
    %v508 = vsub.f32 1.0, %v503
    %v509 = vmul.f32 %v508, %v507
    %v510 = vmul.f32 %v503, %v94
    %v511 = vadd.f32 %v509, %v510
    %512 = vmatprep.subr.mxu0 %v157
    %513 = vmatpush1.msra.mxu0 %v156
    %514 = vmatprep.subr.mxu0 %v153
    %515 = vmatpush1.msra.mxu0 %v152
    %516 = vmatprep.subr.mxu0 %v149
    %517 = vmatpush1.msra.mxu0 %v148
    %518 = vmatprep.subr.mxu0 %v145
    %519 = vmatpush1.msra.mxu0 %v144
    %520 = vmatprep.subr.mxu0 %v141
    %521 = vmatpush1.msra.mxu0 %v140
    %522 = vmatprep.subr.mxu0 %v137
    %523 = vmatpush1.msra.mxu0 %v136
    %524 = vmatprep.subr.mxu0 %v133
    %525 = vmatpush1.msra.mxu0 %v132
    %526 = vmatprep.subr.mxu0 %v129
    %527 = vmatpush1.msra.mxu0 %v128
    %528 = vmatprep.subr.mxu0 %v125
    %529 = vmatpush1.msra.mxu0 %v124
    %530 = vmatprep.subr.mxu0 %v121
    %531 = vmatpush1.msra.mxu0 %v120
    %532 = vmatprep.subr.mxu0 %v117
    %533 = vmatpush1.msra.mxu0 %v116
    %534 = vmatprep.subr.mxu0 %v113
    %535 = vmatpush1.msra.mxu0 %v112
    %536 = vmatprep.subr.mxu0 %v109
    %537 = vmatpush1.msra.mxu0 %v108
    %538 = vmatprep.subr.mxu0 %v105
    %539 = vmatpush1.msra.mxu0 %v104
    %540 = vmatprep.subr.mxu0 %v101
    %541 = vmatpush1.msra.mxu0 %v100
    %542 = vmatprep.subr.mxu0 %v97
    %543 = vmatpush1.msra.mxu0 %v96
    %544 = vmatprep.subr.mxu0 0.0
    %545 = vmatpush2.msra.mxu0 0.0
    %546 = vmatprep.subr.mxu0 0.0
    %547 = vmatpush2.msra.mxu0 0.0
    %548 = vmatprep.subr.mxu0 0.0
    %549 = vmatpush2.msra.mxu0 0.0
    %550 = vmatprep.subr.mxu0 0.0
    %551 = vmatpush2.msra.mxu0 0.0
    %552 = vmatprep.subr.mxu0 0.0
    %553 = vmatpush2.msra.mxu0 0.0
    %554 = vmatprep.subr.mxu0 0.0
    %555 = vmatpush2.msra.mxu0 0.0
    %556 = vmatprep.subr.mxu0 0.0
    %557 = vmatpush2.msra.mxu0 0.0
    %558 = vmatprep.subr.mxu0 0.0
    %559 = vmatpush2.msra.mxu0 0.0
    %560 = vmatprep.subr.mxu0 0.0
    %561 = vmatpush2.msra.mxu0 0.0
    %562 = vmatprep.subr.mxu0 0.0
    %563 = vmatpush2.msra.mxu0 0.0
    %564 = vmatprep.subr.mxu0 0.0
    %565 = vmatpush2.msra.mxu0 0.0
    %566 = vmatprep.subr.mxu0 0.0
    %567 = vmatpush2.msra.mxu0 0.0
    %568 = vmatprep.subr.mxu0 0.0
    %569 = vmatpush2.msra.mxu0 0.0
    %570 = vmatprep.subr.mxu0 0.0
    %571 = vmatpush2.msra.mxu0 0.0
    %572 = vmatprep.subr.mxu0 0.0
    %573 = vmatpush2.msra.mxu0 0.0
    %574 = vmatprep.subr.mxu0 0.0
    %575 = vmatpush2.msra.mxu0 0.0
    %576 = vmatprep.mubr.f32.mxu0 0.0
    %577 = vmatmul.mubr.f32.gmra.mxu0 %v511
    %v578 = vpop.f32.mrf.mxu0
    %v579 = vadd.f32 0.0, %v578
    %v580 = vpop.f32.mrf.mxu0
    %v581 = vadd.f32 0.0, %v580
    %582 = vdwg.mxu0
    %583 = vmatprep.subr.mxu0 %v159
    %584 = vmatpush1.msra.mxu0 %v158
    %585 = vmatprep.subr.mxu0 %v155
    %586 = vmatpush1.msra.mxu0 %v154
    %587 = vmatprep.subr.mxu0 %v151
    %588 = vmatpush1.msra.mxu0 %v150
    %589 = vmatprep.subr.mxu0 %v147
    %590 = vmatpush1.msra.mxu0 %v146
    %591 = vmatprep.subr.mxu0 %v143
    %592 = vmatpush1.msra.mxu0 %v142
    %593 = vmatprep.subr.mxu0 %v139
    %594 = vmatpush1.msra.mxu0 %v138
    %595 = vmatprep.subr.mxu0 %v135
    %596 = vmatpush1.msra.mxu0 %v134
    %597 = vmatprep.subr.mxu0 %v131
    %598 = vmatpush1.msra.mxu0 %v130
    %599 = vmatprep.subr.mxu0 %v127
    %600 = vmatpush1.msra.mxu0 %v126
    %601 = vmatprep.subr.mxu0 %v123
    %602 = vmatpush1.msra.mxu0 %v122
    %603 = vmatprep.subr.mxu0 %v119
    %604 = vmatpush1.msra.mxu0 %v118
    %605 = vmatprep.subr.mxu0 %v115
    %606 = vmatpush1.msra.mxu0 %v114
    %607 = vmatprep.subr.mxu0 %v111
    %608 = vmatpush1.msra.mxu0 %v110
    %609 = vmatprep.subr.mxu0 %v107
    %610 = vmatpush1.msra.mxu0 %v106
    %611 = vmatprep.subr.mxu0 %v103
    %612 = vmatpush1.msra.mxu0 %v102
    %613 = vmatprep.subr.mxu0 %v99
    %614 = vmatpush1.msra.mxu0 %v98
    %615 = vmatprep.subr.mxu0 0.0
    %616 = vmatpush2.msra.mxu0 0.0
    %617 = vmatprep.subr.mxu0 0.0
    %618 = vmatpush2.msra.mxu0 0.0
    %619 = vmatprep.subr.mxu0 0.0
    %620 = vmatpush2.msra.mxu0 0.0
    %621 = vmatprep.subr.mxu0 0.0
    %622 = vmatpush2.msra.mxu0 0.0
    %623 = vmatprep.subr.mxu0 0.0
    %624 = vmatpush2.msra.mxu0 0.0
    %625 = vmatprep.subr.mxu0 0.0
    %626 = vmatpush2.msra.mxu0 0.0
    %627 = vmatprep.subr.mxu0 0.0
    %628 = vmatpush2.msra.mxu0 0.0
    %629 = vmatprep.subr.mxu0 0.0
    %630 = vmatpush2.msra.mxu0 0.0
    %631 = vmatprep.subr.mxu0 0.0
    %632 = vmatpush2.msra.mxu0 0.0
    %633 = vmatprep.subr.mxu0 0.0
    %634 = vmatpush2.msra.mxu0 0.0
    %635 = vmatprep.subr.mxu0 0.0
    %636 = vmatpush2.msra.mxu0 0.0
    %637 = vmatprep.subr.mxu0 0.0
    %638 = vmatpush2.msra.mxu0 0.0
    %639 = vmatprep.subr.mxu0 0.0
    %640 = vmatpush2.msra.mxu0 0.0
    %641 = vmatprep.subr.mxu0 0.0
    %642 = vmatpush2.msra.mxu0 0.0
    %643 = vmatprep.subr.mxu0 0.0
    %644 = vmatpush2.msra.mxu0 0.0
    %645 = vmatprep.subr.mxu0 0.0
    %646 = vmatpush2.msra.mxu0 0.0
    %647 = vmatprep.mubr.f32.mxu0 0.0
    %648 = vmatmul.mubr.f32.gmra.mxu0 %v511
    %v649 = vpop.f32.mrf.mxu0
    %v650 = vadd.f32 0.0, %v649
    %v651 = vpop.f32.mrf.mxu0
    %v652 = vadd.f32 0.0, %v651
    %653 = vdwg.mxu0
    %v654 = vadd.f32 %v579, %v90
    %655 = vst [vmem:[#allocation10] sm:$0xff] %v654
    %656 = vmax.xlane.f32.xlu0 %v654
    %v657 = vpop.xlane.xlu0 %656
    %vm658 = vcmp.eq.f32.partialorder %v654, %v657
    %v659 = vsel %vm658, %v93, 128
    %v660 = vand.u32 %v659, 65535
    %v661 = vshra.s32 %v659, 16
    %v662 = vcvt.s32.f32 %v660
    %v663 = vcvt.s32.f32 %v661
    %664 = vmin.xlane.f32.xlu0 %v663
    %v665 = vpop.xlane.xlu0 %664
    %vm666 = vcmp.eq.f32.partialorder %v663, %v665
    %v667 = vsel %vm666, %v662, inf
    %668 = vmin.xlane.f32.xlu0 %v667
    %v669 = vpop.xlane.xlu0 %668
    %v670 = vcvt.f32.s32 %v669
    %v671 = vcvt.f32.s32 %v665
    %v672 = vshll.u32 %v671, 16
    %v673 = vadd.s32 %v672, %v670
    %vm674 = vcmp.eq.s32.totalorder %v93, %v673
    %v675 = vsel %vm674, 1, 0
    %v676 = vcvt.s32.f32 %v675
    %v677 = vld [vmem:[#allocation7] sm:$0xff]
    %v678 = vld [vmem:[#allocation7 + $0x8] sm:$0xff]
    %v679 = vld [vmem:[#allocation7 + $0x10] sm:$0xff]
    %v680 = vld [vmem:[#allocation7 + $0x18] sm:$0xff]
    %v681 = vld [vmem:[#allocation7 + $0x20] sm:$0xff]
    %v682 = vld [vmem:[#allocation7 + $0x28] sm:$0xff]
    %v683 = vld [vmem:[#allocation7 + $0x30] sm:$0xff]
    %v684 = vld [vmem:[#allocation7 + $0x38] sm:$0xff]
    %v685 = vld [vmem:[#allocation7 + $0x40] sm:$0xff]
    %v686 = vld [vmem:[#allocation7 + $0x48] sm:$0xff]
    %v687 = vld [vmem:[#allocation7 + $0x50] sm:$0xff]
    %v688 = vld [vmem:[#allocation7 + $0x58] sm:$0xff]
    %v689 = vld [vmem:[#allocation7 + $0x60] sm:$0xff]
    %v690 = vld [vmem:[#allocation7 + $0x68] sm:$0xff]
    %v691 = vld [vmem:[#allocation7 + $0x70] sm:$0xff]
    %v692 = vld [vmem:[#allocation7 + $0x78] sm:$0xff]
    %v693 = vld [vmem:[#allocation7 + $0x80] sm:$0xff]
    %v694 = vld [vmem:[#allocation7 + $0x88] sm:$0xff]
    %v695 = vld [vmem:[#allocation7 + $0x90] sm:$0xff]
    %v696 = vld [vmem:[#allocation7 + $0x98] sm:$0xff]
    %v697 = vld [vmem:[#allocation7 + $0xa0] sm:$0xff]
    %v698 = vld [vmem:[#allocation7 + $0xa8] sm:$0xff]
    %v699 = vld [vmem:[#allocation7 + $0xb0] sm:$0xff]
    %v700 = vld [vmem:[#allocation7 + $0xb8] sm:$0xff]
    %v701 = vld [vmem:[#allocation7 + $0xc0] sm:$0xff]
    %v702 = vld [vmem:[#allocation7 + $0xc8] sm:$0xff]
    %v703 = vld [vmem:[#allocation7 + $0xd0] sm:$0xff]
    %v704 = vld [vmem:[#allocation7 + $0xd8] sm:$0xff]
    %v705 = vld [vmem:[#allocation7 + $0xe0] sm:$0xff]
    %v706 = vld [vmem:[#allocation7 + $0xe8] sm:$0xff]
    %v707 = vld [vmem:[#allocation7 + $0xf0] sm:$0xff]
    %v708 = vld [vmem:[#allocation7 + $0xf8] sm:$0xff]
    %v709 = vld [vmem:[#allocation7 + $0x100] sm:$0xff]
    %v710 = vld [vmem:[#allocation7 + $0x108] sm:$0xff]
    %v711 = vld [vmem:[#allocation7 + $0x110] sm:$0xff]
    %v712 = vld [vmem:[#allocation7 + $0x118] sm:$0xff]
    %v713 = vld [vmem:[#allocation7 + $0x120] sm:$0xff]
    %v714 = vld [vmem:[#allocation7 + $0x128] sm:$0xff]
    %v715 = vld [vmem:[#allocation7 + $0x130] sm:$0xff]
    %v716 = vld [vmem:[#allocation7 + $0x138] sm:$0xff]
    %v717 = vld [vmem:[#allocation7 + $0x140] sm:$0xff]
    %v718 = vld [vmem:[#allocation7 + $0x148] sm:$0xff]
    %v719 = vld [vmem:[#allocation7 + $0x150] sm:$0xff]
    %v720 = vld [vmem:[#allocation7 + $0x158] sm:$0xff]
    %v721 = vld [vmem:[#allocation7 + $0x160] sm:$0xff]
    %v722 = vld [vmem:[#allocation7 + $0x168] sm:$0xff]
    %v723 = vld [vmem:[#allocation7 + $0x170] sm:$0xff]
    %v724 = vld [vmem:[#allocation7 + $0x178] sm:$0xff]
    %725 = vmatprep.subr.mxu0 %v723
    %726 = vmatpush1.msra.mxu0 %v722
    %727 = vmatprep.subr.mxu0 %v720
    %728 = vmatpush1.msra.mxu0 %v719
    %729 = vmatprep.subr.mxu0 %v717
    %730 = vmatpush1.msra.mxu0 %v716
    %731 = vmatprep.subr.mxu0 %v714
    %732 = vmatpush1.msra.mxu0 %v713
    %733 = vmatprep.subr.mxu0 %v711
    %734 = vmatpush1.msra.mxu0 %v710
    %735 = vmatprep.subr.mxu0 %v708
    %736 = vmatpush1.msra.mxu0 %v707
    %737 = vmatprep.subr.mxu0 %v705
    %738 = vmatpush1.msra.mxu0 %v704
    %739 = vmatprep.subr.mxu0 %v702
    %740 = vmatpush1.msra.mxu0 %v701
    %741 = vmatprep.subr.mxu0 %v699
    %742 = vmatpush1.msra.mxu0 %v698
    %743 = vmatprep.subr.mxu0 %v696
    %744 = vmatpush1.msra.mxu0 %v695
    %745 = vmatprep.subr.mxu0 %v693
    %746 = vmatpush1.msra.mxu0 %v692
    %747 = vmatprep.subr.mxu0 %v690
    %748 = vmatpush1.msra.mxu0 %v689
    %749 = vmatprep.subr.mxu0 %v687
    %750 = vmatpush1.msra.mxu0 %v686
    %751 = vmatprep.subr.mxu0 %v684
    %752 = vmatpush1.msra.mxu0 %v683
    %753 = vmatprep.subr.mxu0 %v681
    %754 = vmatpush1.msra.mxu0 %v680
    %755 = vmatprep.subr.mxu0 %v678
    %756 = vmatpush1.msra.mxu0 %v677
    %757 = vmatprep.subr.mxu0 0.0
    %758 = vmatpush2.msra.mxu0 0.0
    %759 = vmatprep.subr.mxu0 0.0
    %760 = vmatpush2.msra.mxu0 0.0
    %761 = vmatprep.subr.mxu0 0.0
    %762 = vmatpush2.msra.mxu0 0.0
    %763 = vmatprep.subr.mxu0 0.0
    %764 = vmatpush2.msra.mxu0 0.0
    %765 = vmatprep.subr.mxu0 0.0
    %766 = vmatpush2.msra.mxu0 0.0
    %767 = vmatprep.subr.mxu0 0.0
    %768 = vmatpush2.msra.mxu0 0.0
    %769 = vmatprep.subr.mxu0 0.0
    %770 = vmatpush2.msra.mxu0 0.0
    %771 = vmatprep.subr.mxu0 0.0
    %772 = vmatpush2.msra.mxu0 0.0
    %773 = vmatprep.subr.mxu0 0.0
    %774 = vmatpush2.msra.mxu0 0.0
    %775 = vmatprep.subr.mxu0 0.0
    %776 = vmatpush2.msra.mxu0 0.0
    %777 = vmatprep.subr.mxu0 0.0
    %778 = vmatpush2.msra.mxu0 0.0
    %779 = vmatprep.subr.mxu0 0.0
    %780 = vmatpush2.msra.mxu0 0.0
    %781 = vmatprep.subr.mxu0 0.0
    %782 = vmatpush2.msra.mxu0 0.0
    %783 = vmatprep.subr.mxu0 0.0
    %784 = vmatpush2.msra.mxu0 0.0
    %785 = vmatprep.subr.mxu0 0.0
    %786 = vmatpush2.msra.mxu0 0.0
    %787 = vmatprep.subr.mxu0 0.0
    %788 = vmatpush2.msra.mxu0 0.0
    %789 = vmatprep.mubr.f32.mxu0 0.0
    %790 = vmatmul.mubr.f32.gmra.mxu0 %v676
    %v791 = vpop.f32.mrf.mxu0
    %v792 = vadd.f32 0.0, %v791
    %v793 = vpop.f32.mrf.mxu0
    %v794 = vadd.f32 0.0, %v793
    %795 = vdwg.mxu0
    %796 = vmatprep.subr.mxu0 0.0
    %797 = vmatpush1.msra.mxu0 %v724
    %798 = vmatprep.subr.mxu0 0.0
    %799 = vmatpush1.msra.mxu0 %v721
    %800 = vmatprep.subr.mxu0 0.0
    %801 = vmatpush1.msra.mxu0 %v718
    %802 = vmatprep.subr.mxu0 0.0
    %803 = vmatpush1.msra.mxu0 %v715
    %804 = vmatprep.subr.mxu0 0.0
    %805 = vmatpush1.msra.mxu0 %v712
    %806 = vmatprep.subr.mxu0 0.0
    %807 = vmatpush1.msra.mxu0 %v709
    %808 = vmatprep.subr.mxu0 0.0
    %809 = vmatpush1.msra.mxu0 %v706
    %810 = vmatprep.subr.mxu0 0.0
    %811 = vmatpush1.msra.mxu0 %v703
    %812 = vmatprep.subr.mxu0 0.0
    %813 = vmatpush1.msra.mxu0 %v700
    %814 = vmatprep.subr.mxu0 0.0
    %815 = vmatpush1.msra.mxu0 %v697
    %816 = vmatprep.subr.mxu0 0.0
    %817 = vmatpush1.msra.mxu0 %v694
    %818 = vmatprep.subr.mxu0 0.0
    %819 = vmatpush1.msra.mxu0 %v691
    %820 = vmatprep.subr.mxu0 0.0
    %821 = vmatpush1.msra.mxu0 %v688
    %822 = vmatprep.subr.mxu0 0.0
    %823 = vmatpush1.msra.mxu0 %v685
    %824 = vmatprep.subr.mxu0 0.0
    %825 = vmatpush1.msra.mxu0 %v682
    %826 = vmatprep.subr.mxu0 0.0
    %827 = vmatpush1.msra.mxu0 %v679
    %828 = vmatprep.subr.mxu0 0.0
    %829 = vmatpush2.msra.mxu0 0.0
    %830 = vmatprep.subr.mxu0 0.0
    %831 = vmatpush2.msra.mxu0 0.0
    %832 = vmatprep.subr.mxu0 0.0
    %833 = vmatpush2.msra.mxu0 0.0
    %834 = vmatprep.subr.mxu0 0.0
    %835 = vmatpush2.msra.mxu0 0.0
    %836 = vmatprep.subr.mxu0 0.0
    %837 = vmatpush2.msra.mxu0 0.0
    %838 = vmatprep.subr.mxu0 0.0
    %839 = vmatpush2.msra.mxu0 0.0
    %840 = vmatprep.subr.mxu0 0.0
    %841 = vmatpush2.msra.mxu0 0.0
    %842 = vmatprep.subr.mxu0 0.0
    %843 = vmatpush2.msra.mxu0 0.0
    %844 = vmatprep.subr.mxu0 0.0
    %845 = vmatpush2.msra.mxu0 0.0
    %846 = vmatprep.subr.mxu0 0.0
    %847 = vmatpush2.msra.mxu0 0.0
    %848 = vmatprep.subr.mxu0 0.0
    %849 = vmatpush2.msra.mxu0 0.0
    %850 = vmatprep.subr.mxu0 0.0
    %851 = vmatpush2.msra.mxu0 0.0
    %852 = vmatprep.subr.mxu0 0.0
    %853 = vmatpush2.msra.mxu0 0.0
    %854 = vmatprep.subr.mxu0 0.0
    %855 = vmatpush2.msra.mxu0 0.0
    %856 = vmatprep.subr.mxu0 0.0
    %857 = vmatpush2.msra.mxu0 0.0
    %858 = vmatprep.subr.mxu0 0.0
    %859 = vmatpush2.msra.mxu0 0.0
    %860 = vmatprep.mubr.f32.mxu0 0.0
    %861 = vmatmul.mubr.f32.gmra.mxu0 %v676
    %v862 = vpop.f32.mrf.mxu0
    %v863 = vadd.f32 0.0, %v862
    %v864 = vpop.f32.mrf.mxu0
    %865 = vdwg.mxu0
    %v866 = vadd.f32 %v792, %v581
    %v867 = vadd.f32 %v794, %v650
    %v868 = vxor.u32 %v866, 2147483648
    %v869 = vxor.u32 %v867, 2147483648
    %v870 = vmul.f32 %v868, 1.442695
    %v871 = vpow.pop %v870
    %v872 = vmul.f32 %v869, 1.442695
    %v873 = vpow.pop %v872
    %v874 = vadd.f32 %v871, 1.0
    %v875 = vadd.f32 %v873, 1.0
    %v876 = vrcp.pop %v874
    %v877 = vmul.f32 1.0, %v876
    %v878 = vrcp.pop %v875
    %v879 = vmul.f32 1.0, %v878
    %v880 = vadd.f32 %v652, %v83
    %v881 = vmul.f32 %v877, %v880
    %v882 = vadd.f32 %v863, %v881
    %v883 = vtanh.pop %v882
    %v884 = vsub.f32 1.0, %v879
    %v885 = vmul.f32 %v884, %v883
    %v886 = vmul.f32 %v879, %v511
    %v887 = vadd.f32 %v885, %v886
    %v888 = vld [vmem:[#allocation8] sm:$0xff]
    %v889 = vld [vmem:[#allocation8 + $0x8] sm:$0xff]
    %v890 = vld [vmem:[#allocation8 + $0x10] sm:$0xff]
    %v891 = vld [vmem:[#allocation8 + $0x18] sm:$0xff]
    %v892 = vld [vmem:[#allocation8 + $0x20] sm:$0xff]
    %v893 = vld [vmem:[#allocation8 + $0x28] sm:$0xff]
    %v894 = vld [vmem:[#allocation8 + $0x30] sm:$0xff]
    %v895 = vld [vmem:[#allocation8 + $0x38] sm:$0xff]
    %v896 = vld [vmem:[#allocation8 + $0x40] sm:$0xff]
    %v897 = vld [vmem:[#allocation8 + $0x48] sm:$0xff]
    %v898 = vld [vmem:[#allocation8 + $0x50] sm:$0xff]
    %v899 = vld [vmem:[#allocation8 + $0x58] sm:$0xff]
    %v900 = vld [vmem:[#allocation8 + $0x60] sm:$0xff]
    %v901 = vld [vmem:[#allocation8 + $0x68] sm:$0xff]
    %v902 = vld [vmem:[#allocation8 + $0x70] sm:$0xff]
    %v903 = vld [vmem:[#allocation8 + $0x78] sm:$0xff]
    %v904 = vld [vmem:[#allocation8 + $0x80] sm:$0xff]
    %v905 = vld [vmem:[#allocation8 + $0x88] sm:$0xff]
    %v906 = vld [vmem:[#allocation8 + $0x90] sm:$0xff]
    %v907 = vld [vmem:[#allocation8 + $0x98] sm:$0xff]
    %v908 = vld [vmem:[#allocation8 + $0xa0] sm:$0xff]
    %v909 = vld [vmem:[#allocation8 + $0xa8] sm:$0xff]
    %v910 = vld [vmem:[#allocation8 + $0xb0] sm:$0xff]
    %v911 = vld [vmem:[#allocation8 + $0xb8] sm:$0xff]
    %v912 = vld [vmem:[#allocation8 + $0xc0] sm:$0xff]
    %v913 = vld [vmem:[#allocation8 + $0xc8] sm:$0xff]
    %v914 = vld [vmem:[#allocation8 + $0xd0] sm:$0xff]
    %v915 = vld [vmem:[#allocation8 + $0xd8] sm:$0xff]
    %v916 = vld [vmem:[#allocation8 + $0xe0] sm:$0xff]
    %v917 = vld [vmem:[#allocation8 + $0xe8] sm:$0xff]
    %v918 = vld [vmem:[#allocation8 + $0xf0] sm:$0xff]
    %v919 = vld [vmem:[#allocation8 + $0xf8] sm:$0xff]
    %v920 = vld [vmem:[#allocation8 + $0x100] sm:$0xff]
    %v921 = vld [vmem:[#allocation8 + $0x108] sm:$0xff]
    %v922 = vld [vmem:[#allocation8 + $0x110] sm:$0xff]
    %v923 = vld [vmem:[#allocation8 + $0x118] sm:$0xff]
    %v924 = vld [vmem:[#allocation8 + $0x120] sm:$0xff]
    %v925 = vld [vmem:[#allocation8 + $0x128] sm:$0xff]
    %v926 = vld [vmem:[#allocation8 + $0x130] sm:$0xff]
    %v927 = vld [vmem:[#allocation8 + $0x138] sm:$0xff]
    %v928 = vld [vmem:[#allocation8 + $0x140] sm:$0xff]
    %v929 = vld [vmem:[#allocation8 + $0x148] sm:$0xff]
    %v930 = vld [vmem:[#allocation8 + $0x150] sm:$0xff]
    %v931 = vld [vmem:[#allocation8 + $0x158] sm:$0xff]
    %v932 = vld [vmem:[#allocation8 + $0x160] sm:$0xff]
    %v933 = vld [vmem:[#allocation8 + $0x168] sm:$0xff]
    %v934 = vld [vmem:[#allocation8 + $0x170] sm:$0xff]
    %v935 = vld [vmem:[#allocation8 + $0x178] sm:$0xff]
    %v936 = vld [vmem:[#allocation8 + $0x180] sm:$0xff]
    %v937 = vld [vmem:[#allocation8 + $0x188] sm:$0xff]
    %v938 = vld [vmem:[#allocation8 + $0x190] sm:$0xff]
    %v939 = vld [vmem:[#allocation8 + $0x198] sm:$0xff]
    %v940 = vld [vmem:[#allocation8 + $0x1a0] sm:$0xff]
    %v941 = vld [vmem:[#allocation8 + $0x1a8] sm:$0xff]
    %v942 = vld [vmem:[#allocation8 + $0x1b0] sm:$0xff]
    %v943 = vld [vmem:[#allocation8 + $0x1b8] sm:$0xff]
    %v944 = vld [vmem:[#allocation8 + $0x1c0] sm:$0xff]
    %v945 = vld [vmem:[#allocation8 + $0x1c8] sm:$0xff]
    %v946 = vld [vmem:[#allocation8 + $0x1d0] sm:$0xff]
    %v947 = vld [vmem:[#allocation8 + $0x1d8] sm:$0xff]
    %v948 = vld [vmem:[#allocation8 + $0x1e0] sm:$0xff]
    %v949 = vld [vmem:[#allocation8 + $0x1e8] sm:$0xff]
    %v950 = vld [vmem:[#allocation8 + $0x1f0] sm:$0xff]
    %v951 = vld [vmem:[#allocation8 + $0x1f8] sm:$0xff]
    %952 = vmatprep.subr.mxu0 %v949
    %953 = vmatpush1.msra.mxu0 %v948
    %954 = vmatprep.subr.mxu0 %v945
    %955 = vmatpush1.msra.mxu0 %v944
    %956 = vmatprep.subr.mxu0 %v941
    %957 = vmatpush1.msra.mxu0 %v940
    %958 = vmatprep.subr.mxu0 %v937
    %959 = vmatpush1.msra.mxu0 %v936
    %960 = vmatprep.subr.mxu0 %v933
    %961 = vmatpush1.msra.mxu0 %v932
    %962 = vmatprep.subr.mxu0 %v929
    %963 = vmatpush1.msra.mxu0 %v928
    %964 = vmatprep.subr.mxu0 %v925
    %965 = vmatpush1.msra.mxu0 %v924
    %966 = vmatprep.subr.mxu0 %v921
    %967 = vmatpush1.msra.mxu0 %v920
    %968 = vmatprep.subr.mxu0 %v917
    %969 = vmatpush1.msra.mxu0 %v916
    %970 = vmatprep.subr.mxu0 %v913
    %971 = vmatpush1.msra.mxu0 %v912
    %972 = vmatprep.subr.mxu0 %v909
    %973 = vmatpush1.msra.mxu0 %v908
    %974 = vmatprep.subr.mxu0 %v905
    %975 = vmatpush1.msra.mxu0 %v904
    %976 = vmatprep.subr.mxu0 %v901
    %977 = vmatpush1.msra.mxu0 %v900
    %978 = vmatprep.subr.mxu0 %v897
    %979 = vmatpush1.msra.mxu0 %v896
    %980 = vmatprep.subr.mxu0 %v893
    %981 = vmatpush1.msra.mxu0 %v892
    %982 = vmatprep.subr.mxu0 %v889
    %983 = vmatpush1.msra.mxu0 %v888
    %984 = vmatprep.subr.mxu0 0.0
    %985 = vmatpush2.msra.mxu0 0.0
    %986 = vmatprep.subr.mxu0 0.0
    %987 = vmatpush2.msra.mxu0 0.0
    %988 = vmatprep.subr.mxu0 0.0
    %989 = vmatpush2.msra.mxu0 0.0
    %990 = vmatprep.subr.mxu0 0.0
    %991 = vmatpush2.msra.mxu0 0.0
    %992 = vmatprep.subr.mxu0 0.0
    %993 = vmatpush2.msra.mxu0 0.0
    %994 = vmatprep.subr.mxu0 0.0
    %995 = vmatpush2.msra.mxu0 0.0
    %996 = vmatprep.subr.mxu0 0.0
    %997 = vmatpush2.msra.mxu0 0.0
    %998 = vmatprep.subr.mxu0 0.0
    %999 = vmatpush2.msra.mxu0 0.0
    %1000 = vmatprep.subr.mxu0 0.0
    %1001 = vmatpush2.msra.mxu0 0.0
    %1002 = vmatprep.subr.mxu0 0.0
    %1003 = vmatpush2.msra.mxu0 0.0
    %1004 = vmatprep.subr.mxu0 0.0
    %1005 = vmatpush2.msra.mxu0 0.0
    %1006 = vmatprep.subr.mxu0 0.0
    %1007 = vmatpush2.msra.mxu0 0.0
    %1008 = vmatprep.subr.mxu0 0.0
    %1009 = vmatpush2.msra.mxu0 0.0
    %1010 = vmatprep.subr.mxu0 0.0
    %1011 = vmatpush2.msra.mxu0 0.0
    %1012 = vmatprep.subr.mxu0 0.0
    %1013 = vmatpush2.msra.mxu0 0.0
    %1014 = vmatprep.subr.mxu0 0.0
    %1015 = vmatpush2.msra.mxu0 0.0
    %1016 = vmatprep.mubr.f32.mxu0 0.0
    %1017 = vmatmul.mubr.f32.gmra.mxu0 %v887
    %v1018 = vpop.f32.mrf.mxu0
    %v1019 = vadd.f32 0.0, %v1018
    %v1020 = vpop.f32.mrf.mxu0
    %v1021 = vadd.f32 0.0, %v1020
    %1022 = vdwg.mxu0
    %1023 = vmatprep.subr.mxu0 %v951
    %1024 = vmatpush1.msra.mxu0 %v950
    %1025 = vmatprep.subr.mxu0 %v947
    %1026 = vmatpush1.msra.mxu0 %v946
    %1027 = vmatprep.subr.mxu0 %v943
    %1028 = vmatpush1.msra.mxu0 %v942
    %1029 = vmatprep.subr.mxu0 %v939
    %1030 = vmatpush1.msra.mxu0 %v938
    %1031 = vmatprep.subr.mxu0 %v935
    %1032 = vmatpush1.msra.mxu0 %v934
    %1033 = vmatprep.subr.mxu0 %v931
    %1034 = vmatpush1.msra.mxu0 %v930
    %1035 = vmatprep.subr.mxu0 %v927
    %1036 = vmatpush1.msra.mxu0 %v926
    %1037 = vmatprep.subr.mxu0 %v923
    %1038 = vmatpush1.msra.mxu0 %v922
    %1039 = vmatprep.subr.mxu0 %v919
    %1040 = vmatpush1.msra.mxu0 %v918
    %1041 = vmatprep.subr.mxu0 %v915
    %1042 = vmatpush1.msra.mxu0 %v914
    %1043 = vmatprep.subr.mxu0 %v911
    %1044 = vmatpush1.msra.mxu0 %v910
    %1045 = vmatprep.subr.mxu0 %v907
    %1046 = vmatpush1.msra.mxu0 %v906
    %1047 = vmatprep.subr.mxu0 %v903
    %1048 = vmatpush1.msra.mxu0 %v902
    %1049 = vmatprep.subr.mxu0 %v899
    %1050 = vmatpush1.msra.mxu0 %v898
    %1051 = vmatprep.subr.mxu0 %v895
    %1052 = vmatpush1.msra.mxu0 %v894
    %1053 = vmatprep.subr.mxu0 %v891
    %1054 = vmatpush1.msra.mxu0 %v890
    %1055 = vmatprep.subr.mxu0 0.0
    %1056 = vmatpush2.msra.mxu0 0.0
    %1057 = vmatprep.subr.mxu0 0.0
    %1058 = vmatpush2.msra.mxu0 0.0
    %1059 = vmatprep.subr.mxu0 0.0
    %1060 = vmatpush2.msra.mxu0 0.0
    %1061 = vmatprep.subr.mxu0 0.0
    %1062 = vmatpush2.msra.mxu0 0.0
    %1063 = vmatprep.subr.mxu0 0.0
    %1064 = vmatpush2.msra.mxu0 0.0
    %1065 = vmatprep.subr.mxu0 0.0
    %1066 = vmatpush2.msra.mxu0 0.0
    %1067 = vmatprep.subr.mxu0 0.0
    %1068 = vmatpush2.msra.mxu0 0.0
    %1069 = vmatprep.subr.mxu0 0.0
    %1070 = vmatpush2.msra.mxu0 0.0
    %1071 = vmatprep.subr.mxu0 0.0
    %1072 = vmatpush2.msra.mxu0 0.0
    %1073 = vmatprep.subr.mxu0 0.0
    %1074 = vmatpush2.msra.mxu0 0.0
    %1075 = vmatprep.subr.mxu0 0.0
    %1076 = vmatpush2.msra.mxu0 0.0
    %1077 = vmatprep.subr.mxu0 0.0
    %1078 = vmatpush2.msra.mxu0 0.0
    %1079 = vmatprep.subr.mxu0 0.0
    %1080 = vmatpush2.msra.mxu0 0.0
    %1081 = vmatprep.subr.mxu0 0.0
    %1082 = vmatpush2.msra.mxu0 0.0
    %1083 = vmatprep.subr.mxu0 0.0
    %1084 = vmatpush2.msra.mxu0 0.0
    %1085 = vmatprep.subr.mxu0 0.0
    %1086 = vmatpush2.msra.mxu0 0.0
    %1087 = vmatprep.mubr.f32.mxu0 0.0
    %1088 = vmatmul.mubr.f32.gmra.mxu0 %v887
    %v1089 = vpop.f32.mrf.mxu0
    %v1090 = vadd.f32 0.0, %v1089
    %v1091 = vpop.f32.mrf.mxu0
    %v1092 = vadd.f32 0.0, %v1091
    %1093 = vdwg.mxu0
    %v1094 = vadd.f32 %v1019, %v90
    %1095 = vst [vmem:[#allocation10 + $0x8] sm:$0xff] %v1094
    %1096 = vmax.xlane.f32.xlu0 %v1094
    %v1097 = vpop.xlane.xlu0 %1096
    %vm1098 = vcmp.eq.f32.partialorder %v1094, %v1097
    %v1099 = vsel %vm1098, %v93, 128
    %v1100 = vand.u32 %v1099, 65535
    %v1101 = vshra.s32 %v1099, 16
    %v1102 = vcvt.s32.f32 %v1100
    %v1103 = vcvt.s32.f32 %v1101
    %1104 = vmin.xlane.f32.xlu0 %v1103
    %v1105 = vpop.xlane.xlu0 %1104
    %vm1106 = vcmp.eq.f32.partialorder %v1103, %v1105
    %v1107 = vsel %vm1106, %v1102, inf
    %1108 = vmin.xlane.f32.xlu0 %v1107
    %v1109 = vpop.xlane.xlu0 %1108
    %v1110 = vcvt.f32.s32 %v1109
    %v1111 = vcvt.f32.s32 %v1105
    %v1112 = vshll.u32 %v1111, 16
    %v1113 = vadd.s32 %v1112, %v1110
    %vm1114 = vcmp.eq.s32.totalorder %v93, %v1113
    %v1115 = vsel %vm1114, 1, 0
    %v1116 = vcvt.s32.f32 %v1115
    %v1117 = vld [vmem:[#allocation7] sm:$0xff]
    %v1118 = vld [vmem:[#allocation7 + $0x8] sm:$0xff]
    %v1119 = vld [vmem:[#allocation7 + $0x10] sm:$0xff]
    %v1120 = vld [vmem:[#allocation7 + $0x18] sm:$0xff]
    %v1121 = vld [vmem:[#allocation7 + $0x20] sm:$0xff]
    %v1122 = vld [vmem:[#allocation7 + $0x28] sm:$0xff]
    %v1123 = vld [vmem:[#allocation7 + $0x30] sm:$0xff]
    %v1124 = vld [vmem:[#allocation7 + $0x38] sm:$0xff]
    %v1125 = vld [vmem:[#allocation7 + $0x40] sm:$0xff]
    %v1126 = vld [vmem:[#allocation7 + $0x48] sm:$0xff]
    %v1127 = vld [vmem:[#allocation7 + $0x50] sm:$0xff]
    %v1128 = vld [vmem:[#allocation7 + $0x58] sm:$0xff]
    %v1129 = vld [vmem:[#allocation7 + $0x60] sm:$0xff]
    %v1130 = vld [vmem:[#allocation7 + $0x68] sm:$0xff]
    %v1131 = vld [vmem:[#allocation7 + $0x70] sm:$0xff]
    %v1132 = vld [vmem:[#allocation7 + $0x78] sm:$0xff]
    %v1133 = vld [vmem:[#allocation7 + $0x80] sm:$0xff]
    %v1134 = vld [vmem:[#allocation7 + $0x88] sm:$0xff]
    %v1135 = vld [vmem:[#allocation7 + $0x90] sm:$0xff]
    %v1136 = vld [vmem:[#allocation7 + $0x98] sm:$0xff]
    %v1137 = vld [vmem:[#allocation7 + $0xa0] sm:$0xff]
    %v1138 = vld [vmem:[#allocation7 + $0xa8] sm:$0xff]
    %v1139 = vld [vmem:[#allocation7 + $0xb0] sm:$0xff]
    %v1140 = vld [vmem:[#allocation7 + $0xb8] sm:$0xff]
    %v1141 = vld [vmem:[#allocation7 + $0xc0] sm:$0xff]
    %v1142 = vld [vmem:[#allocation7 + $0xc8] sm:$0xff]
    %v1143 = vld [vmem:[#allocation7 + $0xd0] sm:$0xff]
    %v1144 = vld [vmem:[#allocation7 + $0xd8] sm:$0xff]
    %v1145 = vld [vmem:[#allocation7 + $0xe0] sm:$0xff]
    %v1146 = vld [vmem:[#allocation7 + $0xe8] sm:$0xff]
    %v1147 = vld [vmem:[#allocation7 + $0xf0] sm:$0xff]
    %v1148 = vld [vmem:[#allocation7 + $0xf8] sm:$0xff]
    %v1149 = vld [vmem:[#allocation7 + $0x100] sm:$0xff]
    %v1150 = vld [vmem:[#allocation7 + $0x108] sm:$0xff]
    %v1151 = vld [vmem:[#allocation7 + $0x110] sm:$0xff]
    %v1152 = vld [vmem:[#allocation7 + $0x118] sm:$0xff]
    %v1153 = vld [vmem:[#allocation7 + $0x120] sm:$0xff]
    %v1154 = vld [vmem:[#allocation7 + $0x128] sm:$0xff]
    %v1155 = vld [vmem:[#allocation7 + $0x130] sm:$0xff]
    %v1156 = vld [vmem:[#allocation7 + $0x138] sm:$0xff]
    %v1157 = vld [vmem:[#allocation7 + $0x140] sm:$0xff]
    %v1158 = vld [vmem:[#allocation7 + $0x148] sm:$0xff]
    %v1159 = vld [vmem:[#allocation7 + $0x150] sm:$0xff]
    %v1160 = vld [vmem:[#allocation7 + $0x158] sm:$0xff]
    %v1161 = vld [vmem:[#allocation7 + $0x160] sm:$0xff]
    %v1162 = vld [vmem:[#allocation7 + $0x168] sm:$0xff]
    %v1163 = vld [vmem:[#allocation7 + $0x170] sm:$0xff]
    %v1164 = vld [vmem:[#allocation7 + $0x178] sm:$0xff]
    %1165 = vmatprep.subr.mxu0 %v1163
    %1166 = vmatpush1.msra.mxu0 %v1162
    %1167 = vmatprep.subr.mxu0 %v1160
    %1168 = vmatpush1.msra.mxu0 %v1159
    %1169 = vmatprep.subr.mxu0 %v1157
    %1170 = vmatpush1.msra.mxu0 %v1156
    %1171 = vmatprep.subr.mxu0 %v1154
    %1172 = vmatpush1.msra.mxu0 %v1153
    %1173 = vmatprep.subr.mxu0 %v1151
    %1174 = vmatpush1.msra.mxu0 %v1150
    %1175 = vmatprep.subr.mxu0 %v1148
    %1176 = vmatpush1.msra.mxu0 %v1147
    %1177 = vmatprep.subr.mxu0 %v1145
    %1178 = vmatpush1.msra.mxu0 %v1144
    %1179 = vmatprep.subr.mxu0 %v1142
    %1180 = vmatpush1.msra.mxu0 %v1141
    %1181 = vmatprep.subr.mxu0 %v1139
    %1182 = vmatpush1.msra.mxu0 %v1138
    %1183 = vmatprep.subr.mxu0 %v1136
    %1184 = vmatpush1.msra.mxu0 %v1135
    %1185 = vmatprep.subr.mxu0 %v1133
    %1186 = vmatpush1.msra.mxu0 %v1132
    %1187 = vmatprep.subr.mxu0 %v1130
    %1188 = vmatpush1.msra.mxu0 %v1129
    %1189 = vmatprep.subr.mxu0 %v1127
    %1190 = vmatpush1.msra.mxu0 %v1126
    %1191 = vmatprep.subr.mxu0 %v1124
    %1192 = vmatpush1.msra.mxu0 %v1123
    %1193 = vmatprep.subr.mxu0 %v1121
    %1194 = vmatpush1.msra.mxu0 %v1120
    %1195 = vmatprep.subr.mxu0 %v1118
    %1196 = vmatpush1.msra.mxu0 %v1117
    %1197 = vmatprep.subr.mxu0 0.0
    %1198 = vmatpush2.msra.mxu0 0.0
    %1199 = vmatprep.subr.mxu0 0.0
    %1200 = vmatpush2.msra.mxu0 0.0
    %1201 = vmatprep.subr.mxu0 0.0
    %1202 = vmatpush2.msra.mxu0 0.0
    %1203 = vmatprep.subr.mxu0 0.0
    %1204 = vmatpush2.msra.mxu0 0.0
    %1205 = vmatprep.subr.mxu0 0.0
    %1206 = vmatpush2.msra.mxu0 0.0
    %1207 = vmatprep.subr.mxu0 0.0
    %1208 = vmatpush2.msra.mxu0 0.0
    %1209 = vmatprep.subr.mxu0 0.0
    %1210 = vmatpush2.msra.mxu0 0.0
    %1211 = vmatprep.subr.mxu0 0.0
    %1212 = vmatpush2.msra.mxu0 0.0
    %1213 = vmatprep.subr.mxu0 0.0
    %1214 = vmatpush2.msra.mxu0 0.0
    %1215 = vmatprep.subr.mxu0 0.0
    %1216 = vmatpush2.msra.mxu0 0.0
    %1217 = vmatprep.subr.mxu0 0.0
    %1218 = vmatpush2.msra.mxu0 0.0
    %1219 = vmatprep.subr.mxu0 0.0
    %1220 = vmatpush2.msra.mxu0 0.0
    %1221 = vmatprep.subr.mxu0 0.0
    %1222 = vmatpush2.msra.mxu0 0.0
    %1223 = vmatprep.subr.mxu0 0.0
    %1224 = vmatpush2.msra.mxu0 0.0
    %1225 = vmatprep.subr.mxu0 0.0
    %1226 = vmatpush2.msra.mxu0 0.0
    %1227 = vmatprep.subr.mxu0 0.0
    %1228 = vmatpush2.msra.mxu0 0.0
    %1229 = vmatprep.mubr.f32.mxu0 0.0
    %1230 = vmatmul.mubr.f32.gmra.mxu0 %v1116
    %v1231 = vpop.f32.mrf.mxu0
    %v1232 = vadd.f32 0.0, %v1231
    %v1233 = vpop.f32.mrf.mxu0
    %v1234 = vadd.f32 0.0, %v1233
    %1235 = vdwg.mxu0
    %1236 = vmatprep.subr.mxu0 0.0
    %1237 = vmatpush1.msra.mxu0 %v1164
    %1238 = vmatprep.subr.mxu0 0.0
    %1239 = vmatpush1.msra.mxu0 %v1161
    %1240 = vmatprep.subr.mxu0 0.0
    %1241 = vmatpush1.msra.mxu0 %v1158
    %1242 = vmatprep.subr.mxu0 0.0
    %1243 = vmatpush1.msra.mxu0 %v1155
    %1244 = vmatprep.subr.mxu0 0.0
    %1245 = vmatpush1.msra.mxu0 %v1152
    %1246 = vmatprep.subr.mxu0 0.0
    %1247 = vmatpush1.msra.mxu0 %v1149
    %1248 = vmatprep.subr.mxu0 0.0
    %1249 = vmatpush1.msra.mxu0 %v1146
    %1250 = vmatprep.subr.mxu0 0.0
    %1251 = vmatpush1.msra.mxu0 %v1143
    %1252 = vmatprep.subr.mxu0 0.0
    %1253 = vmatpush1.msra.mxu0 %v1140
    %1254 = vmatprep.subr.mxu0 0.0
    %1255 = vmatpush1.msra.mxu0 %v1137
    %1256 = vmatprep.subr.mxu0 0.0
    %1257 = vmatpush1.msra.mxu0 %v1134
    %1258 = vmatprep.subr.mxu0 0.0
    %1259 = vmatpush1.msra.mxu0 %v1131
    %1260 = vmatprep.subr.mxu0 0.0
    %1261 = vmatpush1.msra.mxu0 %v1128
    %1262 = vmatprep.subr.mxu0 0.0
    %1263 = vmatpush1.msra.mxu0 %v1125
    %1264 = vmatprep.subr.mxu0 0.0
    %1265 = vmatpush1.msra.mxu0 %v1122
    %1266 = vmatprep.subr.mxu0 0.0
    %1267 = vmatpush1.msra.mxu0 %v1119
    %1268 = vmatprep.subr.mxu0 0.0
    %1269 = vmatpush2.msra.mxu0 0.0
    %1270 = vmatprep.subr.mxu0 0.0
    %1271 = vmatpush2.msra.mxu0 0.0
    %1272 = vmatprep.subr.mxu0 0.0
    %1273 = vmatpush2.msra.mxu0 0.0
    %1274 = vmatprep.subr.mxu0 0.0
    %1275 = vmatpush2.msra.mxu0 0.0
    %1276 = vmatprep.subr.mxu0 0.0
    %1277 = vmatpush2.msra.mxu0 0.0
    %1278 = vmatprep.subr.mxu0 0.0
    %1279 = vmatpush2.msra.mxu0 0.0
    %1280 = vmatprep.subr.mxu0 0.0
    %1281 = vmatpush2.msra.mxu0 0.0
    %1282 = vmatprep.subr.mxu0 0.0
    %1283 = vmatpush2.msra.mxu0 0.0
    %1284 = vmatprep.subr.mxu0 0.0
    %1285 = vmatpush2.msra.mxu0 0.0
    %1286 = vmatprep.subr.mxu0 0.0
    %1287 = vmatpush2.msra.mxu0 0.0
    %1288 = vmatprep.subr.mxu0 0.0
    %1289 = vmatpush2.msra.mxu0 0.0
    %1290 = vmatprep.subr.mxu0 0.0
    %1291 = vmatpush2.msra.mxu0 0.0
    %1292 = vmatprep.subr.mxu0 0.0
    %1293 = vmatpush2.msra.mxu0 0.0
    %1294 = vmatprep.subr.mxu0 0.0
    %1295 = vmatpush2.msra.mxu0 0.0
    %1296 = vmatprep.subr.mxu0 0.0
    %1297 = vmatpush2.msra.mxu0 0.0
    %1298 = vmatprep.subr.mxu0 0.0
    %1299 = vmatpush2.msra.mxu0 0.0
    %1300 = vmatprep.mubr.f32.mxu0 0.0
    %1301 = vmatmul.mubr.f32.gmra.mxu0 %v1116
    %v1302 = vpop.f32.mrf.mxu0
    %v1303 = vadd.f32 0.0, %v1302
    %v1304 = vpop.f32.mrf.mxu0
    %1305 = vdwg.mxu0
    %v1306 = vadd.f32 %v1232, %v1021
    %v1307 = vadd.f32 %v1234, %v1090
    %v1308 = vxor.u32 %v1306, 2147483648
    %v1309 = vxor.u32 %v1307, 2147483648
    %v1310 = vmul.f32 %v1308, 1.442695
    %v1311 = vpow.pop %v1310
    %v1312 = vmul.f32 %v1309, 1.442695
    %v1313 = vpow.pop %v1312
    %v1314 = vadd.f32 %v1311, 1.0
    %v1315 = vadd.f32 %v1313, 1.0
    %v1316 = vrcp.pop %v1314
    %v1317 = vmul.f32 1.0, %v1316
    %v1318 = vrcp.pop %v1315
    %v1319 = vmul.f32 1.0, %v1318
    %v1320 = vadd.f32 %v1092, %v83
    %v1321 = vmul.f32 %v1317, %v1320
    %v1322 = vadd.f32 %v1303, %v1321
    %v1323 = vtanh.pop %v1322
    %v1324 = vsub.f32 1.0, %v1319
    %v1325 = vmul.f32 %v1324, %v1323
    %v1326 = vmul.f32 %v1319, %v887
    %v1327 = vadd.f32 %v1325, %v1326
    %v1328 = vld [vmem:[#allocation8] sm:$0xff]
    %v1329 = vld [vmem:[#allocation8 + $0x8] sm:$0xff]
    %v1330 = vld [vmem:[#allocation8 + $0x10] sm:$0xff]
    %v1331 = vld [vmem:[#allocation8 + $0x18] sm:$0xff]
    %v1332 = vld [vmem:[#allocation8 + $0x20] sm:$0xff]
    %v1333 = vld [vmem:[#allocation8 + $0x28] sm:$0xff]
    %v1334 = vld [vmem:[#allocation8 + $0x30] sm:$0xff]
    %v1335 = vld [vmem:[#allocation8 + $0x38] sm:$0xff]
    %v1336 = vld [vmem:[#allocation8 + $0x40] sm:$0xff]
    %v1337 = vld [vmem:[#allocation8 + $0x48] sm:$0xff]
    %v1338 = vld [vmem:[#allocation8 + $0x50] sm:$0xff]
    %v1339 = vld [vmem:[#allocation8 + $0x58] sm:$0xff]
    %v1340 = vld [vmem:[#allocation8 + $0x60] sm:$0xff]
    %v1341 = vld [vmem:[#allocation8 + $0x68] sm:$0xff]
    %v1342 = vld [vmem:[#allocation8 + $0x70] sm:$0xff]
    %v1343 = vld [vmem:[#allocation8 + $0x78] sm:$0xff]
    %v1344 = vld [vmem:[#allocation8 + $0x80] sm:$0xff]
    %v1345 = vld [vmem:[#allocation8 + $0x88] sm:$0xff]
    %v1346 = vld [vmem:[#allocation8 + $0x90] sm:$0xff]
    %v1347 = vld [vmem:[#allocation8 + $0x98] sm:$0xff]
    %v1348 = vld [vmem:[#allocation8 + $0xa0] sm:$0xff]
    %v1349 = vld [vmem:[#allocation8 + $0xa8] sm:$0xff]
    %v1350 = vld [vmem:[#allocation8 + $0xb0] sm:$0xff]
    %v1351 = vld [vmem:[#allocation8 + $0xb8] sm:$0xff]
    %v1352 = vld [vmem:[#allocation8 + $0xc0] sm:$0xff]
    %v1353 = vld [vmem:[#allocation8 + $0xc8] sm:$0xff]
    %v1354 = vld [vmem:[#allocation8 + $0xd0] sm:$0xff]
    %v1355 = vld [vmem:[#allocation8 + $0xd8] sm:$0xff]
    %v1356 = vld [vmem:[#allocation8 + $0xe0] sm:$0xff]
    %v1357 = vld [vmem:[#allocation8 + $0xe8] sm:$0xff]
    %v1358 = vld [vmem:[#allocation8 + $0xf0] sm:$0xff]
    %v1359 = vld [vmem:[#allocation8 + $0xf8] sm:$0xff]
    %v1360 = vld [vmem:[#allocation8 + $0x100] sm:$0xff]
    %v1361 = vld [vmem:[#allocation8 + $0x108] sm:$0xff]
    %v1362 = vld [vmem:[#allocation8 + $0x110] sm:$0xff]
    %v1363 = vld [vmem:[#allocation8 + $0x118] sm:$0xff]
    %v1364 = vld [vmem:[#allocation8 + $0x120] sm:$0xff]
    %v1365 = vld [vmem:[#allocation8 + $0x128] sm:$0xff]
    %v1366 = vld [vmem:[#allocation8 + $0x130] sm:$0xff]
    %v1367 = vld [vmem:[#allocation8 + $0x138] sm:$0xff]
    %v1368 = vld [vmem:[#allocation8 + $0x140] sm:$0xff]
    %v1369 = vld [vmem:[#allocation8 + $0x148] sm:$0xff]
    %v1370 = vld [vmem:[#allocation8 + $0x150] sm:$0xff]
    %v1371 = vld [vmem:[#allocation8 + $0x158] sm:$0xff]
    %v1372 = vld [vmem:[#allocation8 + $0x160] sm:$0xff]
    %v1373 = vld [vmem:[#allocation8 + $0x168] sm:$0xff]
    %v1374 = vld [vmem:[#allocation8 + $0x170] sm:$0xff]
    %v1375 = vld [vmem:[#allocation8 + $0x178] sm:$0xff]
    %v1376 = vld [vmem:[#allocation8 + $0x180] sm:$0xff]
    %v1377 = vld [vmem:[#allocation8 + $0x188] sm:$0xff]
    %v1378 = vld [vmem:[#allocation8 + $0x190] sm:$0xff]
    %v1379 = vld [vmem:[#allocation8 + $0x198] sm:$0xff]
    %v1380 = vld [vmem:[#allocation8 + $0x1a0] sm:$0xff]
    %v1381 = vld [vmem:[#allocation8 + $0x1a8] sm:$0xff]
    %v1382 = vld [vmem:[#allocation8 + $0x1b0] sm:$0xff]
    %v1383 = vld [vmem:[#allocation8 + $0x1b8] sm:$0xff]
    %v1384 = vld [vmem:[#allocation8 + $0x1c0] sm:$0xff]
    %v1385 = vld [vmem:[#allocation8 + $0x1c8] sm:$0xff]
    %v1386 = vld [vmem:[#allocation8 + $0x1d0] sm:$0xff]
    %v1387 = vld [vmem:[#allocation8 + $0x1d8] sm:$0xff]
    %v1388 = vld [vmem:[#allocation8 + $0x1e0] sm:$0xff]
    %v1389 = vld [vmem:[#allocation8 + $0x1e8] sm:$0xff]
    %v1390 = vld [vmem:[#allocation8 + $0x1f0] sm:$0xff]
    %v1391 = vld [vmem:[#allocation8 + $0x1f8] sm:$0xff]
    %1392 = vmatprep.subr.mxu0 %v1389
    %1393 = vmatpush1.msra.mxu0 %v1388
    %1394 = vmatprep.subr.mxu0 %v1385
    %1395 = vmatpush1.msra.mxu0 %v1384
    %1396 = vmatprep.subr.mxu0 %v1381
    %1397 = vmatpush1.msra.mxu0 %v1380
    %1398 = vmatprep.subr.mxu0 %v1377
    %1399 = vmatpush1.msra.mxu0 %v1376
    %1400 = vmatprep.subr.mxu0 %v1373
    %1401 = vmatpush1.msra.mxu0 %v1372
    %1402 = vmatprep.subr.mxu0 %v1369
    %1403 = vmatpush1.msra.mxu0 %v1368
    %1404 = vmatprep.subr.mxu0 %v1365
    %1405 = vmatpush1.msra.mxu0 %v1364
    %1406 = vmatprep.subr.mxu0 %v1361
    %1407 = vmatpush1.msra.mxu0 %v1360
    %1408 = vmatprep.subr.mxu0 %v1357
    %1409 = vmatpush1.msra.mxu0 %v1356
    %1410 = vmatprep.subr.mxu0 %v1353
    %1411 = vmatpush1.msra.mxu0 %v1352
    %1412 = vmatprep.subr.mxu0 %v1349
    %1413 = vmatpush1.msra.mxu0 %v1348
    %1414 = vmatprep.subr.mxu0 %v1345
    %1415 = vmatpush1.msra.mxu0 %v1344
    %1416 = vmatprep.subr.mxu0 %v1341
    %1417 = vmatpush1.msra.mxu0 %v1340
    %1418 = vmatprep.subr.mxu0 %v1337
    %1419 = vmatpush1.msra.mxu0 %v1336
    %1420 = vmatprep.subr.mxu0 %v1333
    %1421 = vmatpush1.msra.mxu0 %v1332
    %1422 = vmatprep.subr.mxu0 %v1329
    %1423 = vmatpush1.msra.mxu0 %v1328
    %1424 = vmatprep.subr.mxu0 0.0
    %1425 = vmatpush2.msra.mxu0 0.0
    %1426 = vmatprep.subr.mxu0 0.0
    %1427 = vmatpush2.msra.mxu0 0.0
    %1428 = vmatprep.subr.mxu0 0.0
    %1429 = vmatpush2.msra.mxu0 0.0
    %1430 = vmatprep.subr.mxu0 0.0
    %1431 = vmatpush2.msra.mxu0 0.0
    %1432 = vmatprep.subr.mxu0 0.0
    %1433 = vmatpush2.msra.mxu0 0.0
    %1434 = vmatprep.subr.mxu0 0.0
    %1435 = vmatpush2.msra.mxu0 0.0
    %1436 = vmatprep.subr.mxu0 0.0
    %1437 = vmatpush2.msra.mxu0 0.0
    %1438 = vmatprep.subr.mxu0 0.0
    %1439 = vmatpush2.msra.mxu0 0.0
    %1440 = vmatprep.subr.mxu0 0.0
    %1441 = vmatpush2.msra.mxu0 0.0
    %1442 = vmatprep.subr.mxu0 0.0
    %1443 = vmatpush2.msra.mxu0 0.0
    %1444 = vmatprep.subr.mxu0 0.0
    %1445 = vmatpush2.msra.mxu0 0.0
    %1446 = vmatprep.subr.mxu0 0.0
    %1447 = vmatpush2.msra.mxu0 0.0
    %1448 = vmatprep.subr.mxu0 0.0
    %1449 = vmatpush2.msra.mxu0 0.0
    %1450 = vmatprep.subr.mxu0 0.0
    %1451 = vmatpush2.msra.mxu0 0.0
    %1452 = vmatprep.subr.mxu0 0.0
    %1453 = vmatpush2.msra.mxu0 0.0
    %1454 = vmatprep.subr.mxu0 0.0
    %1455 = vmatpush2.msra.mxu0 0.0
    %1456 = vmatprep.mubr.f32.mxu0 0.0
    %1457 = vmatmul.mubr.f32.gmra.mxu0 %v1327
    %v1458 = vpop.f32.mrf.mxu0
    %v1459 = vadd.f32 0.0, %v1458
    %v1460 = vpop.f32.mrf.mxu0
    %v1461 = vadd.f32 0.0, %v1460
    %1462 = vdwg.mxu0
    %1463 = vmatprep.subr.mxu0 %v1391
    %1464 = vmatpush1.msra.mxu0 %v1390
    %1465 = vmatprep.subr.mxu0 %v1387
    %1466 = vmatpush1.msra.mxu0 %v1386
    %1467 = vmatprep.subr.mxu0 %v1383
    %1468 = vmatpush1.msra.mxu0 %v1382
    %1469 = vmatprep.subr.mxu0 %v1379
    %1470 = vmatpush1.msra.mxu0 %v1378
    %1471 = vmatprep.subr.mxu0 %v1375
    %1472 = vmatpush1.msra.mxu0 %v1374
    %1473 = vmatprep.subr.mxu0 %v1371
    %1474 = vmatpush1.msra.mxu0 %v1370
    %1475 = vmatprep.subr.mxu0 %v1367
    %1476 = vmatpush1.msra.mxu0 %v1366
    %1477 = vmatprep.subr.mxu0 %v1363
    %1478 = vmatpush1.msra.mxu0 %v1362
    %1479 = vmatprep.subr.mxu0 %v1359
    %1480 = vmatpush1.msra.mxu0 %v1358
    %1481 = vmatprep.subr.mxu0 %v1355
    %1482 = vmatpush1.msra.mxu0 %v1354
    %1483 = vmatprep.subr.mxu0 %v1351
    %1484 = vmatpush1.msra.mxu0 %v1350
    %1485 = vmatprep.subr.mxu0 %v1347
    %1486 = vmatpush1.msra.mxu0 %v1346
    %1487 = vmatprep.subr.mxu0 %v1343
    %1488 = vmatpush1.msra.mxu0 %v1342
    %1489 = vmatprep.subr.mxu0 %v1339
    %1490 = vmatpush1.msra.mxu0 %v1338
    %1491 = vmatprep.subr.mxu0 %v1335
    %1492 = vmatpush1.msra.mxu0 %v1334
    %1493 = vmatprep.subr.mxu0 %v1331
    %1494 = vmatpush1.msra.mxu0 %v1330
    %1495 = vmatprep.subr.mxu0 0.0
    %1496 = vmatpush2.msra.mxu0 0.0
    %1497 = vmatprep.subr.mxu0 0.0
    %1498 = vmatpush2.msra.mxu0 0.0
    %1499 = vmatprep.subr.mxu0 0.0
    %1500 = vmatpush2.msra.mxu0 0.0
    %1501 = vmatprep.subr.mxu0 0.0
    %1502 = vmatpush2.msra.mxu0 0.0
    %1503 = vmatprep.subr.mxu0 0.0
    %1504 = vmatpush2.msra.mxu0 0.0
    %1505 = vmatprep.subr.mxu0 0.0
    %1506 = vmatpush2.msra.mxu0 0.0
    %1507 = vmatprep.subr.mxu0 0.0
    %1508 = vmatpush2.msra.mxu0 0.0
    %1509 = vmatprep.subr.mxu0 0.0
    %1510 = vmatpush2.msra.mxu0 0.0
    %1511 = vmatprep.subr.mxu0 0.0
    %1512 = vmatpush2.msra.mxu0 0.0
    %1513 = vmatprep.subr.mxu0 0.0
    %1514 = vmatpush2.msra.mxu0 0.0
    %1515 = vmatprep.subr.mxu0 0.0
    %1516 = vmatpush2.msra.mxu0 0.0
    %1517 = vmatprep.subr.mxu0 0.0
    %1518 = vmatpush2.msra.mxu0 0.0
    %1519 = vmatprep.subr.mxu0 0.0
    %1520 = vmatpush2.msra.mxu0 0.0
    %1521 = vmatprep.subr.mxu0 0.0
    %1522 = vmatpush2.msra.mxu0 0.0
    %1523 = vmatprep.subr.mxu0 0.0
    %1524 = vmatpush2.msra.mxu0 0.0
    %1525 = vmatprep.subr.mxu0 0.0
    %1526 = vmatpush2.msra.mxu0 0.0
    %1527 = vmatprep.mubr.f32.mxu0 0.0
    %1528 = vmatmul.mubr.f32.gmra.mxu0 %v1327
    %v1529 = vpop.f32.mrf.mxu0
    %v1530 = vadd.f32 0.0, %v1529
    %v1531 = vpop.f32.mrf.mxu0
    %v1532 = vadd.f32 0.0, %v1531
    %1533 = vdwg.mxu0
    %v1534 = vadd.f32 %v1459, %v90
    %1535 = vst [vmem:[#allocation10 + $0x10] sm:$0xff] %v1534
    %1536 = vmax.xlane.f32.xlu0 %v1534
    %v1537 = vpop.xlane.xlu0 %1536
    %vm1538 = vcmp.eq.f32.partialorder %v1534, %v1537
    %v1539 = vsel %vm1538, %v93, 128
    %v1540 = vand.u32 %v1539, 65535
    %v1541 = vshra.s32 %v1539, 16
    %v1542 = vcvt.s32.f32 %v1540
    %v1543 = vcvt.s32.f32 %v1541
    %1544 = vmin.xlane.f32.xlu0 %v1543
    %v1545 = vpop.xlane.xlu0 %1544
    %vm1546 = vcmp.eq.f32.partialorder %v1543, %v1545
    %v1547 = vsel %vm1546, %v1542, inf
    %1548 = vmin.xlane.f32.xlu0 %v1547
    %v1549 = vpop.xlane.xlu0 %1548
    %v1550 = vcvt.f32.s32 %v1549
    %v1551 = vcvt.f32.s32 %v1545
    %v1552 = vshll.u32 %v1551, 16
    %v1553 = vadd.s32 %v1552, %v1550
    %vm1554 = vcmp.eq.s32.totalorder %v93, %v1553
    %v1555 = vsel %vm1554, 1, 0
    %v1556 = vcvt.s32.f32 %v1555
    %v1557 = vld [vmem:[#allocation7] sm:$0xff]
    %v1558 = vld [vmem:[#allocation7 + $0x8] sm:$0xff]
    %v1559 = vld [vmem:[#allocation7 + $0x10] sm:$0xff]
    %v1560 = vld [vmem:[#allocation7 + $0x18] sm:$0xff]
    %v1561 = vld [vmem:[#allocation7 + $0x20] sm:$0xff]
    %v1562 = vld [vmem:[#allocation7 + $0x28] sm:$0xff]
    %v1563 = vld [vmem:[#allocation7 + $0x30] sm:$0xff]
    %v1564 = vld [vmem:[#allocation7 + $0x38] sm:$0xff]
    %v1565 = vld [vmem:[#allocation7 + $0x40] sm:$0xff]
    %v1566 = vld [vmem:[#allocation7 + $0x48] sm:$0xff]
    %v1567 = vld [vmem:[#allocation7 + $0x50] sm:$0xff]
    %v1568 = vld [vmem:[#allocation7 + $0x58] sm:$0xff]
    %v1569 = vld [vmem:[#allocation7 + $0x60] sm:$0xff]
    %v1570 = vld [vmem:[#allocation7 + $0x68] sm:$0xff]
    %v1571 = vld [vmem:[#allocation7 + $0x70] sm:$0xff]
    %v1572 = vld [vmem:[#allocation7 + $0x78] sm:$0xff]
    %v1573 = vld [vmem:[#allocation7 + $0x80] sm:$0xff]
    %v1574 = vld [vmem:[#allocation7 + $0x88] sm:$0xff]
    %v1575 = vld [vmem:[#allocation7 + $0x90] sm:$0xff]
    %v1576 = vld [vmem:[#allocation7 + $0x98] sm:$0xff]
    %v1577 = vld [vmem:[#allocation7 + $0xa0] sm:$0xff]
    %v1578 = vld [vmem:[#allocation7 + $0xa8] sm:$0xff]
    %v1579 = vld [vmem:[#allocation7 + $0xb0] sm:$0xff]
    %v1580 = vld [vmem:[#allocation7 + $0xb8] sm:$0xff]
    %v1581 = vld [vmem:[#allocation7 + $0xc0] sm:$0xff]
    %v1582 = vld [vmem:[#allocation7 + $0xc8] sm:$0xff]
    %v1583 = vld [vmem:[#allocation7 + $0xd0] sm:$0xff]
    %v1584 = vld [vmem:[#allocation7 + $0xd8] sm:$0xff]
    %v1585 = vld [vmem:[#allocation7 + $0xe0] sm:$0xff]
    %v1586 = vld [vmem:[#allocation7 + $0xe8] sm:$0xff]
    %v1587 = vld [vmem:[#allocation7 + $0xf0] sm:$0xff]
    %v1588 = vld [vmem:[#allocation7 + $0xf8] sm:$0xff]
    %v1589 = vld [vmem:[#allocation7 + $0x100] sm:$0xff]
    %v1590 = vld [vmem:[#allocation7 + $0x108] sm:$0xff]
    %v1591 = vld [vmem:[#allocation7 + $0x110] sm:$0xff]
    %v1592 = vld [vmem:[#allocation7 + $0x118] sm:$0xff]
    %v1593 = vld [vmem:[#allocation7 + $0x120] sm:$0xff]
    %v1594 = vld [vmem:[#allocation7 + $0x128] sm:$0xff]
    %v1595 = vld [vmem:[#allocation7 + $0x130] sm:$0xff]
    %v1596 = vld [vmem:[#allocation7 + $0x138] sm:$0xff]
    %v1597 = vld [vmem:[#allocation7 + $0x140] sm:$0xff]
    %v1598 = vld [vmem:[#allocation7 + $0x148] sm:$0xff]
    %v1599 = vld [vmem:[#allocation7 + $0x150] sm:$0xff]
    %v1600 = vld [vmem:[#allocation7 + $0x158] sm:$0xff]
    %v1601 = vld [vmem:[#allocation7 + $0x160] sm:$0xff]
    %v1602 = vld [vmem:[#allocation7 + $0x168] sm:$0xff]
    %v1603 = vld [vmem:[#allocation7 + $0x170] sm:$0xff]
    %v1604 = vld [vmem:[#allocation7 + $0x178] sm:$0xff]
    %1605 = vmatprep.subr.mxu0 %v1603
    %1606 = vmatpush1.msra.mxu0 %v1602
    %1607 = vmatprep.subr.mxu0 %v1600
    %1608 = vmatpush1.msra.mxu0 %v1599
    %1609 = vmatprep.subr.mxu0 %v1597
    %1610 = vmatpush1.msra.mxu0 %v1596
    %1611 = vmatprep.subr.mxu0 %v1594
    %1612 = vmatpush1.msra.mxu0 %v1593
    %1613 = vmatprep.subr.mxu0 %v1591
    %1614 = vmatpush1.msra.mxu0 %v1590
    %1615 = vmatprep.subr.mxu0 %v1588
    %1616 = vmatpush1.msra.mxu0 %v1587
    %1617 = vmatprep.subr.mxu0 %v1585
    %1618 = vmatpush1.msra.mxu0 %v1584
    %1619 = vmatprep.subr.mxu0 %v1582
    %1620 = vmatpush1.msra.mxu0 %v1581
    %1621 = vmatprep.subr.mxu0 %v1579
    %1622 = vmatpush1.msra.mxu0 %v1578
    %1623 = vmatprep.subr.mxu0 %v1576
    %1624 = vmatpush1.msra.mxu0 %v1575
    %1625 = vmatprep.subr.mxu0 %v1573
    %1626 = vmatpush1.msra.mxu0 %v1572
    %1627 = vmatprep.subr.mxu0 %v1570
    %1628 = vmatpush1.msra.mxu0 %v1569
    %1629 = vmatprep.subr.mxu0 %v1567
    %1630 = vmatpush1.msra.mxu0 %v1566
    %1631 = vmatprep.subr.mxu0 %v1564
    %1632 = vmatpush1.msra.mxu0 %v1563
    %1633 = vmatprep.subr.mxu0 %v1561
    %1634 = vmatpush1.msra.mxu0 %v1560
    %1635 = vmatprep.subr.mxu0 %v1558
    %1636 = vmatpush1.msra.mxu0 %v1557
    %1637 = vmatprep.subr.mxu0 0.0
    %1638 = vmatpush2.msra.mxu0 0.0
    %1639 = vmatprep.subr.mxu0 0.0
    %1640 = vmatpush2.msra.mxu0 0.0
    %1641 = vmatprep.subr.mxu0 0.0
    %1642 = vmatpush2.msra.mxu0 0.0
    %1643 = vmatprep.subr.mxu0 0.0
    %1644 = vmatpush2.msra.mxu0 0.0
    %1645 = vmatprep.subr.mxu0 0.0
    %1646 = vmatpush2.msra.mxu0 0.0
    %1647 = vmatprep.subr.mxu0 0.0
    %1648 = vmatpush2.msra.mxu0 0.0
    %1649 = vmatprep.subr.mxu0 0.0
    %1650 = vmatpush2.msra.mxu0 0.0
    %1651 = vmatprep.subr.mxu0 0.0
    %1652 = vmatpush2.msra.mxu0 0.0
    %1653 = vmatprep.subr.mxu0 0.0
    %1654 = vmatpush2.msra.mxu0 0.0
    %1655 = vmatprep.subr.mxu0 0.0
    %1656 = vmatpush2.msra.mxu0 0.0
    %1657 = vmatprep.subr.mxu0 0.0
    %1658 = vmatpush2.msra.mxu0 0.0
    %1659 = vmatprep.subr.mxu0 0.0
    %1660 = vmatpush2.msra.mxu0 0.0
    %1661 = vmatprep.subr.mxu0 0.0
    %1662 = vmatpush2.msra.mxu0 0.0
    %1663 = vmatprep.subr.mxu0 0.0
    %1664 = vmatpush2.msra.mxu0 0.0
    %1665 = vmatprep.subr.mxu0 0.0
    %1666 = vmatpush2.msra.mxu0 0.0
    %1667 = vmatprep.subr.mxu0 0.0
    %1668 = vmatpush2.msra.mxu0 0.0
    %1669 = vmatprep.mubr.f32.mxu0 0.0
    %1670 = vmatmul.mubr.f32.gmra.mxu0 %v1556
    %v1671 = vpop.f32.mrf.mxu0
    %v1672 = vadd.f32 0.0, %v1671
    %v1673 = vpop.f32.mrf.mxu0
    %v1674 = vadd.f32 0.0, %v1673
    %1675 = vdwg.mxu0
    %1676 = vmatprep.subr.mxu0 0.0
    %1677 = vmatpush1.msra.mxu0 %v1604
    %1678 = vmatprep.subr.mxu0 0.0
    %1679 = vmatpush1.msra.mxu0 %v1601
    %1680 = vmatprep.subr.mxu0 0.0
    %1681 = vmatpush1.msra.mxu0 %v1598
    %1682 = vmatprep.subr.mxu0 0.0
    %1683 = vmatpush1.msra.mxu0 %v1595
    %1684 = vmatprep.subr.mxu0 0.0
    %1685 = vmatpush1.msra.mxu0 %v1592
    %1686 = vmatprep.subr.mxu0 0.0
    %1687 = vmatpush1.msra.mxu0 %v1589
    %1688 = vmatprep.subr.mxu0 0.0
    %1689 = vmatpush1.msra.mxu0 %v1586
    %1690 = vmatprep.subr.mxu0 0.0
    %1691 = vmatpush1.msra.mxu0 %v1583
    %1692 = vmatprep.subr.mxu0 0.0
    %1693 = vmatpush1.msra.mxu0 %v1580
    %1694 = vmatprep.subr.mxu0 0.0
    %1695 = vmatpush1.msra.mxu0 %v1577
    %1696 = vmatprep.subr.mxu0 0.0
    %1697 = vmatpush1.msra.mxu0 %v1574
    %1698 = vmatprep.subr.mxu0 0.0
    %1699 = vmatpush1.msra.mxu0 %v1571
    %1700 = vmatprep.subr.mxu0 0.0
    %1701 = vmatpush1.msra.mxu0 %v1568
    %1702 = vmatprep.subr.mxu0 0.0
    %1703 = vmatpush1.msra.mxu0 %v1565
    %1704 = vmatprep.subr.mxu0 0.0
    %1705 = vmatpush1.msra.mxu0 %v1562
    %1706 = vmatprep.subr.mxu0 0.0
    %1707 = vmatpush1.msra.mxu0 %v1559
    %1708 = vmatprep.subr.mxu0 0.0
    %1709 = vmatpush2.msra.mxu0 0.0
    %1710 = vmatprep.subr.mxu0 0.0
    %1711 = vmatpush2.msra.mxu0 0.0
    %1712 = vmatprep.subr.mxu0 0.0
    %1713 = vmatpush2.msra.mxu0 0.0
    %1714 = vmatprep.subr.mxu0 0.0
    %1715 = vmatpush2.msra.mxu0 0.0
    %1716 = vmatprep.subr.mxu0 0.0
    %1717 = vmatpush2.msra.mxu0 0.0
    %1718 = vmatprep.subr.mxu0 0.0
    %1719 = vmatpush2.msra.mxu0 0.0
    %1720 = vmatprep.subr.mxu0 0.0
    %1721 = vmatpush2.msra.mxu0 0.0
    %1722 = vmatprep.subr.mxu0 0.0
    %1723 = vmatpush2.msra.mxu0 0.0
    %1724 = vmatprep.subr.mxu0 0.0
    %1725 = vmatpush2.msra.mxu0 0.0
    %1726 = vmatprep.subr.mxu0 0.0
    %1727 = vmatpush2.msra.mxu0 0.0
    %1728 = vmatprep.subr.mxu0 0.0
    %1729 = vmatpush2.msra.mxu0 0.0
    %1730 = vmatprep.subr.mxu0 0.0
    %1731 = vmatpush2.msra.mxu0 0.0
    %1732 = vmatprep.subr.mxu0 0.0
    %1733 = vmatpush2.msra.mxu0 0.0
    %1734 = vmatprep.subr.mxu0 0.0
    %1735 = vmatpush2.msra.mxu0 0.0
    %1736 = vmatprep.subr.mxu0 0.0
    %1737 = vmatpush2.msra.mxu0 0.0
    %1738 = vmatprep.subr.mxu0 0.0
    %1739 = vmatpush2.msra.mxu0 0.0
    %1740 = vmatprep.mubr.f32.mxu0 0.0
    %1741 = vmatmul.mubr.f32.gmra.mxu0 %v1556
    %v1742 = vpop.f32.mrf.mxu0
    %v1743 = vadd.f32 0.0, %v1742
    %v1744 = vpop.f32.mrf.mxu0
    %1745 = vdwg.mxu0
    %v1746 = vadd.f32 %v1672, %v1461
    %v1747 = vadd.f32 %v1674, %v1530
    %v1748 = vxor.u32 %v1746, 2147483648
    %v1749 = vxor.u32 %v1747, 2147483648
    %v1750 = vmul.f32 %v1748, 1.442695
    %v1751 = vpow.pop %v1750
    %v1752 = vmul.f32 %v1749, 1.442695
    %v1753 = vpow.pop %v1752
    %v1754 = vadd.f32 %v1751, 1.0
    %v1755 = vadd.f32 %v1753, 1.0
    %v1756 = vrcp.pop %v1754
    %v1757 = vmul.f32 1.0, %v1756
    %v1758 = vrcp.pop %v1755
    %v1759 = vmul.f32 1.0, %v1758
    %v1760 = vadd.f32 %v1532, %v83
    %v1761 = vmul.f32 %v1757, %v1760
    %v1762 = vadd.f32 %v1743, %v1761
    %v1763 = vtanh.pop %v1762
    %v1764 = vsub.f32 1.0, %v1759
    %v1765 = vmul.f32 %v1764, %v1763
    %v1766 = vmul.f32 %v1759, %v1327
    %v1767 = vadd.f32 %v1765, %v1766
    %v1768 = vld [vmem:[#allocation8] sm:$0xff]
    %v1769 = vld [vmem:[#allocation8 + $0x8] sm:$0xff]
    %v1770 = vld [vmem:[#allocation8 + $0x10] sm:$0xff]
    %v1771 = vld [vmem:[#allocation8 + $0x18] sm:$0xff]
    %v1772 = vld [vmem:[#allocation8 + $0x20] sm:$0xff]
    %v1773 = vld [vmem:[#allocation8 + $0x28] sm:$0xff]
    %v1774 = vld [vmem:[#allocation8 + $0x30] sm:$0xff]
    %v1775 = vld [vmem:[#allocation8 + $0x38] sm:$0xff]
    %v1776 = vld [vmem:[#allocation8 + $0x40] sm:$0xff]
    %v1777 = vld [vmem:[#allocation8 + $0x48] sm:$0xff]
    %v1778 = vld [vmem:[#allocation8 + $0x50] sm:$0xff]
    %v1779 = vld [vmem:[#allocation8 + $0x58] sm:$0xff]
    %v1780 = vld [vmem:[#allocation8 + $0x60] sm:$0xff]
    %v1781 = vld [vmem:[#allocation8 + $0x68] sm:$0xff]
    %v1782 = vld [vmem:[#allocation8 + $0x70] sm:$0xff]
    %v1783 = vld [vmem:[#allocation8 + $0x78] sm:$0xff]
    %v1784 = vld [vmem:[#allocation8 + $0x80] sm:$0xff]
    %v1785 = vld [vmem:[#allocation8 + $0x88] sm:$0xff]
    %v1786 = vld [vmem:[#allocation8 + $0x90] sm:$0xff]
    %v1787 = vld [vmem:[#allocation8 + $0x98] sm:$0xff]
    %v1788 = vld [vmem:[#allocation8 + $0xa0] sm:$0xff]
    %v1789 = vld [vmem:[#allocation8 + $0xa8] sm:$0xff]
    %v1790 = vld [vmem:[#allocation8 + $0xb0] sm:$0xff]
    %v1791 = vld [vmem:[#allocation8 + $0xb8] sm:$0xff]
    %v1792 = vld [vmem:[#allocation8 + $0xc0] sm:$0xff]
    %v1793 = vld [vmem:[#allocation8 + $0xc8] sm:$0xff]
    %v1794 = vld [vmem:[#allocation8 + $0xd0] sm:$0xff]
    %v1795 = vld [vmem:[#allocation8 + $0xd8] sm:$0xff]
    %v1796 = vld [vmem:[#allocation8 + $0xe0] sm:$0xff]
    %v1797 = vld [vmem:[#allocation8 + $0xe8] sm:$0xff]
    %v1798 = vld [vmem:[#allocation8 + $0xf0] sm:$0xff]
    %v1799 = vld [vmem:[#allocation8 + $0xf8] sm:$0xff]
    %v1800 = vld [vmem:[#allocation8 + $0x100] sm:$0xff]
    %v1801 = vld [vmem:[#allocation8 + $0x108] sm:$0xff]
    %v1802 = vld [vmem:[#allocation8 + $0x110] sm:$0xff]
    %v1803 = vld [vmem:[#allocation8 + $0x118] sm:$0xff]
    %v1804 = vld [vmem:[#allocation8 + $0x120] sm:$0xff]
    %v1805 = vld [vmem:[#allocation8 + $0x128] sm:$0xff]
    %v1806 = vld [vmem:[#allocation8 + $0x130] sm:$0xff]
    %v1807 = vld [vmem:[#allocation8 + $0x138] sm:$0xff]
    %v1808 = vld [vmem:[#allocation8 + $0x140] sm:$0xff]
    %v1809 = vld [vmem:[#allocation8 + $0x148] sm:$0xff]
    %v1810 = vld [vmem:[#allocation8 + $0x150] sm:$0xff]
    %v1811 = vld [vmem:[#allocation8 + $0x158] sm:$0xff]
    %v1812 = vld [vmem:[#allocation8 + $0x160] sm:$0xff]
    %v1813 = vld [vmem:[#allocation8 + $0x168] sm:$0xff]
    %v1814 = vld [vmem:[#allocation8 + $0x170] sm:$0xff]
    %v1815 = vld [vmem:[#allocation8 + $0x178] sm:$0xff]
    %v1816 = vld [vmem:[#allocation8 + $0x180] sm:$0xff]
    %v1817 = vld [vmem:[#allocation8 + $0x188] sm:$0xff]
    %v1818 = vld [vmem:[#allocation8 + $0x190] sm:$0xff]
    %v1819 = vld [vmem:[#allocation8 + $0x198] sm:$0xff]
    %v1820 = vld [vmem:[#allocation8 + $0x1a0] sm:$0xff]
    %v1821 = vld [vmem:[#allocation8 + $0x1a8] sm:$0xff]
    %v1822 = vld [vmem:[#allocation8 + $0x1b0] sm:$0xff]
    %v1823 = vld [vmem:[#allocation8 + $0x1b8] sm:$0xff]
    %v1824 = vld [vmem:[#allocation8 + $0x1c0] sm:$0xff]
    %v1825 = vld [vmem:[#allocation8 + $0x1c8] sm:$0xff]
    %v1826 = vld [vmem:[#allocation8 + $0x1d0] sm:$0xff]
    %v1827 = vld [vmem:[#allocation8 + $0x1d8] sm:$0xff]
    %v1828 = vld [vmem:[#allocation8 + $0x1e0] sm:$0xff]
    %v1829 = vld [vmem:[#allocation8 + $0x1e8] sm:$0xff]
    %v1830 = vld [vmem:[#allocation8 + $0x1f0] sm:$0xff]
    %v1831 = vld [vmem:[#allocation8 + $0x1f8] sm:$0xff]
    %1832 = vmatprep.subr.mxu0 %v1829
    %1833 = vmatpush1.msra.mxu0 %v1828
    %1834 = vmatprep.subr.mxu0 %v1825
    %1835 = vmatpush1.msra.mxu0 %v1824
    %1836 = vmatprep.subr.mxu0 %v1821
    %1837 = vmatpush1.msra.mxu0 %v1820
    %1838 = vmatprep.subr.mxu0 %v1817
    %1839 = vmatpush1.msra.mxu0 %v1816
    %1840 = vmatprep.subr.mxu0 %v1813
    %1841 = vmatpush1.msra.mxu0 %v1812
    %1842 = vmatprep.subr.mxu0 %v1809
    %1843 = vmatpush1.msra.mxu0 %v1808
    %1844 = vmatprep.subr.mxu0 %v1805
    %1845 = vmatpush1.msra.mxu0 %v1804
    %1846 = vmatprep.subr.mxu0 %v1801
    %1847 = vmatpush1.msra.mxu0 %v1800
    %1848 = vmatprep.subr.mxu0 %v1797
    %1849 = vmatpush1.msra.mxu0 %v1796
    %1850 = vmatprep.subr.mxu0 %v1793
    %1851 = vmatpush1.msra.mxu0 %v1792
    %1852 = vmatprep.subr.mxu0 %v1789
    %1853 = vmatpush1.msra.mxu0 %v1788
    %1854 = vmatprep.subr.mxu0 %v1785
    %1855 = vmatpush1.msra.mxu0 %v1784
    %1856 = vmatprep.subr.mxu0 %v1781
    %1857 = vmatpush1.msra.mxu0 %v1780
    %1858 = vmatprep.subr.mxu0 %v1777
    %1859 = vmatpush1.msra.mxu0 %v1776
    %1860 = vmatprep.subr.mxu0 %v1773
    %1861 = vmatpush1.msra.mxu0 %v1772
    %1862 = vmatprep.subr.mxu0 %v1769
    %1863 = vmatpush1.msra.mxu0 %v1768
    %1864 = vmatprep.subr.mxu0 0.0
    %1865 = vmatpush2.msra.mxu0 0.0
    %1866 = vmatprep.subr.mxu0 0.0
    %1867 = vmatpush2.msra.mxu0 0.0
    %1868 = vmatprep.subr.mxu0 0.0
    %1869 = vmatpush2.msra.mxu0 0.0
    %1870 = vmatprep.subr.mxu0 0.0
    %1871 = vmatpush2.msra.mxu0 0.0
    %1872 = vmatprep.subr.mxu0 0.0
    %1873 = vmatpush2.msra.mxu0 0.0
    %1874 = vmatprep.subr.mxu0 0.0
    %1875 = vmatpush2.msra.mxu0 0.0
    %1876 = vmatprep.subr.mxu0 0.0
    %1877 = vmatpush2.msra.mxu0 0.0
    %1878 = vmatprep.subr.mxu0 0.0
    %1879 = vmatpush2.msra.mxu0 0.0
    %1880 = vmatprep.subr.mxu0 0.0
    %1881 = vmatpush2.msra.mxu0 0.0
    %1882 = vmatprep.subr.mxu0 0.0
    %1883 = vmatpush2.msra.mxu0 0.0
    %1884 = vmatprep.subr.mxu0 0.0
    %1885 = vmatpush2.msra.mxu0 0.0
    %1886 = vmatprep.subr.mxu0 0.0
    %1887 = vmatpush2.msra.mxu0 0.0
    %1888 = vmatprep.subr.mxu0 0.0
    %1889 = vmatpush2.msra.mxu0 0.0
    %1890 = vmatprep.subr.mxu0 0.0
    %1891 = vmatpush2.msra.mxu0 0.0
    %1892 = vmatprep.subr.mxu0 0.0
    %1893 = vmatpush2.msra.mxu0 0.0
    %1894 = vmatprep.subr.mxu0 0.0
    %1895 = vmatpush2.msra.mxu0 0.0
    %1896 = vmatprep.mubr.f32.mxu0 0.0
    %1897 = vmatmul.mubr.f32.gmra.mxu0 %v1767
    %v1898 = vpop.f32.mrf.mxu0
    %v1899 = vadd.f32 0.0, %v1898
    %v1900 = vpop.f32.mrf.mxu0
    %v1901 = vadd.f32 0.0, %v1900
    %1902 = vdwg.mxu0
    %1903 = vmatprep.subr.mxu0 %v1831
    %1904 = vmatpush1.msra.mxu0 %v1830
    %1905 = vmatprep.subr.mxu0 %v1827
    %1906 = vmatpush1.msra.mxu0 %v1826
    %1907 = vmatprep.subr.mxu0 %v1823
    %1908 = vmatpush1.msra.mxu0 %v1822
    %1909 = vmatprep.subr.mxu0 %v1819
    %1910 = vmatpush1.msra.mxu0 %v1818
    %1911 = vmatprep.subr.mxu0 %v1815
    %1912 = vmatpush1.msra.mxu0 %v1814
    %1913 = vmatprep.subr.mxu0 %v1811
    %1914 = vmatpush1.msra.mxu0 %v1810
    %1915 = vmatprep.subr.mxu0 %v1807
    %1916 = vmatpush1.msra.mxu0 %v1806
    %1917 = vmatprep.subr.mxu0 %v1803
    %1918 = vmatpush1.msra.mxu0 %v1802
    %1919 = vmatprep.subr.mxu0 %v1799
    %1920 = vmatpush1.msra.mxu0 %v1798
    %1921 = vmatprep.subr.mxu0 %v1795
    %1922 = vmatpush1.msra.mxu0 %v1794
    %1923 = vmatprep.subr.mxu0 %v1791
    %1924 = vmatpush1.msra.mxu0 %v1790
    %1925 = vmatprep.subr.mxu0 %v1787
    %1926 = vmatpush1.msra.mxu0 %v1786
    %1927 = vmatprep.subr.mxu0 %v1783
    %1928 = vmatpush1.msra.mxu0 %v1782
    %1929 = vmatprep.subr.mxu0 %v1779
    %1930 = vmatpush1.msra.mxu0 %v1778
    %1931 = vmatprep.subr.mxu0 %v1775
    %1932 = vmatpush1.msra.mxu0 %v1774
    %1933 = vmatprep.subr.mxu0 %v1771
    %1934 = vmatpush1.msra.mxu0 %v1770
    %1935 = vmatprep.subr.mxu0 0.0
    %1936 = vmatpush2.msra.mxu0 0.0
    %1937 = vmatprep.subr.mxu0 0.0
    %1938 = vmatpush2.msra.mxu0 0.0
    %1939 = vmatprep.subr.mxu0 0.0
    %1940 = vmatpush2.msra.mxu0 0.0
    %1941 = vmatprep.subr.mxu0 0.0
    %1942 = vmatpush2.msra.mxu0 0.0
    %1943 = vmatprep.subr.mxu0 0.0
    %1944 = vmatpush2.msra.mxu0 0.0
    %1945 = vmatprep.subr.mxu0 0.0
    %1946 = vmatpush2.msra.mxu0 0.0
    %1947 = vmatprep.subr.mxu0 0.0
    %1948 = vmatpush2.msra.mxu0 0.0
    %1949 = vmatprep.subr.mxu0 0.0
    %1950 = vmatpush2.msra.mxu0 0.0
    %1951 = vmatprep.subr.mxu0 0.0
    %1952 = vmatpush2.msra.mxu0 0.0
    %1953 = vmatprep.subr.mxu0 0.0
    %1954 = vmatpush2.msra.mxu0 0.0
    %1955 = vmatprep.subr.mxu0 0.0
    %1956 = vmatpush2.msra.mxu0 0.0
    %1957 = vmatprep.subr.mxu0 0.0
    %1958 = vmatpush2.msra.mxu0 0.0
    %1959 = vmatprep.subr.mxu0 0.0
    %1960 = vmatpush2.msra.mxu0 0.0
    %1961 = vmatprep.subr.mxu0 0.0
    %1962 = vmatpush2.msra.mxu0 0.0
    %1963 = vmatprep.subr.mxu0 0.0
    %1964 = vmatpush2.msra.mxu0 0.0
    %1965 = vmatprep.subr.mxu0 0.0
    %1966 = vmatpush2.msra.mxu0 0.0
    %1967 = vmatprep.mubr.f32.mxu0 0.0
    %1968 = vmatmul.mubr.f32.gmra.mxu0 %v1767
    %v1969 = vpop.f32.mrf.mxu0
    %v1970 = vadd.f32 0.0, %v1969
    %v1971 = vpop.f32.mrf.mxu0
    %v1972 = vadd.f32 0.0, %v1971
    %1973 = vdwg.mxu0
    %v1974 = vadd.f32 %v1899, %v90
    %1975 = vst [vmem:[#allocation10 + $0x18] sm:$0xff] %v1974
    %1976 = vmax.xlane.f32.xlu0 %v1974
    %v1977 = vpop.xlane.xlu0 %1976
    %vm1978 = vcmp.eq.f32.partialorder %v1974, %v1977
    %v1979 = vsel %vm1978, %v93, 128
    %v1980 = vand.u32 %v1979, 65535
    %v1981 = vshra.s32 %v1979, 16
    %v1982 = vcvt.s32.f32 %v1980
    %v1983 = vcvt.s32.f32 %v1981
    %1984 = vmin.xlane.f32.xlu0 %v1983
    %v1985 = vpop.xlane.xlu0 %1984
    %vm1986 = vcmp.eq.f32.partialorder %v1983, %v1985
    %v1987 = vsel %vm1986, %v1982, inf
    %1988 = vmin.xlane.f32.xlu0 %v1987
    %v1989 = vpop.xlane.xlu0 %1988
    %v1990 = vcvt.f32.s32 %v1989
    %v1991 = vcvt.f32.s32 %v1985
    %v1992 = vshll.u32 %v1991, 16
    %v1993 = vadd.s32 %v1992, %v1990
    %vm1994 = vcmp.eq.s32.totalorder %v93, %v1993
    %v1995 = vsel %vm1994, 1, 0
    %v1996 = vcvt.s32.f32 %v1995
    %v1997 = vld [vmem:[#allocation7] sm:$0xff]
    %v1998 = vld [vmem:[#allocation7 + $0x8] sm:$0xff]
    %v1999 = vld [vmem:[#allocation7 + $0x10] sm:$0xff]
    %v2000 = vld [vmem:[#allocation7 + $0x18] sm:$0xff]
    %v2001 = vld [vmem:[#allocation7 + $0x20] sm:$0xff]
    %v2002 = vld [vmem:[#allocation7 + $0x28] sm:$0xff]
    %v2003 = vld [vmem:[#allocation7 + $0x30] sm:$0xff]
    %v2004 = vld [vmem:[#allocation7 + $0x38] sm:$0xff]
    %v2005 = vld [vmem:[#allocation7 + $0x40] sm:$0xff]
    %v2006 = vld [vmem:[#allocation7 + $0x48] sm:$0xff]
    %v2007 = vld [vmem:[#allocation7 + $0x50] sm:$0xff]
    %v2008 = vld [vmem:[#allocation7 + $0x58] sm:$0xff]
    %v2009 = vld [vmem:[#allocation7 + $0x60] sm:$0xff]
    %v2010 = vld [vmem:[#allocation7 + $0x68] sm:$0xff]
    %v2011 = vld [vmem:[#allocation7 + $0x70] sm:$0xff]
    %v2012 = vld [vmem:[#allocation7 + $0x78] sm:$0xff]
    %v2013 = vld [vmem:[#allocation7 + $0x80] sm:$0xff]
    %v2014 = vld [vmem:[#allocation7 + $0x88] sm:$0xff]
    %v2015 = vld [vmem:[#allocation7 + $0x90] sm:$0xff]
    %v2016 = vld [vmem:[#allocation7 + $0x98] sm:$0xff]
    %v2017 = vld [vmem:[#allocation7 + $0xa0] sm:$0xff]
    %v2018 = vld [vmem:[#allocation7 + $0xa8] sm:$0xff]
    %v2019 = vld [vmem:[#allocation7 + $0xb0] sm:$0xff]
    %v2020 = vld [vmem:[#allocation7 + $0xb8] sm:$0xff]
    %v2021 = vld [vmem:[#allocation7 + $0xc0] sm:$0xff]
    %v2022 = vld [vmem:[#allocation7 + $0xc8] sm:$0xff]
    %v2023 = vld [vmem:[#allocation7 + $0xd0] sm:$0xff]
    %v2024 = vld [vmem:[#allocation7 + $0xd8] sm:$0xff]
    %v2025 = vld [vmem:[#allocation7 + $0xe0] sm:$0xff]
    %v2026 = vld [vmem:[#allocation7 + $0xe8] sm:$0xff]
    %v2027 = vld [vmem:[#allocation7 + $0xf0] sm:$0xff]
    %v2028 = vld [vmem:[#allocation7 + $0xf8] sm:$0xff]
    %v2029 = vld [vmem:[#allocation7 + $0x100] sm:$0xff]
    %v2030 = vld [vmem:[#allocation7 + $0x108] sm:$0xff]
    %v2031 = vld [vmem:[#allocation7 + $0x110] sm:$0xff]
    %v2032 = vld [vmem:[#allocation7 + $0x118] sm:$0xff]
    %v2033 = vld [vmem:[#allocation7 + $0x120] sm:$0xff]
    %v2034 = vld [vmem:[#allocation7 + $0x128] sm:$0xff]
    %v2035 = vld [vmem:[#allocation7 + $0x130] sm:$0xff]
    %v2036 = vld [vmem:[#allocation7 + $0x138] sm:$0xff]
    %v2037 = vld [vmem:[#allocation7 + $0x140] sm:$0xff]
    %v2038 = vld [vmem:[#allocation7 + $0x148] sm:$0xff]
    %v2039 = vld [vmem:[#allocation7 + $0x150] sm:$0xff]
    %v2040 = vld [vmem:[#allocation7 + $0x158] sm:$0xff]
    %v2041 = vld [vmem:[#allocation7 + $0x160] sm:$0xff]
    %v2042 = vld [vmem:[#allocation7 + $0x168] sm:$0xff]
    %v2043 = vld [vmem:[#allocation7 + $0x170] sm:$0xff]
    %v2044 = vld [vmem:[#allocation7 + $0x178] sm:$0xff]
    %2045 = vmatprep.subr.mxu0 %v2043
    %2046 = vmatpush1.msra.mxu0 %v2042
    %2047 = vmatprep.subr.mxu0 %v2040
    %2048 = vmatpush1.msra.mxu0 %v2039
    %2049 = vmatprep.subr.mxu0 %v2037
    %2050 = vmatpush1.msra.mxu0 %v2036
    %2051 = vmatprep.subr.mxu0 %v2034
    %2052 = vmatpush1.msra.mxu0 %v2033
    %2053 = vmatprep.subr.mxu0 %v2031
    %2054 = vmatpush1.msra.mxu0 %v2030
    %2055 = vmatprep.subr.mxu0 %v2028
    %2056 = vmatpush1.msra.mxu0 %v2027
    %2057 = vmatprep.subr.mxu0 %v2025
    %2058 = vmatpush1.msra.mxu0 %v2024
    %2059 = vmatprep.subr.mxu0 %v2022
    %2060 = vmatpush1.msra.mxu0 %v2021
    %2061 = vmatprep.subr.mxu0 %v2019
    %2062 = vmatpush1.msra.mxu0 %v2018
    %2063 = vmatprep.subr.mxu0 %v2016
    %2064 = vmatpush1.msra.mxu0 %v2015
    %2065 = vmatprep.subr.mxu0 %v2013
    %2066 = vmatpush1.msra.mxu0 %v2012
    %2067 = vmatprep.subr.mxu0 %v2010
    %2068 = vmatpush1.msra.mxu0 %v2009
    %2069 = vmatprep.subr.mxu0 %v2007
    %2070 = vmatpush1.msra.mxu0 %v2006
    %2071 = vmatprep.subr.mxu0 %v2004
    %2072 = vmatpush1.msra.mxu0 %v2003
    %2073 = vmatprep.subr.mxu0 %v2001
    %2074 = vmatpush1.msra.mxu0 %v2000
    %2075 = vmatprep.subr.mxu0 %v1998
    %2076 = vmatpush1.msra.mxu0 %v1997
    %2077 = vmatprep.subr.mxu0 0.0
    %2078 = vmatpush2.msra.mxu0 0.0
    %2079 = vmatprep.subr.mxu0 0.0
    %2080 = vmatpush2.msra.mxu0 0.0
    %2081 = vmatprep.subr.mxu0 0.0
    %2082 = vmatpush2.msra.mxu0 0.0
    %2083 = vmatprep.subr.mxu0 0.0
    %2084 = vmatpush2.msra.mxu0 0.0
    %2085 = vmatprep.subr.mxu0 0.0
    %2086 = vmatpush2.msra.mxu0 0.0
    %2087 = vmatprep.subr.mxu0 0.0
    %2088 = vmatpush2.msra.mxu0 0.0
    %2089 = vmatprep.subr.mxu0 0.0
    %2090 = vmatpush2.msra.mxu0 0.0
    %2091 = vmatprep.subr.mxu0 0.0
    %2092 = vmatpush2.msra.mxu0 0.0
    %2093 = vmatprep.subr.mxu0 0.0
    %2094 = vmatpush2.msra.mxu0 0.0
    %2095 = vmatprep.subr.mxu0 0.0
    %2096 = vmatpush2.msra.mxu0 0.0
    %2097 = vmatprep.subr.mxu0 0.0
    %2098 = vmatpush2.msra.mxu0 0.0
    %2099 = vmatprep.subr.mxu0 0.0
    %2100 = vmatpush2.msra.mxu0 0.0
    %2101 = vmatprep.subr.mxu0 0.0
    %2102 = vmatpush2.msra.mxu0 0.0
    %2103 = vmatprep.subr.mxu0 0.0
    %2104 = vmatpush2.msra.mxu0 0.0
    %2105 = vmatprep.subr.mxu0 0.0
    %2106 = vmatpush2.msra.mxu0 0.0
    %2107 = vmatprep.subr.mxu0 0.0
    %2108 = vmatpush2.msra.mxu0 0.0
    %2109 = vmatprep.mubr.f32.mxu0 0.0
    %2110 = vmatmul.mubr.f32.gmra.mxu0 %v1996
    %v2111 = vpop.f32.mrf.mxu0
    %v2112 = vadd.f32 0.0, %v2111
    %v2113 = vpop.f32.mrf.mxu0
    %v2114 = vadd.f32 0.0, %v2113
    %2115 = vdwg.mxu0
    %2116 = vmatprep.subr.mxu0 0.0
    %2117 = vmatpush1.msra.mxu0 %v2044
    %2118 = vmatprep.subr.mxu0 0.0
    %2119 = vmatpush1.msra.mxu0 %v2041
    %2120 = vmatprep.subr.mxu0 0.0
    %2121 = vmatpush1.msra.mxu0 %v2038
    %2122 = vmatprep.subr.mxu0 0.0
    %2123 = vmatpush1.msra.mxu0 %v2035
    %2124 = vmatprep.subr.mxu0 0.0
    %2125 = vmatpush1.msra.mxu0 %v2032
    %2126 = vmatprep.subr.mxu0 0.0
    %2127 = vmatpush1.msra.mxu0 %v2029
    %2128 = vmatprep.subr.mxu0 0.0
    %2129 = vmatpush1.msra.mxu0 %v2026
    %2130 = vmatprep.subr.mxu0 0.0
    %2131 = vmatpush1.msra.mxu0 %v2023
    %2132 = vmatprep.subr.mxu0 0.0
    %2133 = vmatpush1.msra.mxu0 %v2020
    %2134 = vmatprep.subr.mxu0 0.0
    %2135 = vmatpush1.msra.mxu0 %v2017
    %2136 = vmatprep.subr.mxu0 0.0
    %2137 = vmatpush1.msra.mxu0 %v2014
    %2138 = vmatprep.subr.mxu0 0.0
    %2139 = vmatpush1.msra.mxu0 %v2011
    %2140 = vmatprep.subr.mxu0 0.0
    %2141 = vmatpush1.msra.mxu0 %v2008
    %2142 = vmatprep.subr.mxu0 0.0
    %2143 = vmatpush1.msra.mxu0 %v2005
    %2144 = vmatprep.subr.mxu0 0.0
    %2145 = vmatpush1.msra.mxu0 %v2002
    %2146 = vmatprep.subr.mxu0 0.0
    %2147 = vmatpush1.msra.mxu0 %v1999
    %2148 = vmatprep.subr.mxu0 0.0
    %2149 = vmatpush2.msra.mxu0 0.0
    %2150 = vmatprep.subr.mxu0 0.0
    %2151 = vmatpush2.msra.mxu0 0.0
    %2152 = vmatprep.subr.mxu0 0.0
    %2153 = vmatpush2.msra.mxu0 0.0
    %2154 = vmatprep.subr.mxu0 0.0
    %2155 = vmatpush2.msra.mxu0 0.0
    %2156 = vmatprep.subr.mxu0 0.0
    %2157 = vmatpush2.msra.mxu0 0.0
    %2158 = vmatprep.subr.mxu0 0.0
    %2159 = vmatpush2.msra.mxu0 0.0
    %2160 = vmatprep.subr.mxu0 0.0
    %2161 = vmatpush2.msra.mxu0 0.0
    %2162 = vmatprep.subr.mxu0 0.0
    %2163 = vmatpush2.msra.mxu0 0.0
    %2164 = vmatprep.subr.mxu0 0.0
    %2165 = vmatpush2.msra.mxu0 0.0
    %2166 = vmatprep.subr.mxu0 0.0
    %2167 = vmatpush2.msra.mxu0 0.0
    %2168 = vmatprep.subr.mxu0 0.0
    %2169 = vmatpush2.msra.mxu0 0.0
    %2170 = vmatprep.subr.mxu0 0.0
    %2171 = vmatpush2.msra.mxu0 0.0
    %2172 = vmatprep.subr.mxu0 0.0
    %2173 = vmatpush2.msra.mxu0 0.0
    %2174 = vmatprep.subr.mxu0 0.0
    %2175 = vmatpush2.msra.mxu0 0.0
    %2176 = vmatprep.subr.mxu0 0.0
    %2177 = vmatpush2.msra.mxu0 0.0
    %2178 = vmatprep.subr.mxu0 0.0
    %2179 = vmatpush2.msra.mxu0 0.0
    %2180 = vmatprep.mubr.f32.mxu0 0.0
    %2181 = vmatmul.mubr.f32.gmra.mxu0 %v1996
    %v2182 = vpop.f32.mrf.mxu0
    %v2183 = vadd.f32 0.0, %v2182
    %v2184 = vpop.f32.mrf.mxu0
    %2185 = vdwg.mxu0
    %v2186 = vadd.f32 %v2112, %v1901
    %v2187 = vadd.f32 %v2114, %v1970
    %v2188 = vxor.u32 %v2186, 2147483648
    %v2189 = vxor.u32 %v2187, 2147483648
    %v2190 = vmul.f32 %v2188, 1.442695
    %v2191 = vpow.pop %v2190
    %v2192 = vmul.f32 %v2189, 1.442695
    %v2193 = vpow.pop %v2192
    %v2194 = vadd.f32 %v2191, 1.0
    %v2195 = vadd.f32 %v2193, 1.0
    %v2196 = vrcp.pop %v2194
    %v2197 = vmul.f32 1.0, %v2196
    %v2198 = vrcp.pop %v2195
    %v2199 = vmul.f32 1.0, %v2198
    %v2200 = vadd.f32 %v1972, %v83
    %v2201 = vmul.f32 %v2197, %v2200
    %v2202 = vadd.f32 %v2183, %v2201
    %v2203 = vtanh.pop %v2202
    %v2204 = vsub.f32 1.0, %v2199
    %v2205 = vmul.f32 %v2204, %v2203
    %v2206 = vmul.f32 %v2199, %v1767
    %v2207 = vadd.f32 %v2205, %v2206
    %v2208 = vld [vmem:[#allocation8] sm:$0xff]
    %v2209 = vld [vmem:[#allocation8 + $0x8] sm:$0xff]
    %v2210 = vld [vmem:[#allocation8 + $0x10] sm:$0xff]
    %v2211 = vld [vmem:[#allocation8 + $0x18] sm:$0xff]
    %v2212 = vld [vmem:[#allocation8 + $0x20] sm:$0xff]
    %v2213 = vld [vmem:[#allocation8 + $0x28] sm:$0xff]
    %v2214 = vld [vmem:[#allocation8 + $0x30] sm:$0xff]
    %v2215 = vld [vmem:[#allocation8 + $0x38] sm:$0xff]
    %v2216 = vld [vmem:[#allocation8 + $0x40] sm:$0xff]
    %v2217 = vld [vmem:[#allocation8 + $0x48] sm:$0xff]
    %v2218 = vld [vmem:[#allocation8 + $0x50] sm:$0xff]
    %v2219 = vld [vmem:[#allocation8 + $0x58] sm:$0xff]
    %v2220 = vld [vmem:[#allocation8 + $0x60] sm:$0xff]
    %v2221 = vld [vmem:[#allocation8 + $0x68] sm:$0xff]
    %v2222 = vld [vmem:[#allocation8 + $0x70] sm:$0xff]
    %v2223 = vld [vmem:[#allocation8 + $0x78] sm:$0xff]
    %v2224 = vld [vmem:[#allocation8 + $0x80] sm:$0xff]
    %v2225 = vld [vmem:[#allocation8 + $0x88] sm:$0xff]
    %v2226 = vld [vmem:[#allocation8 + $0x90] sm:$0xff]
    %v2227 = vld [vmem:[#allocation8 + $0x98] sm:$0xff]
    %v2228 = vld [vmem:[#allocation8 + $0xa0] sm:$0xff]
    %v2229 = vld [vmem:[#allocation8 + $0xa8] sm:$0xff]
    %v2230 = vld [vmem:[#allocation8 + $0xb0] sm:$0xff]
    %v2231 = vld [vmem:[#allocation8 + $0xb8] sm:$0xff]
    %v2232 = vld [vmem:[#allocation8 + $0xc0] sm:$0xff]
    %v2233 = vld [vmem:[#allocation8 + $0xc8] sm:$0xff]
    %v2234 = vld [vmem:[#allocation8 + $0xd0] sm:$0xff]
    %v2235 = vld [vmem:[#allocation8 + $0xd8] sm:$0xff]
    %v2236 = vld [vmem:[#allocation8 + $0xe0] sm:$0xff]
    %v2237 = vld [vmem:[#allocation8 + $0xe8] sm:$0xff]
    %v2238 = vld [vmem:[#allocation8 + $0xf0] sm:$0xff]
    %v2239 = vld [vmem:[#allocation8 + $0xf8] sm:$0xff]
    %v2240 = vld [vmem:[#allocation8 + $0x100] sm:$0xff]
    %v2241 = vld [vmem:[#allocation8 + $0x108] sm:$0xff]
    %v2242 = vld [vmem:[#allocation8 + $0x110] sm:$0xff]
    %v2243 = vld [vmem:[#allocation8 + $0x118] sm:$0xff]
    %v2244 = vld [vmem:[#allocation8 + $0x120] sm:$0xff]
    %v2245 = vld [vmem:[#allocation8 + $0x128] sm:$0xff]
    %v2246 = vld [vmem:[#allocation8 + $0x130] sm:$0xff]
    %v2247 = vld [vmem:[#allocation8 + $0x138] sm:$0xff]
    %v2248 = vld [vmem:[#allocation8 + $0x140] sm:$0xff]
    %v2249 = vld [vmem:[#allocation8 + $0x148] sm:$0xff]
    %v2250 = vld [vmem:[#allocation8 + $0x150] sm:$0xff]
    %v2251 = vld [vmem:[#allocation8 + $0x158] sm:$0xff]
    %v2252 = vld [vmem:[#allocation8 + $0x160] sm:$0xff]
    %v2253 = vld [vmem:[#allocation8 + $0x168] sm:$0xff]
    %v2254 = vld [vmem:[#allocation8 + $0x170] sm:$0xff]
    %v2255 = vld [vmem:[#allocation8 + $0x178] sm:$0xff]
    %v2256 = vld [vmem:[#allocation8 + $0x180] sm:$0xff]
    %v2257 = vld [vmem:[#allocation8 + $0x188] sm:$0xff]
    %v2258 = vld [vmem:[#allocation8 + $0x190] sm:$0xff]
    %v2259 = vld [vmem:[#allocation8 + $0x198] sm:$0xff]
    %v2260 = vld [vmem:[#allocation8 + $0x1a0] sm:$0xff]
    %v2261 = vld [vmem:[#allocation8 + $0x1a8] sm:$0xff]
    %v2262 = vld [vmem:[#allocation8 + $0x1b0] sm:$0xff]
    %v2263 = vld [vmem:[#allocation8 + $0x1b8] sm:$0xff]
    %v2264 = vld [vmem:[#allocation8 + $0x1c0] sm:$0xff]
    %v2265 = vld [vmem:[#allocation8 + $0x1c8] sm:$0xff]
    %v2266 = vld [vmem:[#allocation8 + $0x1d0] sm:$0xff]
    %v2267 = vld [vmem:[#allocation8 + $0x1d8] sm:$0xff]
    %v2268 = vld [vmem:[#allocation8 + $0x1e0] sm:$0xff]
    %v2269 = vld [vmem:[#allocation8 + $0x1e8] sm:$0xff]
    %v2270 = vld [vmem:[#allocation8 + $0x1f0] sm:$0xff]
    %v2271 = vld [vmem:[#allocation8 + $0x1f8] sm:$0xff]
    %2272 = vmatprep.subr.mxu0 %v2269
    %2273 = vmatpush1.msra.mxu0 %v2268
    %2274 = vmatprep.subr.mxu0 %v2265
    %2275 = vmatpush1.msra.mxu0 %v2264
    %2276 = vmatprep.subr.mxu0 %v2261
    %2277 = vmatpush1.msra.mxu0 %v2260
    %2278 = vmatprep.subr.mxu0 %v2257
    %2279 = vmatpush1.msra.mxu0 %v2256
    %2280 = vmatprep.subr.mxu0 %v2253
    %2281 = vmatpush1.msra.mxu0 %v2252
    %2282 = vmatprep.subr.mxu0 %v2249
    %2283 = vmatpush1.msra.mxu0 %v2248
    %2284 = vmatprep.subr.mxu0 %v2245
    %2285 = vmatpush1.msra.mxu0 %v2244
    %2286 = vmatprep.subr.mxu0 %v2241
    %2287 = vmatpush1.msra.mxu0 %v2240
    %2288 = vmatprep.subr.mxu0 %v2237
    %2289 = vmatpush1.msra.mxu0 %v2236
    %2290 = vmatprep.subr.mxu0 %v2233
    %2291 = vmatpush1.msra.mxu0 %v2232
    %2292 = vmatprep.subr.mxu0 %v2229
    %2293 = vmatpush1.msra.mxu0 %v2228
    %2294 = vmatprep.subr.mxu0 %v2225
    %2295 = vmatpush1.msra.mxu0 %v2224
    %2296 = vmatprep.subr.mxu0 %v2221
    %2297 = vmatpush1.msra.mxu0 %v2220
    %2298 = vmatprep.subr.mxu0 %v2217
    %2299 = vmatpush1.msra.mxu0 %v2216
    %2300 = vmatprep.subr.mxu0 %v2213
    %2301 = vmatpush1.msra.mxu0 %v2212
    %2302 = vmatprep.subr.mxu0 %v2209
    %2303 = vmatpush1.msra.mxu0 %v2208
    %2304 = vmatprep.subr.mxu0 0.0
    %2305 = vmatpush2.msra.mxu0 0.0
    %2306 = vmatprep.subr.mxu0 0.0
    %2307 = vmatpush2.msra.mxu0 0.0
    %2308 = vmatprep.subr.mxu0 0.0
    %2309 = vmatpush2.msra.mxu0 0.0
    %2310 = vmatprep.subr.mxu0 0.0
    %2311 = vmatpush2.msra.mxu0 0.0
    %2312 = vmatprep.subr.mxu0 0.0
    %2313 = vmatpush2.msra.mxu0 0.0
    %2314 = vmatprep.subr.mxu0 0.0
    %2315 = vmatpush2.msra.mxu0 0.0
    %2316 = vmatprep.subr.mxu0 0.0
    %2317 = vmatpush2.msra.mxu0 0.0
    %2318 = vmatprep.subr.mxu0 0.0
    %2319 = vmatpush2.msra.mxu0 0.0
    %2320 = vmatprep.subr.mxu0 0.0
    %2321 = vmatpush2.msra.mxu0 0.0
    %2322 = vmatprep.subr.mxu0 0.0
    %2323 = vmatpush2.msra.mxu0 0.0
    %2324 = vmatprep.subr.mxu0 0.0
    %2325 = vmatpush2.msra.mxu0 0.0
    %2326 = vmatprep.subr.mxu0 0.0
    %2327 = vmatpush2.msra.mxu0 0.0
    %2328 = vmatprep.subr.mxu0 0.0
    %2329 = vmatpush2.msra.mxu0 0.0
    %2330 = vmatprep.subr.mxu0 0.0
    %2331 = vmatpush2.msra.mxu0 0.0
    %2332 = vmatprep.subr.mxu0 0.0
    %2333 = vmatpush2.msra.mxu0 0.0
    %2334 = vmatprep.subr.mxu0 0.0
    %2335 = vmatpush2.msra.mxu0 0.0
    %2336 = vmatprep.mubr.f32.mxu0 0.0
    %2337 = vmatmul.mubr.f32.gmra.mxu0 %v2207
    %v2338 = vpop.f32.mrf.mxu0
    %v2339 = vadd.f32 0.0, %v2338
    %v2340 = vpop.f32.mrf.mxu0
    %v2341 = vadd.f32 0.0, %v2340
    %2342 = vdwg.mxu0
    %2343 = vmatprep.subr.mxu0 %v2271
    %2344 = vmatpush1.msra.mxu0 %v2270
    %2345 = vmatprep.subr.mxu0 %v2267
    %2346 = vmatpush1.msra.mxu0 %v2266
    %2347 = vmatprep.subr.mxu0 %v2263
    %2348 = vmatpush1.msra.mxu0 %v2262
    %2349 = vmatprep.subr.mxu0 %v2259
    %2350 = vmatpush1.msra.mxu0 %v2258
    %2351 = vmatprep.subr.mxu0 %v2255
    %2352 = vmatpush1.msra.mxu0 %v2254
    %2353 = vmatprep.subr.mxu0 %v2251
    %2354 = vmatpush1.msra.mxu0 %v2250
    %2355 = vmatprep.subr.mxu0 %v2247
    %2356 = vmatpush1.msra.mxu0 %v2246
    %2357 = vmatprep.subr.mxu0 %v2243
    %2358 = vmatpush1.msra.mxu0 %v2242
    %2359 = vmatprep.subr.mxu0 %v2239
    %2360 = vmatpush1.msra.mxu0 %v2238
    %2361 = vmatprep.subr.mxu0 %v2235
    %2362 = vmatpush1.msra.mxu0 %v2234
    %2363 = vmatprep.subr.mxu0 %v2231
    %2364 = vmatpush1.msra.mxu0 %v2230
    %2365 = vmatprep.subr.mxu0 %v2227
    %2366 = vmatpush1.msra.mxu0 %v2226
    %2367 = vmatprep.subr.mxu0 %v2223
    %2368 = vmatpush1.msra.mxu0 %v2222
    %2369 = vmatprep.subr.mxu0 %v2219
    %2370 = vmatpush1.msra.mxu0 %v2218
    %2371 = vmatprep.subr.mxu0 %v2215
    %2372 = vmatpush1.msra.mxu0 %v2214
    %2373 = vmatprep.subr.mxu0 %v2211
    %2374 = vmatpush1.msra.mxu0 %v2210
    %2375 = vmatprep.subr.mxu0 0.0
    %2376 = vmatpush2.msra.mxu0 0.0
    %2377 = vmatprep.subr.mxu0 0.0
    %2378 = vmatpush2.msra.mxu0 0.0
    %2379 = vmatprep.subr.mxu0 0.0
    %2380 = vmatpush2.msra.mxu0 0.0
    %2381 = vmatprep.subr.mxu0 0.0
    %2382 = vmatpush2.msra.mxu0 0.0
    %2383 = vmatprep.subr.mxu0 0.0
    %2384 = vmatpush2.msra.mxu0 0.0
    %2385 = vmatprep.subr.mxu0 0.0
    %2386 = vmatpush2.msra.mxu0 0.0
    %2387 = vmatprep.subr.mxu0 0.0
    %2388 = vmatpush2.msra.mxu0 0.0
    %2389 = vmatprep.subr.mxu0 0.0
    %2390 = vmatpush2.msra.mxu0 0.0
    %2391 = vmatprep.subr.mxu0 0.0
    %2392 = vmatpush2.msra.mxu0 0.0
    %2393 = vmatprep.subr.mxu0 0.0
    %2394 = vmatpush2.msra.mxu0 0.0
    %2395 = vmatprep.subr.mxu0 0.0
    %2396 = vmatpush2.msra.mxu0 0.0
    %2397 = vmatprep.subr.mxu0 0.0
    %2398 = vmatpush2.msra.mxu0 0.0
    %2399 = vmatprep.subr.mxu0 0.0
    %2400 = vmatpush2.msra.mxu0 0.0
    %2401 = vmatprep.subr.mxu0 0.0
    %2402 = vmatpush2.msra.mxu0 0.0
    %2403 = vmatprep.subr.mxu0 0.0
    %2404 = vmatpush2.msra.mxu0 0.0
    %2405 = vmatprep.subr.mxu0 0.0
    %2406 = vmatpush2.msra.mxu0 0.0
    %2407 = vmatprep.mubr.f32.mxu0 0.0
    %2408 = vmatmul.mubr.f32.gmra.mxu0 %v2207
    %v2409 = vpop.f32.mrf.mxu0
    %v2410 = vadd.f32 0.0, %v2409
    %v2411 = vpop.f32.mrf.mxu0
    %v2412 = vadd.f32 0.0, %v2411
    %2413 = vdwg.mxu0
    %v2414 = vadd.f32 %v2339, %v90
    %2415 = vst [vmem:[#allocation10 + $0x20] sm:$0xff] %v2414
    %2416 = vmax.xlane.f32.xlu0 %v2414
    %v2417 = vpop.xlane.xlu0 %2416
    %vm2418 = vcmp.eq.f32.partialorder %v2414, %v2417
    %v2419 = vsel %vm2418, %v93, 128
    %v2420 = vand.u32 %v2419, 65535
    %v2421 = vshra.s32 %v2419, 16
    %v2422 = vcvt.s32.f32 %v2420
    %v2423 = vcvt.s32.f32 %v2421
    %2424 = vmin.xlane.f32.xlu0 %v2423
    %v2425 = vpop.xlane.xlu0 %2424
    %vm2426 = vcmp.eq.f32.partialorder %v2423, %v2425
    %v2427 = vsel %vm2426, %v2422, inf
    %2428 = vmin.xlane.f32.xlu0 %v2427
    %v2429 = vpop.xlane.xlu0 %2428
    %v2430 = vcvt.f32.s32 %v2429
    %v2431 = vcvt.f32.s32 %v2425
    %v2432 = vshll.u32 %v2431, 16
    %v2433 = vadd.s32 %v2432, %v2430
    %vm2434 = vcmp.eq.s32.totalorder %v93, %v2433
    %v2435 = vsel %vm2434, 1, 0
    %v2436 = vcvt.s32.f32 %v2435
    %v2437 = vld [vmem:[#allocation7] sm:$0xff]
    %v2438 = vld [vmem:[#allocation7 + $0x8] sm:$0xff]
    %v2439 = vld [vmem:[#allocation7 + $0x10] sm:$0xff]
    %v2440 = vld [vmem:[#allocation7 + $0x18] sm:$0xff]
    %v2441 = vld [vmem:[#allocation7 + $0x20] sm:$0xff]
    %v2442 = vld [vmem:[#allocation7 + $0x28] sm:$0xff]
    %v2443 = vld [vmem:[#allocation7 + $0x30] sm:$0xff]
    %v2444 = vld [vmem:[#allocation7 + $0x38] sm:$0xff]
    %v2445 = vld [vmem:[#allocation7 + $0x40] sm:$0xff]
    %v2446 = vld [vmem:[#allocation7 + $0x48] sm:$0xff]
    %v2447 = vld [vmem:[#allocation7 + $0x50] sm:$0xff]
    %v2448 = vld [vmem:[#allocation7 + $0x58] sm:$0xff]
    %v2449 = vld [vmem:[#allocation7 + $0x60] sm:$0xff]
    %v2450 = vld [vmem:[#allocation7 + $0x68] sm:$0xff]
    %v2451 = vld [vmem:[#allocation7 + $0x70] sm:$0xff]
    %v2452 = vld [vmem:[#allocation7 + $0x78] sm:$0xff]
    %v2453 = vld [vmem:[#allocation7 + $0x80] sm:$0xff]
    %v2454 = vld [vmem:[#allocation7 + $0x88] sm:$0xff]
    %v2455 = vld [vmem:[#allocation7 + $0x90] sm:$0xff]
    %v2456 = vld [vmem:[#allocation7 + $0x98] sm:$0xff]
    %v2457 = vld [vmem:[#allocation7 + $0xa0] sm:$0xff]
    %v2458 = vld [vmem:[#allocation7 + $0xa8] sm:$0xff]
    %v2459 = vld [vmem:[#allocation7 + $0xb0] sm:$0xff]
    %v2460 = vld [vmem:[#allocation7 + $0xb8] sm:$0xff]
    %v2461 = vld [vmem:[#allocation7 + $0xc0] sm:$0xff]
    %v2462 = vld [vmem:[#allocation7 + $0xc8] sm:$0xff]
    %v2463 = vld [vmem:[#allocation7 + $0xd0] sm:$0xff]
    %v2464 = vld [vmem:[#allocation7 + $0xd8] sm:$0xff]
    %v2465 = vld [vmem:[#allocation7 + $0xe0] sm:$0xff]
    %v2466 = vld [vmem:[#allocation7 + $0xe8] sm:$0xff]
    %v2467 = vld [vmem:[#allocation7 + $0xf0] sm:$0xff]
    %v2468 = vld [vmem:[#allocation7 + $0xf8] sm:$0xff]
    %v2469 = vld [vmem:[#allocation7 + $0x100] sm:$0xff]
    %v2470 = vld [vmem:[#allocation7 + $0x108] sm:$0xff]
    %v2471 = vld [vmem:[#allocation7 + $0x110] sm:$0xff]
    %v2472 = vld [vmem:[#allocation7 + $0x118] sm:$0xff]
    %v2473 = vld [vmem:[#allocation7 + $0x120] sm:$0xff]
    %v2474 = vld [vmem:[#allocation7 + $0x128] sm:$0xff]
    %v2475 = vld [vmem:[#allocation7 + $0x130] sm:$0xff]
    %v2476 = vld [vmem:[#allocation7 + $0x138] sm:$0xff]
    %v2477 = vld [vmem:[#allocation7 + $0x140] sm:$0xff]
    %v2478 = vld [vmem:[#allocation7 + $0x148] sm:$0xff]
    %v2479 = vld [vmem:[#allocation7 + $0x150] sm:$0xff]
    %v2480 = vld [vmem:[#allocation7 + $0x158] sm:$0xff]
    %v2481 = vld [vmem:[#allocation7 + $0x160] sm:$0xff]
    %v2482 = vld [vmem:[#allocation7 + $0x168] sm:$0xff]
    %v2483 = vld [vmem:[#allocation7 + $0x170] sm:$0xff]
    %v2484 = vld [vmem:[#allocation7 + $0x178] sm:$0xff]
    %2485 = vmatprep.subr.mxu0 %v2483
    %2486 = vmatpush1.msra.mxu0 %v2482
    %2487 = vmatprep.subr.mxu0 %v2480
    %2488 = vmatpush1.msra.mxu0 %v2479
    %2489 = vmatprep.subr.mxu0 %v2477
    %2490 = vmatpush1.msra.mxu0 %v2476
    %2491 = vmatprep.subr.mxu0 %v2474
    %2492 = vmatpush1.msra.mxu0 %v2473
    %2493 = vmatprep.subr.mxu0 %v2471
    %2494 = vmatpush1.msra.mxu0 %v2470
    %2495 = vmatprep.subr.mxu0 %v2468
    %2496 = vmatpush1.msra.mxu0 %v2467
    %2497 = vmatprep.subr.mxu0 %v2465
    %2498 = vmatpush1.msra.mxu0 %v2464
    %2499 = vmatprep.subr.mxu0 %v2462
    %2500 = vmatpush1.msra.mxu0 %v2461
    %2501 = vmatprep.subr.mxu0 %v2459
    %2502 = vmatpush1.msra.mxu0 %v2458
    %2503 = vmatprep.subr.mxu0 %v2456
    %2504 = vmatpush1.msra.mxu0 %v2455
    %2505 = vmatprep.subr.mxu0 %v2453
    %2506 = vmatpush1.msra.mxu0 %v2452
    %2507 = vmatprep.subr.mxu0 %v2450
    %2508 = vmatpush1.msra.mxu0 %v2449
    %2509 = vmatprep.subr.mxu0 %v2447
    %2510 = vmatpush1.msra.mxu0 %v2446
    %2511 = vmatprep.subr.mxu0 %v2444
    %2512 = vmatpush1.msra.mxu0 %v2443
    %2513 = vmatprep.subr.mxu0 %v2441
    %2514 = vmatpush1.msra.mxu0 %v2440
    %2515 = vmatprep.subr.mxu0 %v2438
    %2516 = vmatpush1.msra.mxu0 %v2437
    %2517 = vmatprep.subr.mxu0 0.0
    %2518 = vmatpush2.msra.mxu0 0.0
    %2519 = vmatprep.subr.mxu0 0.0
    %2520 = vmatpush2.msra.mxu0 0.0
    %2521 = vmatprep.subr.mxu0 0.0
    %2522 = vmatpush2.msra.mxu0 0.0
    %2523 = vmatprep.subr.mxu0 0.0
    %2524 = vmatpush2.msra.mxu0 0.0
    %2525 = vmatprep.subr.mxu0 0.0
    %2526 = vmatpush2.msra.mxu0 0.0
    %2527 = vmatprep.subr.mxu0 0.0
    %2528 = vmatpush2.msra.mxu0 0.0
    %2529 = vmatprep.subr.mxu0 0.0
    %2530 = vmatpush2.msra.mxu0 0.0
    %2531 = vmatprep.subr.mxu0 0.0
    %2532 = vmatpush2.msra.mxu0 0.0
    %2533 = vmatprep.subr.mxu0 0.0
    %2534 = vmatpush2.msra.mxu0 0.0
    %2535 = vmatprep.subr.mxu0 0.0
    %2536 = vmatpush2.msra.mxu0 0.0
    %2537 = vmatprep.subr.mxu0 0.0
    %2538 = vmatpush2.msra.mxu0 0.0
    %2539 = vmatprep.subr.mxu0 0.0
    %2540 = vmatpush2.msra.mxu0 0.0
    %2541 = vmatprep.subr.mxu0 0.0
    %2542 = vmatpush2.msra.mxu0 0.0
    %2543 = vmatprep.subr.mxu0 0.0
    %2544 = vmatpush2.msra.mxu0 0.0
    %2545 = vmatprep.subr.mxu0 0.0
    %2546 = vmatpush2.msra.mxu0 0.0
    %2547 = vmatprep.subr.mxu0 0.0
    %2548 = vmatpush2.msra.mxu0 0.0
    %2549 = vmatprep.mubr.f32.mxu0 0.0
    %2550 = vmatmul.mubr.f32.gmra.mxu0 %v2436
    %v2551 = vpop.f32.mrf.mxu0
    %v2552 = vadd.f32 0.0, %v2551
    %v2553 = vpop.f32.mrf.mxu0
    %v2554 = vadd.f32 0.0, %v2553
    %2555 = vdwg.mxu0
    %2556 = vmatprep.subr.mxu0 0.0
    %2557 = vmatpush1.msra.mxu0 %v2484
    %2558 = vmatprep.subr.mxu0 0.0
    %2559 = vmatpush1.msra.mxu0 %v2481
    %2560 = vmatprep.subr.mxu0 0.0
    %2561 = vmatpush1.msra.mxu0 %v2478
    %2562 = vmatprep.subr.mxu0 0.0
    %2563 = vmatpush1.msra.mxu0 %v2475
    %2564 = vmatprep.subr.mxu0 0.0
    %2565 = vmatpush1.msra.mxu0 %v2472
    %2566 = vmatprep.subr.mxu0 0.0
    %2567 = vmatpush1.msra.mxu0 %v2469
    %2568 = vmatprep.subr.mxu0 0.0
    %2569 = vmatpush1.msra.mxu0 %v2466
    %2570 = vmatprep.subr.mxu0 0.0
    %2571 = vmatpush1.msra.mxu0 %v2463
    %2572 = vmatprep.subr.mxu0 0.0
    %2573 = vmatpush1.msra.mxu0 %v2460
    %2574 = vmatprep.subr.mxu0 0.0
    %2575 = vmatpush1.msra.mxu0 %v2457
    %2576 = vmatprep.subr.mxu0 0.0
    %2577 = vmatpush1.msra.mxu0 %v2454
    %2578 = vmatprep.subr.mxu0 0.0
    %2579 = vmatpush1.msra.mxu0 %v2451
    %2580 = vmatprep.subr.mxu0 0.0
    %2581 = vmatpush1.msra.mxu0 %v2448
    %2582 = vmatprep.subr.mxu0 0.0
    %2583 = vmatpush1.msra.mxu0 %v2445
    %2584 = vmatprep.subr.mxu0 0.0
    %2585 = vmatpush1.msra.mxu0 %v2442
    %2586 = vmatprep.subr.mxu0 0.0
    %2587 = vmatpush1.msra.mxu0 %v2439
    %2588 = vmatprep.subr.mxu0 0.0
    %2589 = vmatpush2.msra.mxu0 0.0
    %2590 = vmatprep.subr.mxu0 0.0
    %2591 = vmatpush2.msra.mxu0 0.0
    %2592 = vmatprep.subr.mxu0 0.0
    %2593 = vmatpush2.msra.mxu0 0.0
    %2594 = vmatprep.subr.mxu0 0.0
    %2595 = vmatpush2.msra.mxu0 0.0
    %2596 = vmatprep.subr.mxu0 0.0
    %2597 = vmatpush2.msra.mxu0 0.0
    %2598 = vmatprep.subr.mxu0 0.0
    %2599 = vmatpush2.msra.mxu0 0.0
    %2600 = vmatprep.subr.mxu0 0.0
    %2601 = vmatpush2.msra.mxu0 0.0
    %2602 = vmatprep.subr.mxu0 0.0
    %2603 = vmatpush2.msra.mxu0 0.0
    %2604 = vmatprep.subr.mxu0 0.0
    %2605 = vmatpush2.msra.mxu0 0.0
    %2606 = vmatprep.subr.mxu0 0.0
    %2607 = vmatpush2.msra.mxu0 0.0
    %2608 = vmatprep.subr.mxu0 0.0
    %2609 = vmatpush2.msra.mxu0 0.0
    %2610 = vmatprep.subr.mxu0 0.0
    %2611 = vmatpush2.msra.mxu0 0.0
    %2612 = vmatprep.subr.mxu0 0.0
    %2613 = vmatpush2.msra.mxu0 0.0
    %2614 = vmatprep.subr.mxu0 0.0
    %2615 = vmatpush2.msra.mxu0 0.0
    %2616 = vmatprep.subr.mxu0 0.0
    %2617 = vmatpush2.msra.mxu0 0.0
    %2618 = vmatprep.subr.mxu0 0.0
    %2619 = vmatpush2.msra.mxu0 0.0
    %2620 = vmatprep.mubr.f32.mxu0 0.0
    %2621 = vmatmul.mubr.f32.gmra.mxu0 %v2436
    %v2622 = vpop.f32.mrf.mxu0
    %v2623 = vadd.f32 0.0, %v2622
    %v2624 = vpop.f32.mrf.mxu0
    %2625 = vdwg.mxu0
    %v2626 = vadd.f32 %v2552, %v2341
    %v2627 = vadd.f32 %v2554, %v2410
    %v2628 = vxor.u32 %v2626, 2147483648
    %v2629 = vxor.u32 %v2627, 2147483648
    %v2630 = vmul.f32 %v2628, 1.442695
    %v2631 = vpow.pop %v2630
    %v2632 = vmul.f32 %v2629, 1.442695
    %v2633 = vpow.pop %v2632
    %v2634 = vadd.f32 %v2631, 1.0
    %v2635 = vadd.f32 %v2633, 1.0
    %v2636 = vrcp.pop %v2634
    %v2637 = vmul.f32 1.0, %v2636
    %v2638 = vrcp.pop %v2635
    %v2639 = vmul.f32 1.0, %v2638
    %v2640 = vadd.f32 %v2412, %v83
    %v2641 = vmul.f32 %v2637, %v2640
    %v2642 = vadd.f32 %v2623, %v2641
    %v2643 = vtanh.pop %v2642
    %v2644 = vsub.f32 1.0, %v2639
    %v2645 = vmul.f32 %v2644, %v2643
    %v2646 = vmul.f32 %v2639, %v2207
    %v2647 = vadd.f32 %v2645, %v2646
    %v2648 = vld [vmem:[#allocation8] sm:$0xff]
    %v2649 = vld [vmem:[#allocation8 + $0x8] sm:$0xff]
    %v2650 = vld [vmem:[#allocation8 + $0x10] sm:$0xff]
    %v2651 = vld [vmem:[#allocation8 + $0x18] sm:$0xff]
    %v2652 = vld [vmem:[#allocation8 + $0x20] sm:$0xff]
    %v2653 = vld [vmem:[#allocation8 + $0x28] sm:$0xff]
    %v2654 = vld [vmem:[#allocation8 + $0x30] sm:$0xff]
    %v2655 = vld [vmem:[#allocation8 + $0x38] sm:$0xff]
    %v2656 = vld [vmem:[#allocation8 + $0x40] sm:$0xff]
    %v2657 = vld [vmem:[#allocation8 + $0x48] sm:$0xff]
    %v2658 = vld [vmem:[#allocation8 + $0x50] sm:$0xff]
    %v2659 = vld [vmem:[#allocation8 + $0x58] sm:$0xff]
    %v2660 = vld [vmem:[#allocation8 + $0x60] sm:$0xff]
    %v2661 = vld [vmem:[#allocation8 + $0x68] sm:$0xff]
    %v2662 = vld [vmem:[#allocation8 + $0x70] sm:$0xff]
    %v2663 = vld [vmem:[#allocation8 + $0x78] sm:$0xff]
    %v2664 = vld [vmem:[#allocation8 + $0x80] sm:$0xff]
    %v2665 = vld [vmem:[#allocation8 + $0x88] sm:$0xff]
    %v2666 = vld [vmem:[#allocation8 + $0x90] sm:$0xff]
    %v2667 = vld [vmem:[#allocation8 + $0x98] sm:$0xff]
    %v2668 = vld [vmem:[#allocation8 + $0xa0] sm:$0xff]
    %v2669 = vld [vmem:[#allocation8 + $0xa8] sm:$0xff]
    %v2670 = vld [vmem:[#allocation8 + $0xb0] sm:$0xff]
    %v2671 = vld [vmem:[#allocation8 + $0xb8] sm:$0xff]
    %v2672 = vld [vmem:[#allocation8 + $0xc0] sm:$0xff]
    %v2673 = vld [vmem:[#allocation8 + $0xc8] sm:$0xff]
    %v2674 = vld [vmem:[#allocation8 + $0xd0] sm:$0xff]
    %v2675 = vld [vmem:[#allocation8 + $0xd8] sm:$0xff]
    %v2676 = vld [vmem:[#allocation8 + $0xe0] sm:$0xff]
    %v2677 = vld [vmem:[#allocation8 + $0xe8] sm:$0xff]
    %v2678 = vld [vmem:[#allocation8 + $0xf0] sm:$0xff]
    %v2679 = vld [vmem:[#allocation8 + $0xf8] sm:$0xff]
    %v2680 = vld [vmem:[#allocation8 + $0x100] sm:$0xff]
    %v2681 = vld [vmem:[#allocation8 + $0x108] sm:$0xff]
    %v2682 = vld [vmem:[#allocation8 + $0x110] sm:$0xff]
    %v2683 = vld [vmem:[#allocation8 + $0x118] sm:$0xff]
    %v2684 = vld [vmem:[#allocation8 + $0x120] sm:$0xff]
    %v2685 = vld [vmem:[#allocation8 + $0x128] sm:$0xff]
    %v2686 = vld [vmem:[#allocation8 + $0x130] sm:$0xff]
    %v2687 = vld [vmem:[#allocation8 + $0x138] sm:$0xff]
    %v2688 = vld [vmem:[#allocation8 + $0x140] sm:$0xff]
    %v2689 = vld [vmem:[#allocation8 + $0x148] sm:$0xff]
    %v2690 = vld [vmem:[#allocation8 + $0x150] sm:$0xff]
    %v2691 = vld [vmem:[#allocation8 + $0x158] sm:$0xff]
    %v2692 = vld [vmem:[#allocation8 + $0x160] sm:$0xff]
    %v2693 = vld [vmem:[#allocation8 + $0x168] sm:$0xff]
    %v2694 = vld [vmem:[#allocation8 + $0x170] sm:$0xff]
    %v2695 = vld [vmem:[#allocation8 + $0x178] sm:$0xff]
    %v2696 = vld [vmem:[#allocation8 + $0x180] sm:$0xff]
    %v2697 = vld [vmem:[#allocation8 + $0x188] sm:$0xff]
    %v2698 = vld [vmem:[#allocation8 + $0x190] sm:$0xff]
    %v2699 = vld [vmem:[#allocation8 + $0x198] sm:$0xff]
    %v2700 = vld [vmem:[#allocation8 + $0x1a0] sm:$0xff]
    %v2701 = vld [vmem:[#allocation8 + $0x1a8] sm:$0xff]
    %v2702 = vld [vmem:[#allocation8 + $0x1b0] sm:$0xff]
    %v2703 = vld [vmem:[#allocation8 + $0x1b8] sm:$0xff]
    %v2704 = vld [vmem:[#allocation8 + $0x1c0] sm:$0xff]
    %v2705 = vld [vmem:[#allocation8 + $0x1c8] sm:$0xff]
    %v2706 = vld [vmem:[#allocation8 + $0x1d0] sm:$0xff]
    %v2707 = vld [vmem:[#allocation8 + $0x1d8] sm:$0xff]
    %v2708 = vld [vmem:[#allocation8 + $0x1e0] sm:$0xff]
    %v2709 = vld [vmem:[#allocation8 + $0x1e8] sm:$0xff]
    %v2710 = vld [vmem:[#allocation8 + $0x1f0] sm:$0xff]
    %v2711 = vld [vmem:[#allocation8 + $0x1f8] sm:$0xff]
    %2712 = vmatprep.subr.mxu0 %v2709
    %2713 = vmatpush1.msra.mxu0 %v2708
    %2714 = vmatprep.subr.mxu0 %v2705
    %2715 = vmatpush1.msra.mxu0 %v2704
    %2716 = vmatprep.subr.mxu0 %v2701
    %2717 = vmatpush1.msra.mxu0 %v2700
    %2718 = vmatprep.subr.mxu0 %v2697
    %2719 = vmatpush1.msra.mxu0 %v2696
    %2720 = vmatprep.subr.mxu0 %v2693
    %2721 = vmatpush1.msra.mxu0 %v2692
    %2722 = vmatprep.subr.mxu0 %v2689
    %2723 = vmatpush1.msra.mxu0 %v2688
    %2724 = vmatprep.subr.mxu0 %v2685
    %2725 = vmatpush1.msra.mxu0 %v2684
    %2726 = vmatprep.subr.mxu0 %v2681
    %2727 = vmatpush1.msra.mxu0 %v2680
    %2728 = vmatprep.subr.mxu0 %v2677
    %2729 = vmatpush1.msra.mxu0 %v2676
    %2730 = vmatprep.subr.mxu0 %v2673
    %2731 = vmatpush1.msra.mxu0 %v2672
    %2732 = vmatprep.subr.mxu0 %v2669
    %2733 = vmatpush1.msra.mxu0 %v2668
    %2734 = vmatprep.subr.mxu0 %v2665
    %2735 = vmatpush1.msra.mxu0 %v2664
    %2736 = vmatprep.subr.mxu0 %v2661
    %2737 = vmatpush1.msra.mxu0 %v2660
    %2738 = vmatprep.subr.mxu0 %v2657
    %2739 = vmatpush1.msra.mxu0 %v2656
    %2740 = vmatprep.subr.mxu0 %v2653
    %2741 = vmatpush1.msra.mxu0 %v2652
    %2742 = vmatprep.subr.mxu0 %v2649
    %2743 = vmatpush1.msra.mxu0 %v2648
    %2744 = vmatprep.subr.mxu0 0.0
    %2745 = vmatpush2.msra.mxu0 0.0
    %2746 = vmatprep.subr.mxu0 0.0
    %2747 = vmatpush2.msra.mxu0 0.0
    %2748 = vmatprep.subr.mxu0 0.0
    %2749 = vmatpush2.msra.mxu0 0.0
    %2750 = vmatprep.subr.mxu0 0.0
    %2751 = vmatpush2.msra.mxu0 0.0
    %2752 = vmatprep.subr.mxu0 0.0
    %2753 = vmatpush2.msra.mxu0 0.0
    %2754 = vmatprep.subr.mxu0 0.0
    %2755 = vmatpush2.msra.mxu0 0.0
    %2756 = vmatprep.subr.mxu0 0.0
    %2757 = vmatpush2.msra.mxu0 0.0
    %2758 = vmatprep.subr.mxu0 0.0
    %2759 = vmatpush2.msra.mxu0 0.0
    %2760 = vmatprep.subr.mxu0 0.0
    %2761 = vmatpush2.msra.mxu0 0.0
    %2762 = vmatprep.subr.mxu0 0.0
    %2763 = vmatpush2.msra.mxu0 0.0
    %2764 = vmatprep.subr.mxu0 0.0
    %2765 = vmatpush2.msra.mxu0 0.0
    %2766 = vmatprep.subr.mxu0 0.0
    %2767 = vmatpush2.msra.mxu0 0.0
    %2768 = vmatprep.subr.mxu0 0.0
    %2769 = vmatpush2.msra.mxu0 0.0
    %2770 = vmatprep.subr.mxu0 0.0
    %2771 = vmatpush2.msra.mxu0 0.0
    %2772 = vmatprep.subr.mxu0 0.0
    %2773 = vmatpush2.msra.mxu0 0.0
    %2774 = vmatprep.subr.mxu0 0.0
    %2775 = vmatpush2.msra.mxu0 0.0
    %2776 = vmatprep.mubr.f32.mxu0 0.0
    %2777 = vmatmul.mubr.f32.gmra.mxu0 %v2647
    %v2778 = vpop.f32.mrf.mxu0
    %v2779 = vadd.f32 0.0, %v2778
    %v2780 = vpop.f32.mrf.mxu0
    %v2781 = vadd.f32 0.0, %v2780
    %2782 = vdwg.mxu0
    %2783 = vmatprep.subr.mxu0 %v2711
    %2784 = vmatpush1.msra.mxu0 %v2710
    %2785 = vmatprep.subr.mxu0 %v2707
    %2786 = vmatpush1.msra.mxu0 %v2706
    %2787 = vmatprep.subr.mxu0 %v2703
    %2788 = vmatpush1.msra.mxu0 %v2702
    %2789 = vmatprep.subr.mxu0 %v2699
    %2790 = vmatpush1.msra.mxu0 %v2698
    %2791 = vmatprep.subr.mxu0 %v2695
    %2792 = vmatpush1.msra.mxu0 %v2694
    %2793 = vmatprep.subr.mxu0 %v2691
    %2794 = vmatpush1.msra.mxu0 %v2690
    %2795 = vmatprep.subr.mxu0 %v2687
    %2796 = vmatpush1.msra.mxu0 %v2686
    %2797 = vmatprep.subr.mxu0 %v2683
    %2798 = vmatpush1.msra.mxu0 %v2682
    %2799 = vmatprep.subr.mxu0 %v2679
    %2800 = vmatpush1.msra.mxu0 %v2678
    %2801 = vmatprep.subr.mxu0 %v2675
    %2802 = vmatpush1.msra.mxu0 %v2674
    %2803 = vmatprep.subr.mxu0 %v2671
    %2804 = vmatpush1.msra.mxu0 %v2670
    %2805 = vmatprep.subr.mxu0 %v2667
    %2806 = vmatpush1.msra.mxu0 %v2666
    %2807 = vmatprep.subr.mxu0 %v2663
    %2808 = vmatpush1.msra.mxu0 %v2662
    %2809 = vmatprep.subr.mxu0 %v2659
    %2810 = vmatpush1.msra.mxu0 %v2658
    %2811 = vmatprep.subr.mxu0 %v2655
    %2812 = vmatpush1.msra.mxu0 %v2654
    %2813 = vmatprep.subr.mxu0 %v2651
    %2814 = vmatpush1.msra.mxu0 %v2650
    %2815 = vmatprep.subr.mxu0 0.0
    %2816 = vmatpush2.msra.mxu0 0.0
    %2817 = vmatprep.subr.mxu0 0.0
    %2818 = vmatpush2.msra.mxu0 0.0
    %2819 = vmatprep.subr.mxu0 0.0
    %2820 = vmatpush2.msra.mxu0 0.0
    %2821 = vmatprep.subr.mxu0 0.0
    %2822 = vmatpush2.msra.mxu0 0.0
    %2823 = vmatprep.subr.mxu0 0.0
    %2824 = vmatpush2.msra.mxu0 0.0
    %2825 = vmatprep.subr.mxu0 0.0
    %2826 = vmatpush2.msra.mxu0 0.0
    %2827 = vmatprep.subr.mxu0 0.0
    %2828 = vmatpush2.msra.mxu0 0.0
    %2829 = vmatprep.subr.mxu0 0.0
    %2830 = vmatpush2.msra.mxu0 0.0
    %2831 = vmatprep.subr.mxu0 0.0
    %2832 = vmatpush2.msra.mxu0 0.0
    %2833 = vmatprep.subr.mxu0 0.0
    %2834 = vmatpush2.msra.mxu0 0.0
    %2835 = vmatprep.subr.mxu0 0.0
    %2836 = vmatpush2.msra.mxu0 0.0
    %2837 = vmatprep.subr.mxu0 0.0
    %2838 = vmatpush2.msra.mxu0 0.0
    %2839 = vmatprep.subr.mxu0 0.0
    %2840 = vmatpush2.msra.mxu0 0.0
    %2841 = vmatprep.subr.mxu0 0.0
    %2842 = vmatpush2.msra.mxu0 0.0
    %2843 = vmatprep.subr.mxu0 0.0
    %2844 = vmatpush2.msra.mxu0 0.0
    %2845 = vmatprep.subr.mxu0 0.0
    %2846 = vmatpush2.msra.mxu0 0.0
    %2847 = vmatprep.mubr.f32.mxu0 0.0
    %2848 = vmatmul.mubr.f32.gmra.mxu0 %v2647
    %v2849 = vpop.f32.mrf.mxu0
    %v2850 = vadd.f32 0.0, %v2849
    %v2851 = vpop.f32.mrf.mxu0
    %v2852 = vadd.f32 0.0, %v2851
    %2853 = vdwg.mxu0
    %v2854 = vadd.f32 %v2779, %v90
    %2855 = vst [vmem:[#allocation10 + $0x28] sm:$0xff] %v2854
    %2856 = vmax.xlane.f32.xlu0 %v2854
    %v2857 = vpop.xlane.xlu0 %2856
    %vm2858 = vcmp.eq.f32.partialorder %v2854, %v2857
    %v2859 = vsel %vm2858, %v93, 128
    %v2860 = vand.u32 %v2859, 65535
    %v2861 = vshra.s32 %v2859, 16
    %v2862 = vcvt.s32.f32 %v2860
    %v2863 = vcvt.s32.f32 %v2861
    %2864 = vmin.xlane.f32.xlu0 %v2863
    %v2865 = vpop.xlane.xlu0 %2864
    %vm2866 = vcmp.eq.f32.partialorder %v2863, %v2865
    %v2867 = vsel %vm2866, %v2862, inf
    %2868 = vmin.xlane.f32.xlu0 %v2867
    %v2869 = vpop.xlane.xlu0 %2868
    %v2870 = vcvt.f32.s32 %v2869
    %v2871 = vcvt.f32.s32 %v2865
    %v2872 = vshll.u32 %v2871, 16
    %v2873 = vadd.s32 %v2872, %v2870
    %vm2874 = vcmp.eq.s32.totalorder %v93, %v2873
    %v2875 = vsel %vm2874, 1, 0
    %v2876 = vcvt.s32.f32 %v2875
    %v2877 = vld [vmem:[#allocation7] sm:$0xff]
    %v2878 = vld [vmem:[#allocation7 + $0x8] sm:$0xff]
    %v2879 = vld [vmem:[#allocation7 + $0x10] sm:$0xff]
    %v2880 = vld [vmem:[#allocation7 + $0x18] sm:$0xff]
    %v2881 = vld [vmem:[#allocation7 + $0x20] sm:$0xff]
    %v2882 = vld [vmem:[#allocation7 + $0x28] sm:$0xff]
    %v2883 = vld [vmem:[#allocation7 + $0x30] sm:$0xff]
    %v2884 = vld [vmem:[#allocation7 + $0x38] sm:$0xff]
    %v2885 = vld [vmem:[#allocation7 + $0x40] sm:$0xff]
    %v2886 = vld [vmem:[#allocation7 + $0x48] sm:$0xff]
    %v2887 = vld [vmem:[#allocation7 + $0x50] sm:$0xff]
    %v2888 = vld [vmem:[#allocation7 + $0x58] sm:$0xff]
    %v2889 = vld [vmem:[#allocation7 + $0x60] sm:$0xff]
    %v2890 = vld [vmem:[#allocation7 + $0x68] sm:$0xff]
    %v2891 = vld [vmem:[#allocation7 + $0x70] sm:$0xff]
    %v2892 = vld [vmem:[#allocation7 + $0x78] sm:$0xff]
    %v2893 = vld [vmem:[#allocation7 + $0x80] sm:$0xff]
    %v2894 = vld [vmem:[#allocation7 + $0x88] sm:$0xff]
    %v2895 = vld [vmem:[#allocation7 + $0x90] sm:$0xff]
    %v2896 = vld [vmem:[#allocation7 + $0x98] sm:$0xff]
    %v2897 = vld [vmem:[#allocation7 + $0xa0] sm:$0xff]
    %v2898 = vld [vmem:[#allocation7 + $0xa8] sm:$0xff]
    %v2899 = vld [vmem:[#allocation7 + $0xb0] sm:$0xff]
    %v2900 = vld [vmem:[#allocation7 + $0xb8] sm:$0xff]
    %v2901 = vld [vmem:[#allocation7 + $0xc0] sm:$0xff]
    %v2902 = vld [vmem:[#allocation7 + $0xc8] sm:$0xff]
    %v2903 = vld [vmem:[#allocation7 + $0xd0] sm:$0xff]
    %v2904 = vld [vmem:[#allocation7 + $0xd8] sm:$0xff]
    %v2905 = vld [vmem:[#allocation7 + $0xe0] sm:$0xff]
    %v2906 = vld [vmem:[#allocation7 + $0xe8] sm:$0xff]
    %v2907 = vld [vmem:[#allocation7 + $0xf0] sm:$0xff]
    %v2908 = vld [vmem:[#allocation7 + $0xf8] sm:$0xff]
    %v2909 = vld [vmem:[#allocation7 + $0x100] sm:$0xff]
    %v2910 = vld [vmem:[#allocation7 + $0x108] sm:$0xff]
    %v2911 = vld [vmem:[#allocation7 + $0x110] sm:$0xff]
    %v2912 = vld [vmem:[#allocation7 + $0x118] sm:$0xff]
    %v2913 = vld [vmem:[#allocation7 + $0x120] sm:$0xff]
    %v2914 = vld [vmem:[#allocation7 + $0x128] sm:$0xff]
    %v2915 = vld [vmem:[#allocation7 + $0x130] sm:$0xff]
    %v2916 = vld [vmem:[#allocation7 + $0x138] sm:$0xff]
    %v2917 = vld [vmem:[#allocation7 + $0x140] sm:$0xff]
    %v2918 = vld [vmem:[#allocation7 + $0x148] sm:$0xff]
    %v2919 = vld [vmem:[#allocation7 + $0x150] sm:$0xff]
    %v2920 = vld [vmem:[#allocation7 + $0x158] sm:$0xff]
    %v2921 = vld [vmem:[#allocation7 + $0x160] sm:$0xff]
    %v2922 = vld [vmem:[#allocation7 + $0x168] sm:$0xff]
    %v2923 = vld [vmem:[#allocation7 + $0x170] sm:$0xff]
    %v2924 = vld [vmem:[#allocation7 + $0x178] sm:$0xff]
    %2925 = vmatprep.subr.mxu0 %v2923
    %2926 = vmatpush1.msra.mxu0 %v2922
    %2927 = vmatprep.subr.mxu0 %v2920
    %2928 = vmatpush1.msra.mxu0 %v2919
    %2929 = vmatprep.subr.mxu0 %v2917
    %2930 = vmatpush1.msra.mxu0 %v2916
    %2931 = vmatprep.subr.mxu0 %v2914
    %2932 = vmatpush1.msra.mxu0 %v2913
    %2933 = vmatprep.subr.mxu0 %v2911
    %2934 = vmatpush1.msra.mxu0 %v2910
    %2935 = vmatprep.subr.mxu0 %v2908
    %2936 = vmatpush1.msra.mxu0 %v2907
    %2937 = vmatprep.subr.mxu0 %v2905
    %2938 = vmatpush1.msra.mxu0 %v2904
    %2939 = vmatprep.subr.mxu0 %v2902
    %2940 = vmatpush1.msra.mxu0 %v2901
    %2941 = vmatprep.subr.mxu0 %v2899
    %2942 = vmatpush1.msra.mxu0 %v2898
    %2943 = vmatprep.subr.mxu0 %v2896
    %2944 = vmatpush1.msra.mxu0 %v2895
    %2945 = vmatprep.subr.mxu0 %v2893
    %2946 = vmatpush1.msra.mxu0 %v2892
    %2947 = vmatprep.subr.mxu0 %v2890
    %2948 = vmatpush1.msra.mxu0 %v2889
    %2949 = vmatprep.subr.mxu0 %v2887
    %2950 = vmatpush1.msra.mxu0 %v2886
    %2951 = vmatprep.subr.mxu0 %v2884
    %2952 = vmatpush1.msra.mxu0 %v2883
    %2953 = vmatprep.subr.mxu0 %v2881
    %2954 = vmatpush1.msra.mxu0 %v2880
    %2955 = vmatprep.subr.mxu0 %v2878
    %2956 = vmatpush1.msra.mxu0 %v2877
    %2957 = vmatprep.subr.mxu0 0.0
    %2958 = vmatpush2.msra.mxu0 0.0
    %2959 = vmatprep.subr.mxu0 0.0
    %2960 = vmatpush2.msra.mxu0 0.0
    %2961 = vmatprep.subr.mxu0 0.0
    %2962 = vmatpush2.msra.mxu0 0.0
    %2963 = vmatprep.subr.mxu0 0.0
    %2964 = vmatpush2.msra.mxu0 0.0
    %2965 = vmatprep.subr.mxu0 0.0
    %2966 = vmatpush2.msra.mxu0 0.0
    %2967 = vmatprep.subr.mxu0 0.0
    %2968 = vmatpush2.msra.mxu0 0.0
    %2969 = vmatprep.subr.mxu0 0.0
    %2970 = vmatpush2.msra.mxu0 0.0
    %2971 = vmatprep.subr.mxu0 0.0
    %2972 = vmatpush2.msra.mxu0 0.0
    %2973 = vmatprep.subr.mxu0 0.0
    %2974 = vmatpush2.msra.mxu0 0.0
    %2975 = vmatprep.subr.mxu0 0.0
    %2976 = vmatpush2.msra.mxu0 0.0
    %2977 = vmatprep.subr.mxu0 0.0
    %2978 = vmatpush2.msra.mxu0 0.0
    %2979 = vmatprep.subr.mxu0 0.0
    %2980 = vmatpush2.msra.mxu0 0.0
    %2981 = vmatprep.subr.mxu0 0.0
    %2982 = vmatpush2.msra.mxu0 0.0
    %2983 = vmatprep.subr.mxu0 0.0
    %2984 = vmatpush2.msra.mxu0 0.0
    %2985 = vmatprep.subr.mxu0 0.0
    %2986 = vmatpush2.msra.mxu0 0.0
    %2987 = vmatprep.subr.mxu0 0.0
    %2988 = vmatpush2.msra.mxu0 0.0
    %2989 = vmatprep.mubr.f32.mxu0 0.0
    %2990 = vmatmul.mubr.f32.gmra.mxu0 %v2876
    %v2991 = vpop.f32.mrf.mxu0
    %v2992 = vadd.f32 0.0, %v2991
    %v2993 = vpop.f32.mrf.mxu0
    %v2994 = vadd.f32 0.0, %v2993
    %2995 = vdwg.mxu0
    %2996 = vmatprep.subr.mxu0 0.0
    %2997 = vmatpush1.msra.mxu0 %v2924
    %2998 = vmatprep.subr.mxu0 0.0
    %2999 = vmatpush1.msra.mxu0 %v2921
    %3000 = vmatprep.subr.mxu0 0.0
    %3001 = vmatpush1.msra.mxu0 %v2918
    %3002 = vmatprep.subr.mxu0 0.0
    %3003 = vmatpush1.msra.mxu0 %v2915
    %3004 = vmatprep.subr.mxu0 0.0
    %3005 = vmatpush1.msra.mxu0 %v2912
    %3006 = vmatprep.subr.mxu0 0.0
    %3007 = vmatpush1.msra.mxu0 %v2909
    %3008 = vmatprep.subr.mxu0 0.0
    %3009 = vmatpush1.msra.mxu0 %v2906
    %3010 = vmatprep.subr.mxu0 0.0
    %3011 = vmatpush1.msra.mxu0 %v2903
    %3012 = vmatprep.subr.mxu0 0.0
    %3013 = vmatpush1.msra.mxu0 %v2900
    %3014 = vmatprep.subr.mxu0 0.0
    %3015 = vmatpush1.msra.mxu0 %v2897
    %3016 = vmatprep.subr.mxu0 0.0
    %3017 = vmatpush1.msra.mxu0 %v2894
    %3018 = vmatprep.subr.mxu0 0.0
    %3019 = vmatpush1.msra.mxu0 %v2891
    %3020 = vmatprep.subr.mxu0 0.0
    %3021 = vmatpush1.msra.mxu0 %v2888
    %3022 = vmatprep.subr.mxu0 0.0
    %3023 = vmatpush1.msra.mxu0 %v2885
    %3024 = vmatprep.subr.mxu0 0.0
    %3025 = vmatpush1.msra.mxu0 %v2882
    %3026 = vmatprep.subr.mxu0 0.0
    %3027 = vmatpush1.msra.mxu0 %v2879
    %3028 = vmatprep.subr.mxu0 0.0
    %3029 = vmatpush2.msra.mxu0 0.0
    %3030 = vmatprep.subr.mxu0 0.0
    %3031 = vmatpush2.msra.mxu0 0.0
    %3032 = vmatprep.subr.mxu0 0.0
    %3033 = vmatpush2.msra.mxu0 0.0
    %3034 = vmatprep.subr.mxu0 0.0
    %3035 = vmatpush2.msra.mxu0 0.0
    %3036 = vmatprep.subr.mxu0 0.0
    %3037 = vmatpush2.msra.mxu0 0.0
    %3038 = vmatprep.subr.mxu0 0.0
    %3039 = vmatpush2.msra.mxu0 0.0
    %3040 = vmatprep.subr.mxu0 0.0
    %3041 = vmatpush2.msra.mxu0 0.0
    %3042 = vmatprep.subr.mxu0 0.0
    %3043 = vmatpush2.msra.mxu0 0.0
    %3044 = vmatprep.subr.mxu0 0.0
    %3045 = vmatpush2.msra.mxu0 0.0
    %3046 = vmatprep.subr.mxu0 0.0
    %3047 = vmatpush2.msra.mxu0 0.0
    %3048 = vmatprep.subr.mxu0 0.0
    %3049 = vmatpush2.msra.mxu0 0.0
    %3050 = vmatprep.subr.mxu0 0.0
    %3051 = vmatpush2.msra.mxu0 0.0
    %3052 = vmatprep.subr.mxu0 0.0
    %3053 = vmatpush2.msra.mxu0 0.0
    %3054 = vmatprep.subr.mxu0 0.0
    %3055 = vmatpush2.msra.mxu0 0.0
    %3056 = vmatprep.subr.mxu0 0.0
    %3057 = vmatpush2.msra.mxu0 0.0
    %3058 = vmatprep.subr.mxu0 0.0
    %3059 = vmatpush2.msra.mxu0 0.0
    %3060 = vmatprep.mubr.f32.mxu0 0.0
    %3061 = vmatmul.mubr.f32.gmra.mxu0 %v2876
    %v3062 = vpop.f32.mrf.mxu0
    %v3063 = vadd.f32 0.0, %v3062
    %v3064 = vpop.f32.mrf.mxu0
    %3065 = vdwg.mxu0
    %v3066 = vadd.f32 %v2992, %v2781
    %v3067 = vadd.f32 %v2994, %v2850
    %v3068 = vxor.u32 %v3066, 2147483648
    %v3069 = vxor.u32 %v3067, 2147483648
    %v3070 = vmul.f32 %v3068, 1.442695
    %v3071 = vpow.pop %v3070
    %v3072 = vmul.f32 %v3069, 1.442695
    %v3073 = vpow.pop %v3072
    %v3074 = vadd.f32 %v3071, 1.0
    %v3075 = vadd.f32 %v3073, 1.0
    %v3076 = vrcp.pop %v3074
    %v3077 = vmul.f32 1.0, %v3076
    %v3078 = vrcp.pop %v3075
    %v3079 = vmul.f32 1.0, %v3078
    %v3080 = vadd.f32 %v2852, %v83
    %v3081 = vmul.f32 %v3077, %v3080
    %v3082 = vadd.f32 %v3063, %v3081
    %v3083 = vtanh.pop %v3082
    %v3084 = vsub.f32 1.0, %v3079
    %v3085 = vmul.f32 %v3084, %v3083
    %v3086 = vmul.f32 %v3079, %v2647
    %v3087 = vadd.f32 %v3085, %v3086
    %v3088 = vld [vmem:[#allocation8] sm:$0xff]
    %v3089 = vld [vmem:[#allocation8 + $0x8] sm:$0xff]
    %v3090 = vld [vmem:[#allocation8 + $0x10] sm:$0xff]
    %v3091 = vld [vmem:[#allocation8 + $0x18] sm:$0xff]
    %v3092 = vld [vmem:[#allocation8 + $0x20] sm:$0xff]
    %v3093 = vld [vmem:[#allocation8 + $0x28] sm:$0xff]
    %v3094 = vld [vmem:[#allocation8 + $0x30] sm:$0xff]
    %v3095 = vld [vmem:[#allocation8 + $0x38] sm:$0xff]
    %v3096 = vld [vmem:[#allocation8 + $0x40] sm:$0xff]
    %v3097 = vld [vmem:[#allocation8 + $0x48] sm:$0xff]
    %v3098 = vld [vmem:[#allocation8 + $0x50] sm:$0xff]
    %v3099 = vld [vmem:[#allocation8 + $0x58] sm:$0xff]
    %v3100 = vld [vmem:[#allocation8 + $0x60] sm:$0xff]
    %v3101 = vld [vmem:[#allocation8 + $0x68] sm:$0xff]
    %v3102 = vld [vmem:[#allocation8 + $0x70] sm:$0xff]
    %v3103 = vld [vmem:[#allocation8 + $0x78] sm:$0xff]
    %v3104 = vld [vmem:[#allocation8 + $0x80] sm:$0xff]
    %v3105 = vld [vmem:[#allocation8 + $0x88] sm:$0xff]
    %v3106 = vld [vmem:[#allocation8 + $0x90] sm:$0xff]
    %v3107 = vld [vmem:[#allocation8 + $0x98] sm:$0xff]
    %v3108 = vld [vmem:[#allocation8 + $0xa0] sm:$0xff]
    %v3109 = vld [vmem:[#allocation8 + $0xa8] sm:$0xff]
    %v3110 = vld [vmem:[#allocation8 + $0xb0] sm:$0xff]
    %v3111 = vld [vmem:[#allocation8 + $0xb8] sm:$0xff]
    %v3112 = vld [vmem:[#allocation8 + $0xc0] sm:$0xff]
    %v3113 = vld [vmem:[#allocation8 + $0xc8] sm:$0xff]
    %v3114 = vld [vmem:[#allocation8 + $0xd0] sm:$0xff]
    %v3115 = vld [vmem:[#allocation8 + $0xd8] sm:$0xff]
    %v3116 = vld [vmem:[#allocation8 + $0xe0] sm:$0xff]
    %v3117 = vld [vmem:[#allocation8 + $0xe8] sm:$0xff]
    %v3118 = vld [vmem:[#allocation8 + $0xf0] sm:$0xff]
    %v3119 = vld [vmem:[#allocation8 + $0xf8] sm:$0xff]
    %v3120 = vld [vmem:[#allocation8 + $0x100] sm:$0xff]
    %v3121 = vld [vmem:[#allocation8 + $0x108] sm:$0xff]
    %v3122 = vld [vmem:[#allocation8 + $0x110] sm:$0xff]
    %v3123 = vld [vmem:[#allocation8 + $0x118] sm:$0xff]
    %v3124 = vld [vmem:[#allocation8 + $0x120] sm:$0xff]
    %v3125 = vld [vmem:[#allocation8 + $0x128] sm:$0xff]
    %v3126 = vld [vmem:[#allocation8 + $0x130] sm:$0xff]
    %v3127 = vld [vmem:[#allocation8 + $0x138] sm:$0xff]
    %v3128 = vld [vmem:[#allocation8 + $0x140] sm:$0xff]
    %v3129 = vld [vmem:[#allocation8 + $0x148] sm:$0xff]
    %v3130 = vld [vmem:[#allocation8 + $0x150] sm:$0xff]
    %v3131 = vld [vmem:[#allocation8 + $0x158] sm:$0xff]
    %v3132 = vld [vmem:[#allocation8 + $0x160] sm:$0xff]
    %v3133 = vld [vmem:[#allocation8 + $0x168] sm:$0xff]
    %v3134 = vld [vmem:[#allocation8 + $0x170] sm:$0xff]
    %v3135 = vld [vmem:[#allocation8 + $0x178] sm:$0xff]
    %v3136 = vld [vmem:[#allocation8 + $0x180] sm:$0xff]
    %v3137 = vld [vmem:[#allocation8 + $0x188] sm:$0xff]
    %v3138 = vld [vmem:[#allocation8 + $0x190] sm:$0xff]
    %v3139 = vld [vmem:[#allocation8 + $0x198] sm:$0xff]
    %v3140 = vld [vmem:[#allocation8 + $0x1a0] sm:$0xff]
    %v3141 = vld [vmem:[#allocation8 + $0x1a8] sm:$0xff]
    %v3142 = vld [vmem:[#allocation8 + $0x1b0] sm:$0xff]
    %v3143 = vld [vmem:[#allocation8 + $0x1b8] sm:$0xff]
    %v3144 = vld [vmem:[#allocation8 + $0x1c0] sm:$0xff]
    %v3145 = vld [vmem:[#allocation8 + $0x1c8] sm:$0xff]
    %v3146 = vld [vmem:[#allocation8 + $0x1d0] sm:$0xff]
    %v3147 = vld [vmem:[#allocation8 + $0x1d8] sm:$0xff]
    %v3148 = vld [vmem:[#allocation8 + $0x1e0] sm:$0xff]
    %v3149 = vld [vmem:[#allocation8 + $0x1e8] sm:$0xff]
    %v3150 = vld [vmem:[#allocation8 + $0x1f0] sm:$0xff]
    %v3151 = vld [vmem:[#allocation8 + $0x1f8] sm:$0xff]
    %3152 = vmatprep.subr.mxu0 %v3149
    %3153 = vmatpush1.msra.mxu0 %v3148
    %3154 = vmatprep.subr.mxu0 %v3145
    %3155 = vmatpush1.msra.mxu0 %v3144
    %3156 = vmatprep.subr.mxu0 %v3141
    %3157 = vmatpush1.msra.mxu0 %v3140
    %3158 = vmatprep.subr.mxu0 %v3137
    %3159 = vmatpush1.msra.mxu0 %v3136
    %3160 = vmatprep.subr.mxu0 %v3133
    %3161 = vmatpush1.msra.mxu0 %v3132
    %3162 = vmatprep.subr.mxu0 %v3129
    %3163 = vmatpush1.msra.mxu0 %v3128
    %3164 = vmatprep.subr.mxu0 %v3125
    %3165 = vmatpush1.msra.mxu0 %v3124
    %3166 = vmatprep.subr.mxu0 %v3121
    %3167 = vmatpush1.msra.mxu0 %v3120
    %3168 = vmatprep.subr.mxu0 %v3117
    %3169 = vmatpush1.msra.mxu0 %v3116
    %3170 = vmatprep.subr.mxu0 %v3113
    %3171 = vmatpush1.msra.mxu0 %v3112
    %3172 = vmatprep.subr.mxu0 %v3109
    %3173 = vmatpush1.msra.mxu0 %v3108
    %3174 = vmatprep.subr.mxu0 %v3105
    %3175 = vmatpush1.msra.mxu0 %v3104
    %3176 = vmatprep.subr.mxu0 %v3101
    %3177 = vmatpush1.msra.mxu0 %v3100
    %3178 = vmatprep.subr.mxu0 %v3097
    %3179 = vmatpush1.msra.mxu0 %v3096
    %3180 = vmatprep.subr.mxu0 %v3093
    %3181 = vmatpush1.msra.mxu0 %v3092
    %3182 = vmatprep.subr.mxu0 %v3089
    %3183 = vmatpush1.msra.mxu0 %v3088
    %3184 = vmatprep.subr.mxu0 0.0
    %3185 = vmatpush2.msra.mxu0 0.0
    %3186 = vmatprep.subr.mxu0 0.0
    %3187 = vmatpush2.msra.mxu0 0.0
    %3188 = vmatprep.subr.mxu0 0.0
    %3189 = vmatpush2.msra.mxu0 0.0
    %3190 = vmatprep.subr.mxu0 0.0
    %3191 = vmatpush2.msra.mxu0 0.0
    %3192 = vmatprep.subr.mxu0 0.0
    %3193 = vmatpush2.msra.mxu0 0.0
    %3194 = vmatprep.subr.mxu0 0.0
    %3195 = vmatpush2.msra.mxu0 0.0
    %3196 = vmatprep.subr.mxu0 0.0
    %3197 = vmatpush2.msra.mxu0 0.0
    %3198 = vmatprep.subr.mxu0 0.0
    %3199 = vmatpush2.msra.mxu0 0.0
    %3200 = vmatprep.subr.mxu0 0.0
    %3201 = vmatpush2.msra.mxu0 0.0
    %3202 = vmatprep.subr.mxu0 0.0
    %3203 = vmatpush2.msra.mxu0 0.0
    %3204 = vmatprep.subr.mxu0 0.0
    %3205 = vmatpush2.msra.mxu0 0.0
    %3206 = vmatprep.subr.mxu0 0.0
    %3207 = vmatpush2.msra.mxu0 0.0
    %3208 = vmatprep.subr.mxu0 0.0
    %3209 = vmatpush2.msra.mxu0 0.0
    %3210 = vmatprep.subr.mxu0 0.0
    %3211 = vmatpush2.msra.mxu0 0.0
    %3212 = vmatprep.subr.mxu0 0.0
    %3213 = vmatpush2.msra.mxu0 0.0
    %3214 = vmatprep.subr.mxu0 0.0
    %3215 = vmatpush2.msra.mxu0 0.0
    %3216 = vmatprep.mubr.f32.mxu0 0.0
    %3217 = vmatmul.mubr.f32.gmra.mxu0 %v3087
    %v3218 = vpop.f32.mrf.mxu0
    %v3219 = vadd.f32 0.0, %v3218
    %v3220 = vpop.f32.mrf.mxu0
    %v3221 = vadd.f32 0.0, %v3220
    %3222 = vdwg.mxu0
    %3223 = vmatprep.subr.mxu0 %v3151
    %3224 = vmatpush1.msra.mxu0 %v3150
    %3225 = vmatprep.subr.mxu0 %v3147
    %3226 = vmatpush1.msra.mxu0 %v3146
    %3227 = vmatprep.subr.mxu0 %v3143
    %3228 = vmatpush1.msra.mxu0 %v3142
    %3229 = vmatprep.subr.mxu0 %v3139
    %3230 = vmatpush1.msra.mxu0 %v3138
    %3231 = vmatprep.subr.mxu0 %v3135
    %3232 = vmatpush1.msra.mxu0 %v3134
    %3233 = vmatprep.subr.mxu0 %v3131
    %3234 = vmatpush1.msra.mxu0 %v3130
    %3235 = vmatprep.subr.mxu0 %v3127
    %3236 = vmatpush1.msra.mxu0 %v3126
    %3237 = vmatprep.subr.mxu0 %v3123
    %3238 = vmatpush1.msra.mxu0 %v3122
    %3239 = vmatprep.subr.mxu0 %v3119
    %3240 = vmatpush1.msra.mxu0 %v3118
    %3241 = vmatprep.subr.mxu0 %v3115
    %3242 = vmatpush1.msra.mxu0 %v3114
    %3243 = vmatprep.subr.mxu0 %v3111
    %3244 = vmatpush1.msra.mxu0 %v3110
    %3245 = vmatprep.subr.mxu0 %v3107
    %3246 = vmatpush1.msra.mxu0 %v3106
    %3247 = vmatprep.subr.mxu0 %v3103
    %3248 = vmatpush1.msra.mxu0 %v3102
    %3249 = vmatprep.subr.mxu0 %v3099
    %3250 = vmatpush1.msra.mxu0 %v3098
    %3251 = vmatprep.subr.mxu0 %v3095
    %3252 = vmatpush1.msra.mxu0 %v3094
    %3253 = vmatprep.subr.mxu0 %v3091
    %3254 = vmatpush1.msra.mxu0 %v3090
    %3255 = vmatprep.subr.mxu0 0.0
    %3256 = vmatpush2.msra.mxu0 0.0
    %3257 = vmatprep.subr.mxu0 0.0
    %3258 = vmatpush2.msra.mxu0 0.0
    %3259 = vmatprep.subr.mxu0 0.0
    %3260 = vmatpush2.msra.mxu0 0.0
    %3261 = vmatprep.subr.mxu0 0.0
    %3262 = vmatpush2.msra.mxu0 0.0
    %3263 = vmatprep.subr.mxu0 0.0
    %3264 = vmatpush2.msra.mxu0 0.0
    %3265 = vmatprep.subr.mxu0 0.0
    %3266 = vmatpush2.msra.mxu0 0.0
    %3267 = vmatprep.subr.mxu0 0.0
    %3268 = vmatpush2.msra.mxu0 0.0
    %3269 = vmatprep.subr.mxu0 0.0
    %3270 = vmatpush2.msra.mxu0 0.0
    %3271 = vmatprep.subr.mxu0 0.0
    %3272 = vmatpush2.msra.mxu0 0.0
    %3273 = vmatprep.subr.mxu0 0.0
    %3274 = vmatpush2.msra.mxu0 0.0
    %3275 = vmatprep.subr.mxu0 0.0
    %3276 = vmatpush2.msra.mxu0 0.0
    %3277 = vmatprep.subr.mxu0 0.0
    %3278 = vmatpush2.msra.mxu0 0.0
    %3279 = vmatprep.subr.mxu0 0.0
    %3280 = vmatpush2.msra.mxu0 0.0
    %3281 = vmatprep.subr.mxu0 0.0
    %3282 = vmatpush2.msra.mxu0 0.0
    %3283 = vmatprep.subr.mxu0 0.0
    %3284 = vmatpush2.msra.mxu0 0.0
    %3285 = vmatprep.subr.mxu0 0.0
    %3286 = vmatpush2.msra.mxu0 0.0
    %3287 = vmatprep.mubr.f32.mxu0 0.0
    %3288 = vmatmul.mubr.f32.gmra.mxu0 %v3087
    %v3289 = vpop.f32.mrf.mxu0
    %v3290 = vadd.f32 0.0, %v3289
    %v3291 = vpop.f32.mrf.mxu0
    %v3292 = vadd.f32 0.0, %v3291
    %3293 = vdwg.mxu0
    %v3294 = vadd.f32 %v3219, %v90
    %3295 = vst [vmem:[#allocation10 + $0x30] sm:$0xff] %v3294
    %3296 = vmax.xlane.f32.xlu0 %v3294
    %v3297 = vpop.xlane.xlu0 %3296
    %vm3298 = vcmp.eq.f32.partialorder %v3294, %v3297
    %v3299 = vsel %vm3298, %v93, 128
    %v3300 = vand.u32 %v3299, 65535
    %v3301 = vshra.s32 %v3299, 16
    %v3302 = vcvt.s32.f32 %v3300
    %v3303 = vcvt.s32.f32 %v3301
    %3304 = vmin.xlane.f32.xlu0 %v3303
    %v3305 = vpop.xlane.xlu0 %3304
    %vm3306 = vcmp.eq.f32.partialorder %v3303, %v3305
    %v3307 = vsel %vm3306, %v3302, inf
    %3308 = vmin.xlane.f32.xlu0 %v3307
    %v3309 = vpop.xlane.xlu0 %3308
    %v3310 = vcvt.f32.s32 %v3309
    %v3311 = vcvt.f32.s32 %v3305
    %v3312 = vshll.u32 %v3311, 16
    %v3313 = vadd.s32 %v3312, %v3310
    %vm3314 = vcmp.eq.s32.totalorder %v93, %v3313
    %v3315 = vsel %vm3314, 1, 0
    %v3316 = vcvt.s32.f32 %v3315
    %v3317 = vld [vmem:[#allocation7] sm:$0xff]
    %v3318 = vld [vmem:[#allocation7 + $0x8] sm:$0xff]
    %v3319 = vld [vmem:[#allocation7 + $0x10] sm:$0xff]
    %v3320 = vld [vmem:[#allocation7 + $0x18] sm:$0xff]
    %v3321 = vld [vmem:[#allocation7 + $0x20] sm:$0xff]
    %v3322 = vld [vmem:[#allocation7 + $0x28] sm:$0xff]
    %v3323 = vld [vmem:[#allocation7 + $0x30] sm:$0xff]
    %v3324 = vld [vmem:[#allocation7 + $0x38] sm:$0xff]
    %v3325 = vld [vmem:[#allocation7 + $0x40] sm:$0xff]
    %v3326 = vld [vmem:[#allocation7 + $0x48] sm:$0xff]
    %v3327 = vld [vmem:[#allocation7 + $0x50] sm:$0xff]
    %v3328 = vld [vmem:[#allocation7 + $0x58] sm:$0xff]
    %v3329 = vld [vmem:[#allocation7 + $0x60] sm:$0xff]
    %v3330 = vld [vmem:[#allocation7 + $0x68] sm:$0xff]
    %v3331 = vld [vmem:[#allocation7 + $0x70] sm:$0xff]
    %v3332 = vld [vmem:[#allocation7 + $0x78] sm:$0xff]
    %v3333 = vld [vmem:[#allocation7 + $0x80] sm:$0xff]
    %v3334 = vld [vmem:[#allocation7 + $0x88] sm:$0xff]
    %v3335 = vld [vmem:[#allocation7 + $0x90] sm:$0xff]
    %v3336 = vld [vmem:[#allocation7 + $0x98] sm:$0xff]
    %v3337 = vld [vmem:[#allocation7 + $0xa0] sm:$0xff]
    %v3338 = vld [vmem:[#allocation7 + $0xa8] sm:$0xff]
    %v3339 = vld [vmem:[#allocation7 + $0xb0] sm:$0xff]
    %v3340 = vld [vmem:[#allocation7 + $0xb8] sm:$0xff]
    %v3341 = vld [vmem:[#allocation7 + $0xc0] sm:$0xff]
    %v3342 = vld [vmem:[#allocation7 + $0xc8] sm:$0xff]
    %v3343 = vld [vmem:[#allocation7 + $0xd0] sm:$0xff]
    %v3344 = vld [vmem:[#allocation7 + $0xd8] sm:$0xff]
    %v3345 = vld [vmem:[#allocation7 + $0xe0] sm:$0xff]
    %v3346 = vld [vmem:[#allocation7 + $0xe8] sm:$0xff]
    %v3347 = vld [vmem:[#allocation7 + $0xf0] sm:$0xff]
    %v3348 = vld [vmem:[#allocation7 + $0xf8] sm:$0xff]
    %v3349 = vld [vmem:[#allocation7 + $0x100] sm:$0xff]
    %v3350 = vld [vmem:[#allocation7 + $0x108] sm:$0xff]
    %v3351 = vld [vmem:[#allocation7 + $0x110] sm:$0xff]
    %v3352 = vld [vmem:[#allocation7 + $0x118] sm:$0xff]
    %v3353 = vld [vmem:[#allocation7 + $0x120] sm:$0xff]
    %v3354 = vld [vmem:[#allocation7 + $0x128] sm:$0xff]
    %v3355 = vld [vmem:[#allocation7 + $0x130] sm:$0xff]
    %v3356 = vld [vmem:[#allocation7 + $0x138] sm:$0xff]
    %v3357 = vld [vmem:[#allocation7 + $0x140] sm:$0xff]
    %v3358 = vld [vmem:[#allocation7 + $0x148] sm:$0xff]
    %v3359 = vld [vmem:[#allocation7 + $0x150] sm:$0xff]
    %v3360 = vld [vmem:[#allocation7 + $0x158] sm:$0xff]
    %v3361 = vld [vmem:[#allocation7 + $0x160] sm:$0xff]
    %v3362 = vld [vmem:[#allocation7 + $0x168] sm:$0xff]
    %v3363 = vld [vmem:[#allocation7 + $0x170] sm:$0xff]
    %v3364 = vld [vmem:[#allocation7 + $0x178] sm:$0xff]
    %3365 = vmatprep.subr.mxu0 %v3363
    %3366 = vmatpush1.msra.mxu0 %v3362
    %3367 = vmatprep.subr.mxu0 %v3360
    %3368 = vmatpush1.msra.mxu0 %v3359
    %3369 = vmatprep.subr.mxu0 %v3357
    %3370 = vmatpush1.msra.mxu0 %v3356
    %3371 = vmatprep.subr.mxu0 %v3354
    %3372 = vmatpush1.msra.mxu0 %v3353
    %3373 = vmatprep.subr.mxu0 %v3351
    %3374 = vmatpush1.msra.mxu0 %v3350
    %3375 = vmatprep.subr.mxu0 %v3348
    %3376 = vmatpush1.msra.mxu0 %v3347
    %3377 = vmatprep.subr.mxu0 %v3345
    %3378 = vmatpush1.msra.mxu0 %v3344
    %3379 = vmatprep.subr.mxu0 %v3342
    %3380 = vmatpush1.msra.mxu0 %v3341
    %3381 = vmatprep.subr.mxu0 %v3339
    %3382 = vmatpush1.msra.mxu0 %v3338
    %3383 = vmatprep.subr.mxu0 %v3336
    %3384 = vmatpush1.msra.mxu0 %v3335
    %3385 = vmatprep.subr.mxu0 %v3333
    %3386 = vmatpush1.msra.mxu0 %v3332
    %3387 = vmatprep.subr.mxu0 %v3330
    %3388 = vmatpush1.msra.mxu0 %v3329
    %3389 = vmatprep.subr.mxu0 %v3327
    %3390 = vmatpush1.msra.mxu0 %v3326
    %3391 = vmatprep.subr.mxu0 %v3324
    %3392 = vmatpush1.msra.mxu0 %v3323
    %3393 = vmatprep.subr.mxu0 %v3321
    %3394 = vmatpush1.msra.mxu0 %v3320
    %3395 = vmatprep.subr.mxu0 %v3318
    %3396 = vmatpush1.msra.mxu0 %v3317
    %3397 = vmatprep.subr.mxu0 0.0
    %3398 = vmatpush2.msra.mxu0 0.0
    %3399 = vmatprep.subr.mxu0 0.0
    %3400 = vmatpush2.msra.mxu0 0.0
    %3401 = vmatprep.subr.mxu0 0.0
    %3402 = vmatpush2.msra.mxu0 0.0
    %3403 = vmatprep.subr.mxu0 0.0
    %3404 = vmatpush2.msra.mxu0 0.0
    %3405 = vmatprep.subr.mxu0 0.0
    %3406 = vmatpush2.msra.mxu0 0.0
    %3407 = vmatprep.subr.mxu0 0.0
    %3408 = vmatpush2.msra.mxu0 0.0
    %3409 = vmatprep.subr.mxu0 0.0
    %3410 = vmatpush2.msra.mxu0 0.0
    %3411 = vmatprep.subr.mxu0 0.0
    %3412 = vmatpush2.msra.mxu0 0.0
    %3413 = vmatprep.subr.mxu0 0.0
    %3414 = vmatpush2.msra.mxu0 0.0
    %3415 = vmatprep.subr.mxu0 0.0
    %3416 = vmatpush2.msra.mxu0 0.0
    %3417 = vmatprep.subr.mxu0 0.0
    %3418 = vmatpush2.msra.mxu0 0.0
    %3419 = vmatprep.subr.mxu0 0.0
    %3420 = vmatpush2.msra.mxu0 0.0
    %3421 = vmatprep.subr.mxu0 0.0
    %3422 = vmatpush2.msra.mxu0 0.0
    %3423 = vmatprep.subr.mxu0 0.0
    %3424 = vmatpush2.msra.mxu0 0.0
    %3425 = vmatprep.subr.mxu0 0.0
    %3426 = vmatpush2.msra.mxu0 0.0
    %3427 = vmatprep.subr.mxu0 0.0
    %3428 = vmatpush2.msra.mxu0 0.0
    %3429 = vmatprep.mubr.f32.mxu0 0.0
    %3430 = vmatmul.mubr.f32.gmra.mxu0 %v3316
    %v3431 = vpop.f32.mrf.mxu0
    %v3432 = vadd.f32 0.0, %v3431
    %v3433 = vpop.f32.mrf.mxu0
    %v3434 = vadd.f32 0.0, %v3433
    %3435 = vdwg.mxu0
    %3436 = vmatprep.subr.mxu0 0.0
    %3437 = vmatpush1.msra.mxu0 %v3364
    %3438 = vmatprep.subr.mxu0 0.0
    %3439 = vmatpush1.msra.mxu0 %v3361
    %3440 = vmatprep.subr.mxu0 0.0
    %3441 = vmatpush1.msra.mxu0 %v3358
    %3442 = vmatprep.subr.mxu0 0.0
    %3443 = vmatpush1.msra.mxu0 %v3355
    %3444 = vmatprep.subr.mxu0 0.0
    %3445 = vmatpush1.msra.mxu0 %v3352
    %3446 = vmatprep.subr.mxu0 0.0
    %3447 = vmatpush1.msra.mxu0 %v3349
    %3448 = vmatprep.subr.mxu0 0.0
    %3449 = vmatpush1.msra.mxu0 %v3346
    %3450 = vmatprep.subr.mxu0 0.0
    %3451 = vmatpush1.msra.mxu0 %v3343
    %3452 = vmatprep.subr.mxu0 0.0
    %3453 = vmatpush1.msra.mxu0 %v3340
    %3454 = vmatprep.subr.mxu0 0.0
    %3455 = vmatpush1.msra.mxu0 %v3337
    %3456 = vmatprep.subr.mxu0 0.0
    %3457 = vmatpush1.msra.mxu0 %v3334
    %3458 = vmatprep.subr.mxu0 0.0
    %3459 = vmatpush1.msra.mxu0 %v3331
    %3460 = vmatprep.subr.mxu0 0.0
    %3461 = vmatpush1.msra.mxu0 %v3328
    %3462 = vmatprep.subr.mxu0 0.0
    %3463 = vmatpush1.msra.mxu0 %v3325
    %3464 = vmatprep.subr.mxu0 0.0
    %3465 = vmatpush1.msra.mxu0 %v3322
    %3466 = vmatprep.subr.mxu0 0.0
    %3467 = vmatpush1.msra.mxu0 %v3319
    %3468 = vmatprep.subr.mxu0 0.0
    %3469 = vmatpush2.msra.mxu0 0.0
    %3470 = vmatprep.subr.mxu0 0.0
    %3471 = vmatpush2.msra.mxu0 0.0
    %3472 = vmatprep.subr.mxu0 0.0
    %3473 = vmatpush2.msra.mxu0 0.0
    %3474 = vmatprep.subr.mxu0 0.0
    %3475 = vmatpush2.msra.mxu0 0.0
    %3476 = vmatprep.subr.mxu0 0.0
    %3477 = vmatpush2.msra.mxu0 0.0
    %3478 = vmatprep.subr.mxu0 0.0
    %3479 = vmatpush2.msra.mxu0 0.0
    %3480 = vmatprep.subr.mxu0 0.0
    %3481 = vmatpush2.msra.mxu0 0.0
    %3482 = vmatprep.subr.mxu0 0.0
    %3483 = vmatpush2.msra.mxu0 0.0
    %3484 = vmatprep.subr.mxu0 0.0
    %3485 = vmatpush2.msra.mxu0 0.0
    %3486 = vmatprep.subr.mxu0 0.0
    %3487 = vmatpush2.msra.mxu0 0.0
    %3488 = vmatprep.subr.mxu0 0.0
    %3489 = vmatpush2.msra.mxu0 0.0
    %3490 = vmatprep.subr.mxu0 0.0
    %3491 = vmatpush2.msra.mxu0 0.0
    %3492 = vmatprep.subr.mxu0 0.0
    %3493 = vmatpush2.msra.mxu0 0.0
    %3494 = vmatprep.subr.mxu0 0.0
    %3495 = vmatpush2.msra.mxu0 0.0
    %3496 = vmatprep.subr.mxu0 0.0
    %3497 = vmatpush2.msra.mxu0 0.0
    %3498 = vmatprep.subr.mxu0 0.0
    %3499 = vmatpush2.msra.mxu0 0.0
    %3500 = vmatprep.mubr.f32.mxu0 0.0
    %3501 = vmatmul.mubr.f32.gmra.mxu0 %v3316
    %v3502 = vpop.f32.mrf.mxu0
    %v3503 = vadd.f32 0.0, %v3502
    %v3504 = vpop.f32.mrf.mxu0
    %3505 = vdwg.mxu0
    %v3506 = vadd.f32 %v3432, %v3221
    %v3507 = vadd.f32 %v3434, %v3290
    %v3508 = vxor.u32 %v3506, 2147483648
    %v3509 = vxor.u32 %v3507, 2147483648
    %v3510 = vmul.f32 %v3508, 1.442695
    %v3511 = vpow.pop %v3510
    %v3512 = vmul.f32 %v3509, 1.442695
    %v3513 = vpow.pop %v3512
    %v3514 = vadd.f32 %v3511, 1.0
    %v3515 = vadd.f32 %v3513, 1.0
    %v3516 = vrcp.pop %v3514
    %v3517 = vmul.f32 1.0, %v3516
    %v3518 = vrcp.pop %v3515
    %v3519 = vmul.f32 1.0, %v3518
    %v3520 = vadd.f32 %v3292, %v83
    %v3521 = vmul.f32 %v3517, %v3520
    %v3522 = vadd.f32 %v3503, %v3521
    %v3523 = vtanh.pop %v3522
    %v3524 = vsub.f32 1.0, %v3519
    %v3525 = vmul.f32 %v3524, %v3523
    %v3526 = vmul.f32 %v3519, %v3087
    %v3527 = vadd.f32 %v3525, %v3526
    %v3528 = vld [vmem:[#allocation8] sm:$0xff]
    %v3529 = vld [vmem:[#allocation8 + $0x20] sm:$0xff]
    %v3530 = vld [vmem:[#allocation8 + $0x40] sm:$0xff]
    %v3531 = vld [vmem:[#allocation8 + $0x60] sm:$0xff]
    %v3532 = vld [vmem:[#allocation8 + $0x80] sm:$0xff]
    %v3533 = vld [vmem:[#allocation8 + $0xa0] sm:$0xff]
    %v3534 = vld [vmem:[#allocation8 + $0xc0] sm:$0xff]
    %v3535 = vld [vmem:[#allocation8 + $0xe0] sm:$0xff]
    %v3536 = vld [vmem:[#allocation8 + $0x100] sm:$0xff]
    %v3537 = vld [vmem:[#allocation8 + $0x120] sm:$0xff]
    %v3538 = vld [vmem:[#allocation8 + $0x140] sm:$0xff]
    %v3539 = vld [vmem:[#allocation8 + $0x160] sm:$0xff]
    %v3540 = vld [vmem:[#allocation8 + $0x180] sm:$0xff]
    %v3541 = vld [vmem:[#allocation8 + $0x1a0] sm:$0xff]
    %v3542 = vld [vmem:[#allocation8 + $0x1c0] sm:$0xff]
    %v3543 = vld [vmem:[#allocation8 + $0x1e0] sm:$0xff]
    %3544 = vmatprep.subr.mxu0 0.0
    %3545 = vmatpush1.msra.mxu0 %v3543
    %3546 = vmatprep.subr.mxu0 0.0
    %3547 = vmatpush1.msra.mxu0 %v3542
    %3548 = vmatprep.subr.mxu0 0.0
    %3549 = vmatpush1.msra.mxu0 %v3541
    %3550 = vmatprep.subr.mxu0 0.0
    %3551 = vmatpush1.msra.mxu0 %v3540
    %3552 = vmatprep.subr.mxu0 0.0
    %3553 = vmatpush1.msra.mxu0 %v3539
    %3554 = vmatprep.subr.mxu0 0.0
    %3555 = vmatpush1.msra.mxu0 %v3538
    %3556 = vmatprep.subr.mxu0 0.0
    %3557 = vmatpush1.msra.mxu0 %v3537
    %3558 = vmatprep.subr.mxu0 0.0
    %3559 = vmatpush1.msra.mxu0 %v3536
    %3560 = vmatprep.subr.mxu0 0.0
    %3561 = vmatpush1.msra.mxu0 %v3535
    %3562 = vmatprep.subr.mxu0 0.0
    %3563 = vmatpush1.msra.mxu0 %v3534
    %3564 = vmatprep.subr.mxu0 0.0
    %3565 = vmatpush1.msra.mxu0 %v3533
    %3566 = vmatprep.subr.mxu0 0.0
    %3567 = vmatpush1.msra.mxu0 %v3532
    %3568 = vmatprep.subr.mxu0 0.0
    %3569 = vmatpush1.msra.mxu0 %v3531
    %3570 = vmatprep.subr.mxu0 0.0
    %3571 = vmatpush1.msra.mxu0 %v3530
    %3572 = vmatprep.subr.mxu0 0.0
    %3573 = vmatpush1.msra.mxu0 %v3529
    %3574 = vmatprep.subr.mxu0 0.0
    %3575 = vmatpush1.msra.mxu0 %v3528
    %3576 = vmatprep.subr.mxu0 0.0
    %3577 = vmatpush2.msra.mxu0 0.0
    %3578 = vmatprep.subr.mxu0 0.0
    %3579 = vmatpush2.msra.mxu0 0.0
    %3580 = vmatprep.subr.mxu0 0.0
    %3581 = vmatpush2.msra.mxu0 0.0
    %3582 = vmatprep.subr.mxu0 0.0
    %3583 = vmatpush2.msra.mxu0 0.0
    %3584 = vmatprep.subr.mxu0 0.0
    %3585 = vmatpush2.msra.mxu0 0.0
    %3586 = vmatprep.subr.mxu0 0.0
    %3587 = vmatpush2.msra.mxu0 0.0
    %3588 = vmatprep.subr.mxu0 0.0
    %3589 = vmatpush2.msra.mxu0 0.0
    %3590 = vmatprep.subr.mxu0 0.0
    %3591 = vmatpush2.msra.mxu0 0.0
    %3592 = vmatprep.subr.mxu0 0.0
    %3593 = vmatpush2.msra.mxu0 0.0
    %3594 = vmatprep.subr.mxu0 0.0
    %3595 = vmatpush2.msra.mxu0 0.0
    %3596 = vmatprep.subr.mxu0 0.0
    %3597 = vmatpush2.msra.mxu0 0.0
    %3598 = vmatprep.subr.mxu0 0.0
    %3599 = vmatpush2.msra.mxu0 0.0
    %3600 = vmatprep.subr.mxu0 0.0
    %3601 = vmatpush2.msra.mxu0 0.0
    %3602 = vmatprep.subr.mxu0 0.0
    %3603 = vmatpush2.msra.mxu0 0.0
    %3604 = vmatprep.subr.mxu0 0.0
    %3605 = vmatpush2.msra.mxu0 0.0
    %3606 = vmatprep.subr.mxu0 0.0
    %3607 = vmatpush2.msra.mxu0 0.0
    %3608 = vmatprep.mubr.f32.mxu0 0.0
    %3609 = vmatmul.mubr.f32.gmra.mxu0 %v3527
    %v3610 = vpop.f32.mrf.mxu0
    %v3611 = vadd.f32 %v90, %v3610
    %v3612 = vpop.f32.mrf.mxu0
    %3613 = vdwg.mxu0
    %3614 = vst [vmem:[#allocation10 + $0x38] sm:$0xff] %v3611
    %vm3615 = vcmask 261120
    %3616 = vst.msk [vmem:[#allocation11] sm:$0xff] %vm3615, %v3527
    // Predicated region
    $region42: #{tpu_custom_call.1} parent=1 // pred_check
      _
    $region43: #{tpu_custom_call.1} parent=1 // pred_check_branch
      %3618 = sbr.rel (0) target = $region45
    $region44: #{tpu_custom_call.1} parent=1 // pred_region
      %s3620 = ssub.s32 1024, 1024
      %3621 = vsyncadd [#allocation4], %s3620
      %s3623 = sshll.u32 [#allocation10], 4
      %s3624 = int_to_ptr.vmem [resolvable:$true] %s3623
      %3626 = dma.vmem_to_hbm [thread:$0]  %s3624, 1024, %s6, [#allocation4]
    $region45: #{tpu_custom_call.1} parent=1 // pred_fallthru
      _
    // Predicated region
    $region46: #{tpu_custom_call.1} parent=1 // pred_check
      _
    $region47: #{tpu_custom_call.1} parent=1 // pred_check_branch
      %3628 = sbr.rel (0) target = $region49
    $region48: #{tpu_custom_call.1} parent=1 // pred_region
      %s3630 = ssub.s32 128, 128
      %3631 = vsyncadd [#allocation12], %s3630
      %s3633 = sshll.u32 [#allocation11], 4
      %s3634 = int_to_ptr.vmem [resolvable:$true] %s3633
      %3636 = dma.vmem_to_hbm [thread:$0]  %s3634, 128, %s7, [#allocation12]
    $region49: #{tpu_custom_call.1} parent=1 // pred_fallthru
      _
    // Predicated region
    $region50: #{tpu_custom_call.1} parent=1 // pred_check
      _
    $region51: #{tpu_custom_call.1} parent=1 // pred_check_branch
      %3638 = sbr.rel (0) target = $region53
    $region52: #{tpu_custom_call.1} parent=1 // pred_region
      %3639 = dma.done [#allocation4], 1024
    $region53: #{tpu_custom_call.1} parent=1 // pred_fallthru
      _
    // Predicated region
    $region54: #{tpu_custom_call.1} parent=1 // pred_check
      _
    $region55: #{tpu_custom_call.1} parent=1 // pred_check_branch
      %3641 = sbr.rel (0) target = $region57
    $region56: #{tpu_custom_call.1} parent=1 // pred_region
      %3642 = dma.done [#allocation12], 128
    $region57: #{tpu_custom_call.1} parent=1 // pred_fallthru
      _
    %3643 = vsyncpa [#allocation3], 1
    %3644 = vsyncpa [#allocation6], 1
    %3645 = vsyncpa [#allocation9], 1
    %3646 = vsyncpa [#allocation4], 1
    %3647 = vsyncpa [#allocation12], 1

</llo_original>
